<compile_context>
chip_gen: v7x
topology: tpu7x:2x2x1
jax: 0.10.0
libtpu: 0.0.40
codegen_flags: <defaults>
</compile_context>

<pallas_src>
import functools
import math

import jax
import jax.numpy as jnp
from jax.experimental import pallas as pl
from jax.experimental.pallas import tpu as pltpu


# ------------------------------- config -------------------------------------

class Config:
    vocab = 128
    hidden = 64
    n_heads = 4
    head_dim = 16
    ffn = 128
    n_layers = 2
    seq = 8
    batch = 2
    lora_r = 8
    lora_alpha = 16          # args.lora_alpha
    # dataset == 'boolq' -> two ids (tokenizer.encode('False')[1], ...('True')[1])
    id_list = (3, 7)
    lm_pad = 128             # selected lm_head columns padded to a full lane tile


# ----------------------------- fused kernel ---------------------------------

def _fused_forward_kernel(
        h_ref, bias_ref,
        ln1_ref, wqkv_ref, bqkv_ref, la_ref, lb_ref,
        wo_ref, bo_ref,
        ln2_ref, w1_ref, b1_ref, w2_ref, b2_ref,
        lnf_ref, lmw_ref, lmb_ref,
        out_ref,
        *, B, S, nH, Dh, n_layers, lora_scale, eps):
    H = nH * Dh
    M = B * S

    def layernorm(x, gb):
        gamma = gb[0:1].astype(jnp.float32)
        beta = gb[1:2].astype(jnp.float32)
        mean = jnp.mean(x, axis=-1, keepdims=True)
        xc = x - mean
        var = jnp.mean(xc * xc, axis=-1, keepdims=True)
        return xc * jax.lax.rsqrt(var + eps) * gamma + beta

    h = h_ref[...].astype(jnp.float32)              # [M, H]
    attn_bias = bias_ref[...].astype(jnp.float32)   # [B, S, S] (causal + padding)
    inv_sqrt_dh = jnp.float32(1.0 / math.sqrt(Dh))

    for l in range(n_layers):                       # static, fully unrolled
        # ---------------- attention block --------------------------------
        x = layernorm(h, ln1_ref[l])                                   # [M, H]

        # fused QKV matmul + fused (q, v) LoRA delta:
        #   qkv = x @ Wqkv + b + scale * (x @ [Aq|Av]) @ Bblk
        qkv = jnp.dot(x, wqkv_ref[l], preferred_element_type=jnp.float32)
        lo = jnp.dot(x, la_ref[l], preferred_element_type=jnp.float32)        # [M, 2r]
        qkv = (qkv + bqkv_ref[l]
               + lora_scale * jnp.dot(lo, lb_ref[l],
                                      preferred_element_type=jnp.float32))    # [M, 3H]

        q3 = (qkv[:, 0:H] * inv_sqrt_dh).reshape(B, S, H)   # 1/sqrt(Dh) folded in
        k3 = qkv[:, H:2 * H].reshape(B, S, H)
        v3 = qkv[:, 2 * H:3 * H].reshape(B, S, H)

        wo_l = wo_ref[l]                                    # [H, H]
        acc = jnp.zeros((M, H), jnp.float32)
        for hh in range(nH):                                # static head loop (in-kernel)
            sl = slice(hh * Dh, (hh + 1) * Dh)
            s = jnp.einsum('bqd,bkd->bqk', q3[:, :, sl], k3[:, :, sl],
                           preferred_element_type=jnp.float32)        # [B, S, S]
            s = s + attn_bias
            m = jnp.max(s, axis=-1, keepdims=True)
            p = jnp.exp(s - m)
            denom = jnp.sum(p, axis=-1, keepdims=True)
            ah = jnp.einsum('bqk,bkd->bqd', p, v3[:, :, sl],
                            preferred_element_type=jnp.float32)       # [B, S, Dh]
            ah = ah * pl.reciprocal(denom, approx=True)
            # head-merge fused into the output projection (linearity of Wo)
            acc = acc + jnp.dot(ah.reshape(M, Dh), wo_l[sl, :],
                                preferred_element_type=jnp.float32)
        h = h + acc + bo_ref[l]

        # ---------------- MLP block ---------------------------------------
        x = layernorm(h, ln2_ref[l])
        u = jnp.dot(x, w1_ref[l], preferred_element_type=jnp.float32) + b1_ref[l]
        u = jax.nn.gelu(u, approximate=True)   # gelu_new-style tanh approximation
        h = h + jnp.dot(u, w2_ref[l], preferred_element_type=jnp.float32) + b2_ref[l]

    # -------- final LN + (id_list-selected, lane-padded) lm_head -----------
    h = layernorm(h, lnf_ref[...])
    logits = jnp.dot(h, lmw_ref[...], preferred_element_type=jnp.float32) + lmb_ref[...]
    out_ref[...] = logits.astype(out_ref.dtype)             # [M, lm_pad], lane-dense


# -------------------------- parameter preparation ---------------------------

def init_params(cfg, key):
    ks = iter(jax.random.split(key, 64))

    def rnd(shape, scale=0.02):
        return (scale * jax.random.normal(next(ks), shape)).astype(jnp.float32)

    params = {
        "tok_emb": rnd((cfg.vocab, cfg.hidden)),
        "pos_emb": rnd((cfg.seq, cfg.hidden)),
        "ln_f_g": jnp.ones((cfg.hidden,), jnp.float32),
        "ln_f_b": jnp.zeros((cfg.hidden,), jnp.float32),
        "lm_head": rnd((cfg.hidden, cfg.vocab)),
        "lm_head_b": jnp.zeros((cfg.vocab,), jnp.float32),
        "layers": [],
    }
    for _ in range(cfg.n_layers):
        H, F, r = cfg.hidden, cfg.ffn, cfg.lora_r
        layer = {
            "ln1_g": jnp.ones((H,), jnp.float32), "ln1_b": jnp.zeros((H,), jnp.float32),
            "ln2_g": jnp.ones((H,), jnp.float32), "ln2_b": jnp.zeros((H,), jnp.float32),
            "wq": rnd((H, H)), "bq": jnp.zeros((H,), jnp.float32),
            "wk": rnd((H, H)), "bk": jnp.zeros((H,), jnp.float32),
            "wv": rnd((H, H)), "bv": jnp.zeros((H,), jnp.float32),
            "wo": rnd((H, H)), "bo": jnp.zeros((H,), jnp.float32),
            # LoRA on q_proj / v_proj (PEFT inits B=0; small nonzero here so the
            # LoRA branch of the kernel is actually exercised)
            "q_lora_a": rnd((H, r), 0.1), "q_lora_b": rnd((r, H), 0.1),
            "v_lora_a": rnd((H, r), 0.1), "v_lora_b": rnd((r, H), 0.1),
            "w1": rnd((H, F)), "b1": jnp.zeros((F,), jnp.float32),
            "w2": rnd((F, H)), "b2": jnp.zeros((H,), jnp.float32),
        }
        params["layers"].append(layer)
    return params


def prepare_fused_weights(params, cfg):
    """Stack per-layer weights and pre-fuse QKV / LoRA / lm_head for the kernel."""
    H, r = cfg.hidden, cfg.lora_r
    layers = params["layers"]

    ln1 = jnp.stack([jnp.stack([l["ln1_g"], l["ln1_b"]]) for l in layers])   # [L,2,H]
    ln2 = jnp.stack([jnp.stack([l["ln2_g"], l["ln2_b"]]) for l in layers])   # [L,2,H]
    lnf = jnp.stack([params["ln_f_g"], params["ln_f_b"]])                    # [2,H]

    wqkv = jnp.stack([jnp.concatenate([l["wq"], l["wk"], l["wv"]], axis=1)
                      for l in layers])                                      # [L,H,3H]
    bqkv = jnp.stack([jnp.concatenate([l["bq"], l["bk"], l["bv"]])[None, :]
                      for l in layers])                                      # [L,1,3H]

    # fused LoRA: A = [Aq | Av] (H, 2r); B placed block-wise into (2r, 3H) so a
    # single (x@A)@B lands the q delta on cols [0:H] and the v delta on [2H:3H].
    la = jnp.stack([jnp.concatenate([l["q_lora_a"], l["v_lora_a"]], axis=1)
                    for l in layers])                                        # [L,H,2r]
    lb_list = []
    for l in layers:
        blk = jnp.zeros((2 * r, 3 * H), jnp.float32)
        blk = blk.at[0:r, 0:H].set(l["q_lora_b"])
        blk = blk.at[r:2 * r, 2 * H:3 * H].set(l["v_lora_b"])
        lb_list.append(blk)
    lb = jnp.stack(lb_list)                                                  # [L,2r,3H]

    wo = jnp.stack([l["wo"] for l in layers])                                # [L,H,H]
    bo = jnp.stack([l["bo"][None, :] for l in layers])                       # [L,1,H]
    w1 = jnp.stack([l["w1"] for l in layers])                                # [L,H,F]
    b1 = jnp.stack([l["b1"][None, :] for l in layers])                       # [L,1,F]
    w2 = jnp.stack([l["w2"] for l in layers])                                # [L,F,H]
    b2 = jnp.stack([l["b2"][None, :] for l in layers])                       # [L,1,H]

    # lm_head reduced to the id_list columns, zero-padded to a 128-lane tile
    ids = jnp.array(cfg.id_list, dtype=jnp.int32)
    lmw_sel = params["lm_head"][:, ids]                  # [H, n_ids]
    lmb_sel = params["lm_head_b"][ids]                   # [n_ids]
    pad = cfg.lm_pad - len(cfg.id_list)
    lmw = jnp.pad(lmw_sel, ((0, 0), (0, pad)))           # [H, lm_pad]
    lmb = jnp.pad(lmb_sel, (0, pad))[None, :]            # [1, lm_pad]

    return dict(ln1=ln1, wqkv=wqkv, bqkv=bqkv, la=la, lb=lb, wo=wo, bo=bo,
                ln2=ln2, w1=w1, b1=b1, w2=w2, b2=b2, lnf=lnf, lmw=lmw, lmb=lmb)


# ------------------------------ forward --------------------------------------

def laplace_gpt_forward(params, batch, cfg):
    """Equivalent of laplace_gpt.forward(batch, returnt='logits')."""
    input_ids = batch["input_ids"]                                   # [B, S] int32
    attention_mask = batch.get("attention_mask", jnp.ones_like(input_ids))
    # labels are popped / ignored, as in WrappedModel_normal.forward

    B, S = input_ids.shape
    H, nH, Dh = cfg.hidden, cfg.n_heads, cfg.head_dim
    M = B * S
    lora_scale = cfg.lora_alpha / cfg.lora_r

    # ---- JAX glue: embedding lookup + combined causal/padding bias --------
    h0 = (jnp.take(params["tok_emb"], input_ids, axis=0)
          + params["pos_emb"][None, :S, :]).reshape(M, H).astype(jnp.float32)
    causal = jnp.tril(jnp.ones((S, S), dtype=bool))
    key_ok = attention_mask.astype(bool)                             # [B, S]
    valid = causal[None, :, :] & key_ok[:, None, :]                  # [B, S, S]
    attn_bias = jnp.where(valid, 0.0, -1e30).astype(jnp.float32)     # f32 mask bias

    w = prepare_fused_weights(params, cfg)

    kern = functools.partial(
        _fused_forward_kernel,
        B=B, S=S, nH=nH, Dh=Dh, n_layers=cfg.n_layers,
        lora_scale=float(lora_scale), eps=1e-5)

    # Whole forward in one pallas_call; every weight tensor is VMEM-resident
    # (total << 1 MiB, comfortably under the v7x 64 MiB budget).
    logits_sel_all = pl.pallas_call(
        kern,
        out_shape=jax.ShapeDtypeStruct((M, cfg.lm_pad), jnp.float32),
        compiler_params=pltpu.CompilerParams(vmem_limit_bytes=32 * 1024 * 1024),
    )(h0, attn_bias,
      w["ln1"], w["wqkv"], w["bqkv"], w["la"], w["lb"],
      w["wo"], w["bo"],
      w["ln2"], w["w1"], w["b1"], w["w2"], w["b2"],
      w["lnf"], w["lmw"], w["lmb"])

    # WrappedModel_normal: logits[:, -1, id_list].to(float32)
    out = logits_sel_all.reshape(B, S, cfg.lm_pad)[:, -1, :len(cfg.id_list)]
    return out.astype(jnp.float32)
    # TODO(synk): lora_dropout is not applied (inference-mode forward).


# --------------------------------- main ---------------------------------------

if __name__ == "__main__":
    cfg = Config()
    key = jax.random.PRNGKey(0)
    k_param, k_ids = jax.random.split(key)

    params = init_params(cfg, k_param)
    input_ids = jax.random.randint(k_ids, (cfg.batch, cfg.seq), 0, cfg.vocab,
                                   dtype=jnp.int32)
    attention_mask = jnp.ones((cfg.batch, cfg.seq), dtype=jnp.int32)
    batch = {"input_ids": input_ids, "attention_mask": attention_mask,
             "labels": input_ids}   # labels are popped/ignored, as in the module

    out = laplace_gpt_forward(params, batch, cfg)
    out = jax.block_until_ready(out)

    assert out.shape == (cfg.batch, len(cfg.id_list))
    assert out.dtype == jnp.float32
    print("KERNEL_OK")
</pallas_src>

<mosaic_0001>
module attributes {stable_mosaic.version = 11 : i64} {
  func.func @_fused_forward_kernel(%arg0: memref<16x64xf32, #tpu.memory_space<vmem>>, %arg1: memref<2x8x8xf32, #tpu.memory_space<vmem>>, %arg2: memref<2x2x64xf32, #tpu.memory_space<vmem>>, %arg3: memref<2x64x192xf32, #tpu.memory_space<vmem>>, %arg4: memref<2x1x192xf32, #tpu.memory_space<vmem>>, %arg5: memref<2x64x16xf32, #tpu.memory_space<vmem>>, %arg6: memref<2x16x192xf32, #tpu.memory_space<vmem>>, %arg7: memref<2x64x64xf32, #tpu.memory_space<vmem>>, %arg8: memref<2x1x64xf32, #tpu.memory_space<vmem>>, %arg9: memref<2x2x64xf32, #tpu.memory_space<vmem>>, %arg10: memref<2x64x128xf32, #tpu.memory_space<vmem>>, %arg11: memref<2x1x128xf32, #tpu.memory_space<vmem>>, %arg12: memref<2x128x64xf32, #tpu.memory_space<vmem>>, %arg13: memref<2x1x64xf32, #tpu.memory_space<vmem>>, %arg14: memref<2x64xf32, #tpu.memory_space<vmem>>, %arg15: memref<64x128xf32, #tpu.memory_space<vmem>>, %arg16: memref<1x128xf32, #tpu.memory_space<vmem>>, %arg17: memref<16x128xf32, #tpu.memory_space<vmem>>) attributes {dimension_semantics = [], scalar_prefetch = 0 : i64, scratch_operands = 0 : i64, tpu.core_type = #tpu.core_type<tc>} {
    %c0 = arith.constant 0 : index
    %c0_0 = arith.constant 0 : index
    %0 = vector.load %arg0[%c0, %c0_0] : memref<16x64xf32, #tpu.memory_space<vmem>>, vector<16x64xf32>
    %c0_1 = arith.constant 0 : index
    %c0_2 = arith.constant 0 : index
    %c0_3 = arith.constant 0 : index
    %1 = vector.load %arg1[%c0_1, %c0_2, %c0_3] : memref<2x8x8xf32, #tpu.memory_space<vmem>>, vector<2x8x8xf32>
    %c0_4 = arith.constant 0 : index
    %c0_5 = arith.constant 0 : index
    %c0_6 = arith.constant 0 : index
    %2 = vector.load %arg2[%c0_4, %c0_5, %c0_6] : memref<2x2x64xf32, #tpu.memory_space<vmem>>, vector<1x2x64xf32>
    %3 = vector.shape_cast %2 : vector<1x2x64xf32> to vector<2x64xf32>
    %4 = vector.extract_strided_slice %3 {offsets = [0, 0], sizes = [1, 64], strides = [1, 1]} : vector<2x64xf32> to vector<1x64xf32>
    %5 = vector.extract_strided_slice %3 {offsets = [1, 0], sizes = [1, 64], strides = [1, 1]} : vector<2x64xf32> to vector<1x64xf32>
    %cst = arith.constant dense<0.000000e+00> : vector<16xf32>
    %6 = vector.multi_reduction <add>, %0, %cst [1] : vector<16x64xf32> to vector<16xf32>
    %7 = vector.shape_cast %6 : vector<16xf32> to vector<16x1xf32>
    %cst_7 = arith.constant 6.400000e+01 : f32
    %8 = vector.broadcast %cst_7 : f32 to vector<16x1xf32>
    %9 = arith.divf %7, %8 : vector<16x1xf32>
    %10 = vector.broadcast %9 : vector<16x1xf32> to vector<16x64xf32>
    %11 = arith.subf %0, %10 : vector<16x64xf32>
    %12 = arith.mulf %11, %11 : vector<16x64xf32>
    %cst_8 = arith.constant dense<0.000000e+00> : vector<16xf32>
    %13 = vector.multi_reduction <add>, %12, %cst_8 [1] : vector<16x64xf32> to vector<16xf32>
    %14 = vector.shape_cast %13 : vector<16xf32> to vector<16x1xf32>
    %cst_9 = arith.constant 6.400000e+01 : f32
    %15 = vector.broadcast %cst_9 : f32 to vector<16x1xf32>
    %16 = arith.divf %14, %15 : vector<16x1xf32>
    %cst_10 = arith.constant 9.99999974E-6 : f32
    %17 = vector.broadcast %cst_10 : f32 to vector<16x1xf32>
    %18 = arith.addf %16, %17 : vector<16x1xf32>
    %19 = math.rsqrt %18 : vector<16x1xf32>
    %20 = vector.broadcast %19 : vector<16x1xf32> to vector<16x64xf32>
    %21 = arith.mulf %11, %20 : vector<16x64xf32>
    %22 = vector.broadcast %4 : vector<1x64xf32> to vector<16x64xf32>
    %23 = arith.mulf %21, %22 : vector<16x64xf32>
    %24 = vector.broadcast %5 : vector<1x64xf32> to vector<16x64xf32>
    %25 = arith.addf %23, %24 : vector<16x64xf32>
    %c0_11 = arith.constant 0 : index
    %c0_12 = arith.constant 0 : index
    %c0_13 = arith.constant 0 : index
    %26 = vector.load %arg3[%c0_11, %c0_12, %c0_13] : memref<2x64x192xf32, #tpu.memory_space<vmem>>, vector<1x64x192xf32>
    %27 = vector.shape_cast %26 : vector<1x64x192xf32> to vector<64x192xf32>
    %cst_14 = arith.constant dense<0.000000e+00> : vector<16x192xf32>
    %28 = tpu.matmul %25, %27, %cst_14 {dimension_numbers = #tpu.dot_dimension_numbers<[1], [0], [0], [1], [0, 0, 1, 1], [], []>} : vector<16x64xf32>, vector<64x192xf32>, vector<16x192xf32> -> vector<16x192xf32>
    %c0_15 = arith.constant 0 : index
    %c0_16 = arith.constant 0 : index
    %c0_17 = arith.constant 0 : index
    %29 = vector.load %arg5[%c0_15, %c0_16, %c0_17] : memref<2x64x16xf32, #tpu.memory_space<vmem>>, vector<1x64x16xf32>
    %30 = vector.shape_cast %29 : vector<1x64x16xf32> to vector<64x16xf32>
    %cst_18 = arith.constant dense<0.000000e+00> : vector<16x16xf32>
    %31 = tpu.matmul %25, %30, %cst_18 {dimension_numbers = #tpu.dot_dimension_numbers<[1], [0], [0], [1], [0, 0, 1, 1], [], []>} : vector<16x64xf32>, vector<64x16xf32>, vector<16x16xf32> -> vector<16x16xf32>
    %c0_19 = arith.constant 0 : index
    %c0_20 = arith.constant 0 : index
    %c0_21 = arith.constant 0 : index
    %32 = vector.load %arg4[%c0_19, %c0_20, %c0_21] : memref<2x1x192xf32, #tpu.memory_space<vmem>>, vector<1x1x192xf32>
    %33 = vector.shape_cast %32 : vector<1x1x192xf32> to vector<1x192xf32>
    %34 = vector.broadcast %33 : vector<1x192xf32> to vector<16x192xf32>
    %35 = arith.addf %28, %34 : vector<16x192xf32>
    %c0_22 = arith.constant 0 : index
    %c0_23 = arith.constant 0 : index
    %c0_24 = arith.constant 0 : index
    %36 = vector.load %arg6[%c0_22, %c0_23, %c0_24] : memref<2x16x192xf32, #tpu.memory_space<vmem>>, vector<1x16x192xf32>
    %37 = vector.shape_cast %36 : vector<1x16x192xf32> to vector<16x192xf32>
    %cst_25 = arith.constant dense<0.000000e+00> : vector<16x192xf32>
    %38 = tpu.matmul %31, %37, %cst_25 {dimension_numbers = #tpu.dot_dimension_numbers<[1], [0], [0], [1], [0, 0, 1, 1], [], []>} : vector<16x16xf32>, vector<16x192xf32>, vector<16x192xf32> -> vector<16x192xf32>
    %cst_26 = arith.constant 2.000000e+00 : f32
    %39 = vector.broadcast %cst_26 : f32 to vector<16x192xf32>
    %40 = arith.mulf %39, %38 : vector<16x192xf32>
    %41 = arith.addf %35, %40 : vector<16x192xf32>
    %42 = vector.extract_strided_slice %41 {offsets = [0, 0], sizes = [16, 64], strides = [1, 1]} : vector<16x192xf32> to vector<16x64xf32>
    %cst_27 = arith.constant 2.500000e-01 : f32
    %43 = vector.broadcast %cst_27 : f32 to vector<16x64xf32>
    %44 = arith.mulf %42, %43 : vector<16x64xf32>
    %45 = vector.shape_cast %44 : vector<16x64xf32> to vector<2x8x64xf32>
    %46 = vector.extract_strided_slice %41 {offsets = [0, 64], sizes = [16, 64], strides = [1, 1]} : vector<16x192xf32> to vector<16x64xf32>
    %47 = vector.shape_cast %46 : vector<16x64xf32> to vector<2x8x64xf32>
    %48 = vector.extract_strided_slice %41 {offsets = [0, 128], sizes = [16, 64], strides = [1, 1]} : vector<16x192xf32> to vector<16x64xf32>
    %49 = vector.shape_cast %48 : vector<16x64xf32> to vector<2x8x64xf32>
    %c0_28 = arith.constant 0 : index
    %c0_29 = arith.constant 0 : index
    %c0_30 = arith.constant 0 : index
    %50 = vector.load %arg7[%c0_28, %c0_29, %c0_30] : memref<2x64x64xf32, #tpu.memory_space<vmem>>, vector<1x64x64xf32>
    %51 = vector.shape_cast %50 : vector<1x64x64xf32> to vector<64x64xf32>
    %cst_31 = arith.constant 0.000000e+00 : f32
    %52 = vector.broadcast %cst_31 : f32 to vector<16x64xf32>
    %53 = vector.extract_strided_slice %45 {offsets = [0, 0, 0], sizes = [2, 8, 16], strides = [1, 1, 1]} : vector<2x8x64xf32> to vector<2x8x16xf32>
    %54 = vector.extract_strided_slice %47 {offsets = [0, 0, 0], sizes = [2, 8, 16], strides = [1, 1, 1]} : vector<2x8x64xf32> to vector<2x8x16xf32>
    "tpu.trace_start"() <{level = 10 : i32, message = "bqd,bkd->bqk"}> : () -> ()
    %cst_32 = arith.constant dense<0.000000e+00> : vector<2x8x8xf32>
    %55 = tpu.matmul %53, %54, %cst_32 {dimension_numbers = #tpu.dot_dimension_numbers<[2], [2], [1], [1], [0, 0, 0, 1, 1, 1], [0], [0]>} : vector<2x8x16xf32>, vector<2x8x16xf32>, vector<2x8x8xf32> -> vector<2x8x8xf32>
    "tpu.trace_stop"() : () -> ()
    %56 = arith.addf %55, %1 : vector<2x8x8xf32>
    %cst_33 = arith.constant dense<0xFF800000> : vector<2x8xf32>
    %57 = vector.multi_reduction <maximumf>, %56, %cst_33 [2] : vector<2x8x8xf32> to vector<2x8xf32>
    %58 = vector.shape_cast %57 : vector<2x8xf32> to vector<2x8x1xf32>
    %59 = vector.broadcast %58 : vector<2x8x1xf32> to vector<2x8x8xf32>
    %60 = arith.subf %56, %59 : vector<2x8x8xf32>
    %61 = math.exp %60 : vector<2x8x8xf32>
    %cst_34 = arith.constant dense<0.000000e+00> : vector<2x8xf32>
    %62 = vector.multi_reduction <add>, %61, %cst_34 [2] : vector<2x8x8xf32> to vector<2x8xf32>
    %63 = vector.shape_cast %62 : vector<2x8xf32> to vector<2x8x1xf32>
    %64 = vector.extract_strided_slice %49 {offsets = [0, 0, 0], sizes = [2, 8, 16], strides = [1, 1, 1]} : vector<2x8x64xf32> to vector<2x8x16xf32>
    "tpu.trace_start"() <{level = 10 : i32, message = "bqk,bkd->bqd"}> : () -> ()
    %cst_35 = arith.constant dense<0.000000e+00> : vector<2x8x16xf32>
    %65 = tpu.matmul %61, %64, %cst_35 {dimension_numbers = #tpu.dot_dimension_numbers<[2], [1], [1], [2], [0, 0, 0, 1, 1, 2], [0], [0]>} : vector<2x8x8xf32>, vector<2x8x16xf32>, vector<2x8x16xf32> -> vector<2x8x16xf32>
    "tpu.trace_stop"() : () -> ()
    %66 = tpu.reciprocal %63 {approx = true} : vector<2x8x1xf32> -> vector<2x8x1xf32>
    %67 = vector.broadcast %66 : vector<2x8x1xf32> to vector<2x8x16xf32>
    %68 = arith.mulf %65, %67 : vector<2x8x16xf32>
    %69 = vector.shape_cast %68 : vector<2x8x16xf32> to vector<16x16xf32>
    %70 = vector.extract_strided_slice %51 {offsets = [0, 0], sizes = [16, 64], strides = [1, 1]} : vector<64x64xf32> to vector<16x64xf32>
    %cst_36 = arith.constant dense<0.000000e+00> : vector<16x64xf32>
    %71 = tpu.matmul %69, %70, %cst_36 {dimension_numbers = #tpu.dot_dimension_numbers<[1], [0], [0], [1], [0, 0, 1, 1], [], []>} : vector<16x16xf32>, vector<16x64xf32>, vector<16x64xf32> -> vector<16x64xf32>
    %72 = arith.addf %52, %71 : vector<16x64xf32>
    %73 = vector.extract_strided_slice %45 {offsets = [0, 0, 16], sizes = [2, 8, 16], strides = [1, 1, 1]} : vector<2x8x64xf32> to vector<2x8x16xf32>
    %74 = vector.extract_strided_slice %47 {offsets = [0, 0, 16], sizes = [2, 8, 16], strides = [1, 1, 1]} : vector<2x8x64xf32> to vector<2x8x16xf32>
    "tpu.trace_start"() <{level = 10 : i32, message = "bqd,bkd->bqk"}> : () -> ()
    %cst_37 = arith.constant dense<0.000000e+00> : vector<2x8x8xf32>
    %75 = tpu.matmul %73, %74, %cst_37 {dimension_numbers = #tpu.dot_dimension_numbers<[2], [2], [1], [1], [0, 0, 0, 1, 1, 1], [0], [0]>} : vector<2x8x16xf32>, vector<2x8x16xf32>, vector<2x8x8xf32> -> vector<2x8x8xf32>
    "tpu.trace_stop"() : () -> ()
    %76 = arith.addf %75, %1 : vector<2x8x8xf32>
    %cst_38 = arith.constant dense<0xFF800000> : vector<2x8xf32>
    %77 = vector.multi_reduction <maximumf>, %76, %cst_38 [2] : vector<2x8x8xf32> to vector<2x8xf32>
    %78 = vector.shape_cast %77 : vector<2x8xf32> to vector<2x8x1xf32>
    %79 = vector.broadcast %78 : vector<2x8x1xf32> to vector<2x8x8xf32>
    %80 = arith.subf %76, %79 : vector<2x8x8xf32>
    %81 = math.exp %80 : vector<2x8x8xf32>
    %cst_39 = arith.constant dense<0.000000e+00> : vector<2x8xf32>
    %82 = vector.multi_reduction <add>, %81, %cst_39 [2] : vector<2x8x8xf32> to vector<2x8xf32>
    %83 = vector.shape_cast %82 : vector<2x8xf32> to vector<2x8x1xf32>
    %84 = vector.extract_strided_slice %49 {offsets = [0, 0, 16], sizes = [2, 8, 16], strides = [1, 1, 1]} : vector<2x8x64xf32> to vector<2x8x16xf32>
    "tpu.trace_start"() <{level = 10 : i32, message = "bqk,bkd->bqd"}> : () -> ()
    %cst_40 = arith.constant dense<0.000000e+00> : vector<2x8x16xf32>
    %85 = tpu.matmul %81, %84, %cst_40 {dimension_numbers = #tpu.dot_dimension_numbers<[2], [1], [1], [2], [0, 0, 0, 1, 1, 2], [0], [0]>} : vector<2x8x8xf32>, vector<2x8x16xf32>, vector<2x8x16xf32> -> vector<2x8x16xf32>
    "tpu.trace_stop"() : () -> ()
    %86 = tpu.reciprocal %83 {approx = true} : vector<2x8x1xf32> -> vector<2x8x1xf32>
    %87 = vector.broadcast %86 : vector<2x8x1xf32> to vector<2x8x16xf32>
    %88 = arith.mulf %85, %87 : vector<2x8x16xf32>
    %89 = vector.shape_cast %88 : vector<2x8x16xf32> to vector<16x16xf32>
    %90 = vector.extract_strided_slice %51 {offsets = [16, 0], sizes = [16, 64], strides = [1, 1]} : vector<64x64xf32> to vector<16x64xf32>
    %cst_41 = arith.constant dense<0.000000e+00> : vector<16x64xf32>
    %91 = tpu.matmul %89, %90, %cst_41 {dimension_numbers = #tpu.dot_dimension_numbers<[1], [0], [0], [1], [0, 0, 1, 1], [], []>} : vector<16x16xf32>, vector<16x64xf32>, vector<16x64xf32> -> vector<16x64xf32>
    %92 = arith.addf %72, %91 : vector<16x64xf32>
    %93 = vector.extract_strided_slice %45 {offsets = [0, 0, 32], sizes = [2, 8, 16], strides = [1, 1, 1]} : vector<2x8x64xf32> to vector<2x8x16xf32>
    %94 = vector.extract_strided_slice %47 {offsets = [0, 0, 32], sizes = [2, 8, 16], strides = [1, 1, 1]} : vector<2x8x64xf32> to vector<2x8x16xf32>
    "tpu.trace_start"() <{level = 10 : i32, message = "bqd,bkd->bqk"}> : () -> ()
    %cst_42 = arith.constant dense<0.000000e+00> : vector<2x8x8xf32>
    %95 = tpu.matmul %93, %94, %cst_42 {dimension_numbers = #tpu.dot_dimension_numbers<[2], [2], [1], [1], [0, 0, 0, 1, 1, 1], [0], [0]>} : vector<2x8x16xf32>, vector<2x8x16xf32>, vector<2x8x8xf32> -> vector<2x8x8xf32>
    "tpu.trace_stop"() : () -> ()
    %96 = arith.addf %95, %1 : vector<2x8x8xf32>
    %cst_43 = arith.constant dense<0xFF800000> : vector<2x8xf32>
    %97 = vector.multi_reduction <maximumf>, %96, %cst_43 [2] : vector<2x8x8xf32> to vector<2x8xf32>
    %98 = vector.shape_cast %97 : vector<2x8xf32> to vector<2x8x1xf32>
    %99 = vector.broadcast %98 : vector<2x8x1xf32> to vector<2x8x8xf32>
    %100 = arith.subf %96, %99 : vector<2x8x8xf32>
    %101 = math.exp %100 : vector<2x8x8xf32>
    %cst_44 = arith.constant dense<0.000000e+00> : vector<2x8xf32>
    %102 = vector.multi_reduction <add>, %101, %cst_44 [2] : vector<2x8x8xf32> to vector<2x8xf32>
    %103 = vector.shape_cast %102 : vector<2x8xf32> to vector<2x8x1xf32>
    %104 = vector.extract_strided_slice %49 {offsets = [0, 0, 32], sizes = [2, 8, 16], strides = [1, 1, 1]} : vector<2x8x64xf32> to vector<2x8x16xf32>
    "tpu.trace_start"() <{level = 10 : i32, message = "bqk,bkd->bqd"}> : () -> ()
    %cst_45 = arith.constant dense<0.000000e+00> : vector<2x8x16xf32>
    %105 = tpu.matmul %101, %104, %cst_45 {dimension_numbers = #tpu.dot_dimension_numbers<[2], [1], [1], [2], [0, 0, 0, 1, 1, 2], [0], [0]>} : vector<2x8x8xf32>, vector<2x8x16xf32>, vector<2x8x16xf32> -> vector<2x8x16xf32>
    "tpu.trace_stop"() : () -> ()
    %106 = tpu.reciprocal %103 {approx = true} : vector<2x8x1xf32> -> vector<2x8x1xf32>
    %107 = vector.broadcast %106 : vector<2x8x1xf32> to vector<2x8x16xf32>
    %108 = arith.mulf %105, %107 : vector<2x8x16xf32>
    %109 = vector.shape_cast %108 : vector<2x8x16xf32> to vector<16x16xf32>
    %110 = vector.extract_strided_slice %51 {offsets = [32, 0], sizes = [16, 64], strides = [1, 1]} : vector<64x64xf32> to vector<16x64xf32>
    %cst_46 = arith.constant dense<0.000000e+00> : vector<16x64xf32>
    %111 = tpu.matmul %109, %110, %cst_46 {dimension_numbers = #tpu.dot_dimension_numbers<[1], [0], [0], [1], [0, 0, 1, 1], [], []>} : vector<16x16xf32>, vector<16x64xf32>, vector<16x64xf32> -> vector<16x64xf32>
    %112 = arith.addf %92, %111 : vector<16x64xf32>
    %113 = vector.extract_strided_slice %45 {offsets = [0, 0, 48], sizes = [2, 8, 16], strides = [1, 1, 1]} : vector<2x8x64xf32> to vector<2x8x16xf32>
    %114 = vector.extract_strided_slice %47 {offsets = [0, 0, 48], sizes = [2, 8, 16], strides = [1, 1, 1]} : vector<2x8x64xf32> to vector<2x8x16xf32>
    "tpu.trace_start"() <{level = 10 : i32, message = "bqd,bkd->bqk"}> : () -> ()
    %cst_47 = arith.constant dense<0.000000e+00> : vector<2x8x8xf32>
    %115 = tpu.matmul %113, %114, %cst_47 {dimension_numbers = #tpu.dot_dimension_numbers<[2], [2], [1], [1], [0, 0, 0, 1, 1, 1], [0], [0]>} : vector<2x8x16xf32>, vector<2x8x16xf32>, vector<2x8x8xf32> -> vector<2x8x8xf32>
    "tpu.trace_stop"() : () -> ()
    %116 = arith.addf %115, %1 : vector<2x8x8xf32>
    %cst_48 = arith.constant dense<0xFF800000> : vector<2x8xf32>
    %117 = vector.multi_reduction <maximumf>, %116, %cst_48 [2] : vector<2x8x8xf32> to vector<2x8xf32>
    %118 = vector.shape_cast %117 : vector<2x8xf32> to vector<2x8x1xf32>
    %119 = vector.broadcast %118 : vector<2x8x1xf32> to vector<2x8x8xf32>
    %120 = arith.subf %116, %119 : vector<2x8x8xf32>
    %121 = math.exp %120 : vector<2x8x8xf32>
    %cst_49 = arith.constant dense<0.000000e+00> : vector<2x8xf32>
    %122 = vector.multi_reduction <add>, %121, %cst_49 [2] : vector<2x8x8xf32> to vector<2x8xf32>
    %123 = vector.shape_cast %122 : vector<2x8xf32> to vector<2x8x1xf32>
    %124 = vector.extract_strided_slice %49 {offsets = [0, 0, 48], sizes = [2, 8, 16], strides = [1, 1, 1]} : vector<2x8x64xf32> to vector<2x8x16xf32>
    "tpu.trace_start"() <{level = 10 : i32, message = "bqk,bkd->bqd"}> : () -> ()
    %cst_50 = arith.constant dense<0.000000e+00> : vector<2x8x16xf32>
    %125 = tpu.matmul %121, %124, %cst_50 {dimension_numbers = #tpu.dot_dimension_numbers<[2], [1], [1], [2], [0, 0, 0, 1, 1, 2], [0], [0]>} : vector<2x8x8xf32>, vector<2x8x16xf32>, vector<2x8x16xf32> -> vector<2x8x16xf32>
    "tpu.trace_stop"() : () -> ()
    %126 = tpu.reciprocal %123 {approx = true} : vector<2x8x1xf32> -> vector<2x8x1xf32>
    %127 = vector.broadcast %126 : vector<2x8x1xf32> to vector<2x8x16xf32>
    %128 = arith.mulf %125, %127 : vector<2x8x16xf32>
    %129 = vector.shape_cast %128 : vector<2x8x16xf32> to vector<16x16xf32>
    %130 = vector.extract_strided_slice %51 {offsets = [48, 0], sizes = [16, 64], strides = [1, 1]} : vector<64x64xf32> to vector<16x64xf32>
    %cst_51 = arith.constant dense<0.000000e+00> : vector<16x64xf32>
    %131 = tpu.matmul %129, %130, %cst_51 {dimension_numbers = #tpu.dot_dimension_numbers<[1], [0], [0], [1], [0, 0, 1, 1], [], []>} : vector<16x16xf32>, vector<16x64xf32>, vector<16x64xf32> -> vector<16x64xf32>
    %132 = arith.addf %112, %131 : vector<16x64xf32>
    %133 = arith.addf %0, %132 : vector<16x64xf32>
    %c0_52 = arith.constant 0 : index
    %c0_53 = arith.constant 0 : index
    %c0_54 = arith.constant 0 : index
    %134 = vector.load %arg8[%c0_52, %c0_53, %c0_54] : memref<2x1x64xf32, #tpu.memory_space<vmem>>, vector<1x1x64xf32>
    %135 = vector.shape_cast %134 : vector<1x1x64xf32> to vector<1x64xf32>
    %136 = vector.broadcast %135 : vector<1x64xf32> to vector<16x64xf32>
    %137 = arith.addf %133, %136 : vector<16x64xf32>
    %c0_55 = arith.constant 0 : index
    %c0_56 = arith.constant 0 : index
    %c0_57 = arith.constant 0 : index
    %138 = vector.load %arg9[%c0_55, %c0_56, %c0_57] : memref<2x2x64xf32, #tpu.memory_space<vmem>>, vector<1x2x64xf32>
    %139 = vector.shape_cast %138 : vector<1x2x64xf32> to vector<2x64xf32>
    %140 = vector.extract_strided_slice %139 {offsets = [0, 0], sizes = [1, 64], strides = [1, 1]} : vector<2x64xf32> to vector<1x64xf32>
    %141 = vector.extract_strided_slice %139 {offsets = [1, 0], sizes = [1, 64], strides = [1, 1]} : vector<2x64xf32> to vector<1x64xf32>
    %cst_58 = arith.constant dense<0.000000e+00> : vector<16xf32>
    %142 = vector.multi_reduction <add>, %137, %cst_58 [1] : vector<16x64xf32> to vector<16xf32>
    %143 = vector.shape_cast %142 : vector<16xf32> to vector<16x1xf32>
    %cst_59 = arith.constant 6.400000e+01 : f32
    %144 = vector.broadcast %cst_59 : f32 to vector<16x1xf32>
    %145 = arith.divf %143, %144 : vector<16x1xf32>
    %146 = vector.broadcast %145 : vector<16x1xf32> to vector<16x64xf32>
    %147 = arith.subf %137, %146 : vector<16x64xf32>
    %148 = arith.mulf %147, %147 : vector<16x64xf32>
    %cst_60 = arith.constant dense<0.000000e+00> : vector<16xf32>
    %149 = vector.multi_reduction <add>, %148, %cst_60 [1] : vector<16x64xf32> to vector<16xf32>
    %150 = vector.shape_cast %149 : vector<16xf32> to vector<16x1xf32>
    %cst_61 = arith.constant 6.400000e+01 : f32
    %151 = vector.broadcast %cst_61 : f32 to vector<16x1xf32>
    %152 = arith.divf %150, %151 : vector<16x1xf32>
    %cst_62 = arith.constant 9.99999974E-6 : f32
    %153 = vector.broadcast %cst_62 : f32 to vector<16x1xf32>
    %154 = arith.addf %152, %153 : vector<16x1xf32>
    %155 = math.rsqrt %154 : vector<16x1xf32>
    %156 = vector.broadcast %155 : vector<16x1xf32> to vector<16x64xf32>
    %157 = arith.mulf %147, %156 : vector<16x64xf32>
    %158 = vector.broadcast %140 : vector<1x64xf32> to vector<16x64xf32>
    %159 = arith.mulf %157, %158 : vector<16x64xf32>
    %160 = vector.broadcast %141 : vector<1x64xf32> to vector<16x64xf32>
    %161 = arith.addf %159, %160 : vector<16x64xf32>
    %c0_63 = arith.constant 0 : index
    %c0_64 = arith.constant 0 : index
    %c0_65 = arith.constant 0 : index
    %162 = vector.load %arg10[%c0_63, %c0_64, %c0_65] : memref<2x64x128xf32, #tpu.memory_space<vmem>>, vector<1x64x128xf32>
    %163 = vector.shape_cast %162 : vector<1x64x128xf32> to vector<64x128xf32>
    %cst_66 = arith.constant dense<0.000000e+00> : vector<16x128xf32>
    %164 = tpu.matmul %161, %163, %cst_66 {dimension_numbers = #tpu.dot_dimension_numbers<[1], [0], [0], [1], [0, 0, 1, 1], [], []>} : vector<16x64xf32>, vector<64x128xf32>, vector<16x128xf32> -> vector<16x128xf32>
    %c0_67 = arith.constant 0 : index
    %c0_68 = arith.constant 0 : index
    %c0_69 = arith.constant 0 : index
    %165 = vector.load %arg11[%c0_67, %c0_68, %c0_69] : memref<2x1x128xf32, #tpu.memory_space<vmem>>, vector<1x1x128xf32>
    %166 = vector.shape_cast %165 : vector<1x1x128xf32> to vector<1x128xf32>
    %167 = vector.broadcast %166 : vector<1x128xf32> to vector<16x128xf32>
    %168 = arith.addf %164, %167 : vector<16x128xf32>
    %169 = arith.mulf %168, %168 : vector<16x128xf32>
    %170 = arith.mulf %168, %169 : vector<16x128xf32>
    %cst_70 = arith.constant 4.471500e-02 : f32
    %171 = vector.broadcast %cst_70 : f32 to vector<16x128xf32>
    %172 = arith.mulf %171, %170 : vector<16x128xf32>
    %173 = arith.addf %168, %172 : vector<16x128xf32>
    %cst_71 = arith.constant 0.797884583 : f32
    %174 = vector.broadcast %cst_71 : f32 to vector<16x128xf32>
    %175 = arith.mulf %174, %173 : vector<16x128xf32>
    %176 = math.tanh %175 : vector<16x128xf32>
    %cst_72 = arith.constant 1.000000e+00 : f32
    %177 = vector.broadcast %cst_72 : f32 to vector<16x128xf32>
    %178 = arith.addf %177, %176 : vector<16x128xf32>
    %cst_73 = arith.constant 5.000000e-01 : f32
    %179 = vector.broadcast %cst_73 : f32 to vector<16x128xf32>
    %180 = arith.mulf %179, %178 : vector<16x128xf32>
    %181 = arith.mulf %168, %180 : vector<16x128xf32>
    %c0_74 = arith.constant 0 : index
    %c0_75 = arith.constant 0 : index
    %c0_76 = arith.constant 0 : index
    %182 = vector.load %arg12[%c0_74, %c0_75, %c0_76] : memref<2x128x64xf32, #tpu.memory_space<vmem>>, vector<1x128x64xf32>
    %183 = vector.shape_cast %182 : vector<1x128x64xf32> to vector<128x64xf32>
    %cst_77 = arith.constant dense<0.000000e+00> : vector<16x64xf32>
    %184 = tpu.matmul %181, %183, %cst_77 {dimension_numbers = #tpu.dot_dimension_numbers<[1], [0], [0], [1], [0, 0, 1, 1], [], []>} : vector<16x128xf32>, vector<128x64xf32>, vector<16x64xf32> -> vector<16x64xf32>
    %185 = arith.addf %137, %184 : vector<16x64xf32>
    %c0_78 = arith.constant 0 : index
    %c0_79 = arith.constant 0 : index
    %c0_80 = arith.constant 0 : index
    %186 = vector.load %arg13[%c0_78, %c0_79, %c0_80] : memref<2x1x64xf32, #tpu.memory_space<vmem>>, vector<1x1x64xf32>
    %187 = vector.shape_cast %186 : vector<1x1x64xf32> to vector<1x64xf32>
    %188 = vector.broadcast %187 : vector<1x64xf32> to vector<16x64xf32>
    %189 = arith.addf %185, %188 : vector<16x64xf32>
    %c1 = arith.constant 1 : index
    %c0_81 = arith.constant 0 : index
    %c0_82 = arith.constant 0 : index
    %190 = vector.load %arg2[%c1, %c0_81, %c0_82] : memref<2x2x64xf32, #tpu.memory_space<vmem>>, vector<1x2x64xf32>
    %191 = vector.shape_cast %190 : vector<1x2x64xf32> to vector<2x64xf32>
    %192 = vector.extract_strided_slice %191 {offsets = [0, 0], sizes = [1, 64], strides = [1, 1]} : vector<2x64xf32> to vector<1x64xf32>
    %193 = vector.extract_strided_slice %191 {offsets = [1, 0], sizes = [1, 64], strides = [1, 1]} : vector<2x64xf32> to vector<1x64xf32>
    %cst_83 = arith.constant dense<0.000000e+00> : vector<16xf32>
    %194 = vector.multi_reduction <add>, %189, %cst_83 [1] : vector<16x64xf32> to vector<16xf32>
    %195 = vector.shape_cast %194 : vector<16xf32> to vector<16x1xf32>
    %cst_84 = arith.constant 6.400000e+01 : f32
    %196 = vector.broadcast %cst_84 : f32 to vector<16x1xf32>
    %197 = arith.divf %195, %196 : vector<16x1xf32>
    %198 = vector.broadcast %197 : vector<16x1xf32> to vector<16x64xf32>
    %199 = arith.subf %189, %198 : vector<16x64xf32>
    %200 = arith.mulf %199, %199 : vector<16x64xf32>
    %cst_85 = arith.constant dense<0.000000e+00> : vector<16xf32>
    %201 = vector.multi_reduction <add>, %200, %cst_85 [1] : vector<16x64xf32> to vector<16xf32>
    %202 = vector.shape_cast %201 : vector<16xf32> to vector<16x1xf32>
    %cst_86 = arith.constant 6.400000e+01 : f32
    %203 = vector.broadcast %cst_86 : f32 to vector<16x1xf32>
    %204 = arith.divf %202, %203 : vector<16x1xf32>
    %cst_87 = arith.constant 9.99999974E-6 : f32
    %205 = vector.broadcast %cst_87 : f32 to vector<16x1xf32>
    %206 = arith.addf %204, %205 : vector<16x1xf32>
    %207 = math.rsqrt %206 : vector<16x1xf32>
    %208 = vector.broadcast %207 : vector<16x1xf32> to vector<16x64xf32>
    %209 = arith.mulf %199, %208 : vector<16x64xf32>
    %210 = vector.broadcast %192 : vector<1x64xf32> to vector<16x64xf32>
    %211 = arith.mulf %209, %210 : vector<16x64xf32>
    %212 = vector.broadcast %193 : vector<1x64xf32> to vector<16x64xf32>
    %213 = arith.addf %211, %212 : vector<16x64xf32>
    %c1_88 = arith.constant 1 : index
    %c0_89 = arith.constant 0 : index
    %c0_90 = arith.constant 0 : index
    %214 = vector.load %arg3[%c1_88, %c0_89, %c0_90] : memref<2x64x192xf32, #tpu.memory_space<vmem>>, vector<1x64x192xf32>
    %215 = vector.shape_cast %214 : vector<1x64x192xf32> to vector<64x192xf32>
    %cst_91 = arith.constant dense<0.000000e+00> : vector<16x192xf32>
    %216 = tpu.matmul %213, %215, %cst_91 {dimension_numbers = #tpu.dot_dimension_numbers<[1], [0], [0], [1], [0, 0, 1, 1], [], []>} : vector<16x64xf32>, vector<64x192xf32>, vector<16x192xf32> -> vector<16x192xf32>
    %c1_92 = arith.constant 1 : index
    %c0_93 = arith.constant 0 : index
    %c0_94 = arith.constant 0 : index
    %217 = vector.load %arg5[%c1_92, %c0_93, %c0_94] : memref<2x64x16xf32, #tpu.memory_space<vmem>>, vector<1x64x16xf32>
    %218 = vector.shape_cast %217 : vector<1x64x16xf32> to vector<64x16xf32>
    %cst_95 = arith.constant dense<0.000000e+00> : vector<16x16xf32>
    %219 = tpu.matmul %213, %218, %cst_95 {dimension_numbers = #tpu.dot_dimension_numbers<[1], [0], [0], [1], [0, 0, 1, 1], [], []>} : vector<16x64xf32>, vector<64x16xf32>, vector<16x16xf32> -> vector<16x16xf32>
    %c1_96 = arith.constant 1 : index
    %c0_97 = arith.constant 0 : index
    %c0_98 = arith.constant 0 : index
    %220 = vector.load %arg4[%c1_96, %c0_97, %c0_98] : memref<2x1x192xf32, #tpu.memory_space<vmem>>, vector<1x1x192xf32>
    %221 = vector.shape_cast %220 : vector<1x1x192xf32> to vector<1x192xf32>
    %222 = vector.broadcast %221 : vector<1x192xf32> to vector<16x192xf32>
    %223 = arith.addf %216, %222 : vector<16x192xf32>
    %c1_99 = arith.constant 1 : index
    %c0_100 = arith.constant 0 : index
    %c0_101 = arith.constant 0 : index
    %224 = vector.load %arg6[%c1_99, %c0_100, %c0_101] : memref<2x16x192xf32, #tpu.memory_space<vmem>>, vector<1x16x192xf32>
    %225 = vector.shape_cast %224 : vector<1x16x192xf32> to vector<16x192xf32>
    %cst_102 = arith.constant dense<0.000000e+00> : vector<16x192xf32>
    %226 = tpu.matmul %219, %225, %cst_102 {dimension_numbers = #tpu.dot_dimension_numbers<[1], [0], [0], [1], [0, 0, 1, 1], [], []>} : vector<16x16xf32>, vector<16x192xf32>, vector<16x192xf32> -> vector<16x192xf32>
    %cst_103 = arith.constant 2.000000e+00 : f32
    %227 = vector.broadcast %cst_103 : f32 to vector<16x192xf32>
    %228 = arith.mulf %227, %226 : vector<16x192xf32>
    %229 = arith.addf %223, %228 : vector<16x192xf32>
    %230 = vector.extract_strided_slice %229 {offsets = [0, 0], sizes = [16, 64], strides = [1, 1]} : vector<16x192xf32> to vector<16x64xf32>
    %cst_104 = arith.constant 2.500000e-01 : f32
    %231 = vector.broadcast %cst_104 : f32 to vector<16x64xf32>
    %232 = arith.mulf %230, %231 : vector<16x64xf32>
    %233 = vector.shape_cast %232 : vector<16x64xf32> to vector<2x8x64xf32>
    %234 = vector.extract_strided_slice %229 {offsets = [0, 64], sizes = [16, 64], strides = [1, 1]} : vector<16x192xf32> to vector<16x64xf32>
    %235 = vector.shape_cast %234 : vector<16x64xf32> to vector<2x8x64xf32>
    %236 = vector.extract_strided_slice %229 {offsets = [0, 128], sizes = [16, 64], strides = [1, 1]} : vector<16x192xf32> to vector<16x64xf32>
    %237 = vector.shape_cast %236 : vector<16x64xf32> to vector<2x8x64xf32>
    %c1_105 = arith.constant 1 : index
    %c0_106 = arith.constant 0 : index
    %c0_107 = arith.constant 0 : index
    %238 = vector.load %arg7[%c1_105, %c0_106, %c0_107] : memref<2x64x64xf32, #tpu.memory_space<vmem>>, vector<1x64x64xf32>
    %239 = vector.shape_cast %238 : vector<1x64x64xf32> to vector<64x64xf32>
    %cst_108 = arith.constant 0.000000e+00 : f32
    %240 = vector.broadcast %cst_108 : f32 to vector<16x64xf32>
    %241 = vector.extract_strided_slice %233 {offsets = [0, 0, 0], sizes = [2, 8, 16], strides = [1, 1, 1]} : vector<2x8x64xf32> to vector<2x8x16xf32>
    %242 = vector.extract_strided_slice %235 {offsets = [0, 0, 0], sizes = [2, 8, 16], strides = [1, 1, 1]} : vector<2x8x64xf32> to vector<2x8x16xf32>
    "tpu.trace_start"() <{level = 10 : i32, message = "bqd,bkd->bqk"}> : () -> ()
    %cst_109 = arith.constant dense<0.000000e+00> : vector<2x8x8xf32>
    %243 = tpu.matmul %241, %242, %cst_109 {dimension_numbers = #tpu.dot_dimension_numbers<[2], [2], [1], [1], [0, 0, 0, 1, 1, 1], [0], [0]>} : vector<2x8x16xf32>, vector<2x8x16xf32>, vector<2x8x8xf32> -> vector<2x8x8xf32>
    "tpu.trace_stop"() : () -> ()
    %244 = arith.addf %243, %1 : vector<2x8x8xf32>
    %cst_110 = arith.constant dense<0xFF800000> : vector<2x8xf32>
    %245 = vector.multi_reduction <maximumf>, %244, %cst_110 [2] : vector<2x8x8xf32> to vector<2x8xf32>
    %246 = vector.shape_cast %245 : vector<2x8xf32> to vector<2x8x1xf32>
    %247 = vector.broadcast %246 : vector<2x8x1xf32> to vector<2x8x8xf32>
    %248 = arith.subf %244, %247 : vector<2x8x8xf32>
    %249 = math.exp %248 : vector<2x8x8xf32>
    %cst_111 = arith.constant dense<0.000000e+00> : vector<2x8xf32>
    %250 = vector.multi_reduction <add>, %249, %cst_111 [2] : vector<2x8x8xf32> to vector<2x8xf32>
    %251 = vector.shape_cast %250 : vector<2x8xf32> to vector<2x8x1xf32>
    %252 = vector.extract_strided_slice %237 {offsets = [0, 0, 0], sizes = [2, 8, 16], strides = [1, 1, 1]} : vector<2x8x64xf32> to vector<2x8x16xf32>
    "tpu.trace_start"() <{level = 10 : i32, message = "bqk,bkd->bqd"}> : () -> ()
    %cst_112 = arith.constant dense<0.000000e+00> : vector<2x8x16xf32>
    %253 = tpu.matmul %249, %252, %cst_112 {dimension_numbers = #tpu.dot_dimension_numbers<[2], [1], [1], [2], [0, 0, 0, 1, 1, 2], [0], [0]>} : vector<2x8x8xf32>, vector<2x8x16xf32>, vector<2x8x16xf32> -> vector<2x8x16xf32>
    "tpu.trace_stop"() : () -> ()
    %254 = tpu.reciprocal %251 {approx = true} : vector<2x8x1xf32> -> vector<2x8x1xf32>
    %255 = vector.broadcast %254 : vector<2x8x1xf32> to vector<2x8x16xf32>
    %256 = arith.mulf %253, %255 : vector<2x8x16xf32>
    %257 = vector.shape_cast %256 : vector<2x8x16xf32> to vector<16x16xf32>
    %258 = vector.extract_strided_slice %239 {offsets = [0, 0], sizes = [16, 64], strides = [1, 1]} : vector<64x64xf32> to vector<16x64xf32>
    %cst_113 = arith.constant dense<0.000000e+00> : vector<16x64xf32>
    %259 = tpu.matmul %257, %258, %cst_113 {dimension_numbers = #tpu.dot_dimension_numbers<[1], [0], [0], [1], [0, 0, 1, 1], [], []>} : vector<16x16xf32>, vector<16x64xf32>, vector<16x64xf32> -> vector<16x64xf32>
    %260 = arith.addf %240, %259 : vector<16x64xf32>
    %261 = vector.extract_strided_slice %233 {offsets = [0, 0, 16], sizes = [2, 8, 16], strides = [1, 1, 1]} : vector<2x8x64xf32> to vector<2x8x16xf32>
    %262 = vector.extract_strided_slice %235 {offsets = [0, 0, 16], sizes = [2, 8, 16], strides = [1, 1, 1]} : vector<2x8x64xf32> to vector<2x8x16xf32>
    "tpu.trace_start"() <{level = 10 : i32, message = "bqd,bkd->bqk"}> : () -> ()
    %cst_114 = arith.constant dense<0.000000e+00> : vector<2x8x8xf32>
    %263 = tpu.matmul %261, %262, %cst_114 {dimension_numbers = #tpu.dot_dimension_numbers<[2], [2], [1], [1], [0, 0, 0, 1, 1, 1], [0], [0]>} : vector<2x8x16xf32>, vector<2x8x16xf32>, vector<2x8x8xf32> -> vector<2x8x8xf32>
    "tpu.trace_stop"() : () -> ()
    %264 = arith.addf %263, %1 : vector<2x8x8xf32>
    %cst_115 = arith.constant dense<0xFF800000> : vector<2x8xf32>
    %265 = vector.multi_reduction <maximumf>, %264, %cst_115 [2] : vector<2x8x8xf32> to vector<2x8xf32>
    %266 = vector.shape_cast %265 : vector<2x8xf32> to vector<2x8x1xf32>
    %267 = vector.broadcast %266 : vector<2x8x1xf32> to vector<2x8x8xf32>
    %268 = arith.subf %264, %267 : vector<2x8x8xf32>
    %269 = math.exp %268 : vector<2x8x8xf32>
    %cst_116 = arith.constant dense<0.000000e+00> : vector<2x8xf32>
    %270 = vector.multi_reduction <add>, %269, %cst_116 [2] : vector<2x8x8xf32> to vector<2x8xf32>
    %271 = vector.shape_cast %270 : vector<2x8xf32> to vector<2x8x1xf32>
    %272 = vector.extract_strided_slice %237 {offsets = [0, 0, 16], sizes = [2, 8, 16], strides = [1, 1, 1]} : vector<2x8x64xf32> to vector<2x8x16xf32>
    "tpu.trace_start"() <{level = 10 : i32, message = "bqk,bkd->bqd"}> : () -> ()
    %cst_117 = arith.constant dense<0.000000e+00> : vector<2x8x16xf32>
    %273 = tpu.matmul %269, %272, %cst_117 {dimension_numbers = #tpu.dot_dimension_numbers<[2], [1], [1], [2], [0, 0, 0, 1, 1, 2], [0], [0]>} : vector<2x8x8xf32>, vector<2x8x16xf32>, vector<2x8x16xf32> -> vector<2x8x16xf32>
    "tpu.trace_stop"() : () -> ()
    %274 = tpu.reciprocal %271 {approx = true} : vector<2x8x1xf32> -> vector<2x8x1xf32>
    %275 = vector.broadcast %274 : vector<2x8x1xf32> to vector<2x8x16xf32>
    %276 = arith.mulf %273, %275 : vector<2x8x16xf32>
    %277 = vector.shape_cast %276 : vector<2x8x16xf32> to vector<16x16xf32>
    %278 = vector.extract_strided_slice %239 {offsets = [16, 0], sizes = [16, 64], strides = [1, 1]} : vector<64x64xf32> to vector<16x64xf32>
    %cst_118 = arith.constant dense<0.000000e+00> : vector<16x64xf32>
    %279 = tpu.matmul %277, %278, %cst_118 {dimension_numbers = #tpu.dot_dimension_numbers<[1], [0], [0], [1], [0, 0, 1, 1], [], []>} : vector<16x16xf32>, vector<16x64xf32>, vector<16x64xf32> -> vector<16x64xf32>
    %280 = arith.addf %260, %279 : vector<16x64xf32>
    %281 = vector.extract_strided_slice %233 {offsets = [0, 0, 32], sizes = [2, 8, 16], strides = [1, 1, 1]} : vector<2x8x64xf32> to vector<2x8x16xf32>
    %282 = vector.extract_strided_slice %235 {offsets = [0, 0, 32], sizes = [2, 8, 16], strides = [1, 1, 1]} : vector<2x8x64xf32> to vector<2x8x16xf32>
    "tpu.trace_start"() <{level = 10 : i32, message = "bqd,bkd->bqk"}> : () -> ()
    %cst_119 = arith.constant dense<0.000000e+00> : vector<2x8x8xf32>
    %283 = tpu.matmul %281, %282, %cst_119 {dimension_numbers = #tpu.dot_dimension_numbers<[2], [2], [1], [1], [0, 0, 0, 1, 1, 1], [0], [0]>} : vector<2x8x16xf32>, vector<2x8x16xf32>, vector<2x8x8xf32> -> vector<2x8x8xf32>
    "tpu.trace_stop"() : () -> ()
    %284 = arith.addf %283, %1 : vector<2x8x8xf32>
    %cst_120 = arith.constant dense<0xFF800000> : vector<2x8xf32>
    %285 = vector.multi_reduction <maximumf>, %284, %cst_120 [2] : vector<2x8x8xf32> to vector<2x8xf32>
    %286 = vector.shape_cast %285 : vector<2x8xf32> to vector<2x8x1xf32>
    %287 = vector.broadcast %286 : vector<2x8x1xf32> to vector<2x8x8xf32>
    %288 = arith.subf %284, %287 : vector<2x8x8xf32>
    %289 = math.exp %288 : vector<2x8x8xf32>
    %cst_121 = arith.constant dense<0.000000e+00> : vector<2x8xf32>
    %290 = vector.multi_reduction <add>, %289, %cst_121 [2] : vector<2x8x8xf32> to vector<2x8xf32>
    %291 = vector.shape_cast %290 : vector<2x8xf32> to vector<2x8x1xf32>
    %292 = vector.extract_strided_slice %237 {offsets = [0, 0, 32], sizes = [2, 8, 16], strides = [1, 1, 1]} : vector<2x8x64xf32> to vector<2x8x16xf32>
    "tpu.trace_start"() <{level = 10 : i32, message = "bqk,bkd->bqd"}> : () -> ()
    %cst_122 = arith.constant dense<0.000000e+00> : vector<2x8x16xf32>
    %293 = tpu.matmul %289, %292, %cst_122 {dimension_numbers = #tpu.dot_dimension_numbers<[2], [1], [1], [2], [0, 0, 0, 1, 1, 2], [0], [0]>} : vector<2x8x8xf32>, vector<2x8x16xf32>, vector<2x8x16xf32> -> vector<2x8x16xf32>
    "tpu.trace_stop"() : () -> ()
    %294 = tpu.reciprocal %291 {approx = true} : vector<2x8x1xf32> -> vector<2x8x1xf32>
    %295 = vector.broadcast %294 : vector<2x8x1xf32> to vector<2x8x16xf32>
    %296 = arith.mulf %293, %295 : vector<2x8x16xf32>
    %297 = vector.shape_cast %296 : vector<2x8x16xf32> to vector<16x16xf32>
    %298 = vector.extract_strided_slice %239 {offsets = [32, 0], sizes = [16, 64], strides = [1, 1]} : vector<64x64xf32> to vector<16x64xf32>
    %cst_123 = arith.constant dense<0.000000e+00> : vector<16x64xf32>
    %299 = tpu.matmul %297, %298, %cst_123 {dimension_numbers = #tpu.dot_dimension_numbers<[1], [0], [0], [1], [0, 0, 1, 1], [], []>} : vector<16x16xf32>, vector<16x64xf32>, vector<16x64xf32> -> vector<16x64xf32>
    %300 = arith.addf %280, %299 : vector<16x64xf32>
    %301 = vector.extract_strided_slice %233 {offsets = [0, 0, 48], sizes = [2, 8, 16], strides = [1, 1, 1]} : vector<2x8x64xf32> to vector<2x8x16xf32>
    %302 = vector.extract_strided_slice %235 {offsets = [0, 0, 48], sizes = [2, 8, 16], strides = [1, 1, 1]} : vector<2x8x64xf32> to vector<2x8x16xf32>
    "tpu.trace_start"() <{level = 10 : i32, message = "bqd,bkd->bqk"}> : () -> ()
    %cst_124 = arith.constant dense<0.000000e+00> : vector<2x8x8xf32>
    %303 = tpu.matmul %301, %302, %cst_124 {dimension_numbers = #tpu.dot_dimension_numbers<[2], [2], [1], [1], [0, 0, 0, 1, 1, 1], [0], [0]>} : vector<2x8x16xf32>, vector<2x8x16xf32>, vector<2x8x8xf32> -> vector<2x8x8xf32>
    "tpu.trace_stop"() : () -> ()
    %304 = arith.addf %303, %1 : vector<2x8x8xf32>
    %cst_125 = arith.constant dense<0xFF800000> : vector<2x8xf32>
    %305 = vector.multi_reduction <maximumf>, %304, %cst_125 [2] : vector<2x8x8xf32> to vector<2x8xf32>
    %306 = vector.shape_cast %305 : vector<2x8xf32> to vector<2x8x1xf32>
    %307 = vector.broadcast %306 : vector<2x8x1xf32> to vector<2x8x8xf32>
    %308 = arith.subf %304, %307 : vector<2x8x8xf32>
    %309 = math.exp %308 : vector<2x8x8xf32>
    %cst_126 = arith.constant dense<0.000000e+00> : vector<2x8xf32>
    %310 = vector.multi_reduction <add>, %309, %cst_126 [2] : vector<2x8x8xf32> to vector<2x8xf32>
    %311 = vector.shape_cast %310 : vector<2x8xf32> to vector<2x8x1xf32>
    %312 = vector.extract_strided_slice %237 {offsets = [0, 0, 48], sizes = [2, 8, 16], strides = [1, 1, 1]} : vector<2x8x64xf32> to vector<2x8x16xf32>
    "tpu.trace_start"() <{level = 10 : i32, message = "bqk,bkd->bqd"}> : () -> ()
    %cst_127 = arith.constant dense<0.000000e+00> : vector<2x8x16xf32>
    %313 = tpu.matmul %309, %312, %cst_127 {dimension_numbers = #tpu.dot_dimension_numbers<[2], [1], [1], [2], [0, 0, 0, 1, 1, 2], [0], [0]>} : vector<2x8x8xf32>, vector<2x8x16xf32>, vector<2x8x16xf32> -> vector<2x8x16xf32>
    "tpu.trace_stop"() : () -> ()
    %314 = tpu.reciprocal %311 {approx = true} : vector<2x8x1xf32> -> vector<2x8x1xf32>
    %315 = vector.broadcast %314 : vector<2x8x1xf32> to vector<2x8x16xf32>
    %316 = arith.mulf %313, %315 : vector<2x8x16xf32>
    %317 = vector.shape_cast %316 : vector<2x8x16xf32> to vector<16x16xf32>
    %318 = vector.extract_strided_slice %239 {offsets = [48, 0], sizes = [16, 64], strides = [1, 1]} : vector<64x64xf32> to vector<16x64xf32>
    %cst_128 = arith.constant dense<0.000000e+00> : vector<16x64xf32>
    %319 = tpu.matmul %317, %318, %cst_128 {dimension_numbers = #tpu.dot_dimension_numbers<[1], [0], [0], [1], [0, 0, 1, 1], [], []>} : vector<16x16xf32>, vector<16x64xf32>, vector<16x64xf32> -> vector<16x64xf32>
    %320 = arith.addf %300, %319 : vector<16x64xf32>
    %321 = arith.addf %189, %320 : vector<16x64xf32>
    %c1_129 = arith.constant 1 : index
    %c0_130 = arith.constant 0 : index
    %c0_131 = arith.constant 0 : index
    %322 = vector.load %arg8[%c1_129, %c0_130, %c0_131] : memref<2x1x64xf32, #tpu.memory_space<vmem>>, vector<1x1x64xf32>
    %323 = vector.shape_cast %322 : vector<1x1x64xf32> to vector<1x64xf32>
    %324 = vector.broadcast %323 : vector<1x64xf32> to vector<16x64xf32>
    %325 = arith.addf %321, %324 : vector<16x64xf32>
    %c1_132 = arith.constant 1 : index
    %c0_133 = arith.constant 0 : index
    %c0_134 = arith.constant 0 : index
    %326 = vector.load %arg9[%c1_132, %c0_133, %c0_134] : memref<2x2x64xf32, #tpu.memory_space<vmem>>, vector<1x2x64xf32>
    %327 = vector.shape_cast %326 : vector<1x2x64xf32> to vector<2x64xf32>
    %328 = vector.extract_strided_slice %327 {offsets = [0, 0], sizes = [1, 64], strides = [1, 1]} : vector<2x64xf32> to vector<1x64xf32>
    %329 = vector.extract_strided_slice %327 {offsets = [1, 0], sizes = [1, 64], strides = [1, 1]} : vector<2x64xf32> to vector<1x64xf32>
    %cst_135 = arith.constant dense<0.000000e+00> : vector<16xf32>
    %330 = vector.multi_reduction <add>, %325, %cst_135 [1] : vector<16x64xf32> to vector<16xf32>
    %331 = vector.shape_cast %330 : vector<16xf32> to vector<16x1xf32>
    %cst_136 = arith.constant 6.400000e+01 : f32
    %332 = vector.broadcast %cst_136 : f32 to vector<16x1xf32>
    %333 = arith.divf %331, %332 : vector<16x1xf32>
    %334 = vector.broadcast %333 : vector<16x1xf32> to vector<16x64xf32>
    %335 = arith.subf %325, %334 : vector<16x64xf32>
    %336 = arith.mulf %335, %335 : vector<16x64xf32>
    %cst_137 = arith.constant dense<0.000000e+00> : vector<16xf32>
    %337 = vector.multi_reduction <add>, %336, %cst_137 [1] : vector<16x64xf32> to vector<16xf32>
    %338 = vector.shape_cast %337 : vector<16xf32> to vector<16x1xf32>
    %cst_138 = arith.constant 6.400000e+01 : f32
    %339 = vector.broadcast %cst_138 : f32 to vector<16x1xf32>
    %340 = arith.divf %338, %339 : vector<16x1xf32>
    %cst_139 = arith.constant 9.99999974E-6 : f32
    %341 = vector.broadcast %cst_139 : f32 to vector<16x1xf32>
    %342 = arith.addf %340, %341 : vector<16x1xf32>
    %343 = math.rsqrt %342 : vector<16x1xf32>
    %344 = vector.broadcast %343 : vector<16x1xf32> to vector<16x64xf32>
    %345 = arith.mulf %335, %344 : vector<16x64xf32>
    %346 = vector.broadcast %328 : vector<1x64xf32> to vector<16x64xf32>
    %347 = arith.mulf %345, %346 : vector<16x64xf32>
    %348 = vector.broadcast %329 : vector<1x64xf32> to vector<16x64xf32>
    %349 = arith.addf %347, %348 : vector<16x64xf32>
    %c1_140 = arith.constant 1 : index
    %c0_141 = arith.constant 0 : index
    %c0_142 = arith.constant 0 : index
    %350 = vector.load %arg10[%c1_140, %c0_141, %c0_142] : memref<2x64x128xf32, #tpu.memory_space<vmem>>, vector<1x64x128xf32>
    %351 = vector.shape_cast %350 : vector<1x64x128xf32> to vector<64x128xf32>
    %cst_143 = arith.constant dense<0.000000e+00> : vector<16x128xf32>
    %352 = tpu.matmul %349, %351, %cst_143 {dimension_numbers = #tpu.dot_dimension_numbers<[1], [0], [0], [1], [0, 0, 1, 1], [], []>} : vector<16x64xf32>, vector<64x128xf32>, vector<16x128xf32> -> vector<16x128xf32>
    %c1_144 = arith.constant 1 : index
    %c0_145 = arith.constant 0 : index
    %c0_146 = arith.constant 0 : index
    %353 = vector.load %arg11[%c1_144, %c0_145, %c0_146] : memref<2x1x128xf32, #tpu.memory_space<vmem>>, vector<1x1x128xf32>
    %354 = vector.shape_cast %353 : vector<1x1x128xf32> to vector<1x128xf32>
    %355 = vector.broadcast %354 : vector<1x128xf32> to vector<16x128xf32>
    %356 = arith.addf %352, %355 : vector<16x128xf32>
    %357 = arith.mulf %356, %356 : vector<16x128xf32>
    %358 = arith.mulf %356, %357 : vector<16x128xf32>
    %cst_147 = arith.constant 4.471500e-02 : f32
    %359 = vector.broadcast %cst_147 : f32 to vector<16x128xf32>
    %360 = arith.mulf %359, %358 : vector<16x128xf32>
    %361 = arith.addf %356, %360 : vector<16x128xf32>
    %cst_148 = arith.constant 0.797884583 : f32
    %362 = vector.broadcast %cst_148 : f32 to vector<16x128xf32>
    %363 = arith.mulf %362, %361 : vector<16x128xf32>
    %364 = math.tanh %363 : vector<16x128xf32>
    %cst_149 = arith.constant 1.000000e+00 : f32
    %365 = vector.broadcast %cst_149 : f32 to vector<16x128xf32>
    %366 = arith.addf %365, %364 : vector<16x128xf32>
    %cst_150 = arith.constant 5.000000e-01 : f32
    %367 = vector.broadcast %cst_150 : f32 to vector<16x128xf32>
    %368 = arith.mulf %367, %366 : vector<16x128xf32>
    %369 = arith.mulf %356, %368 : vector<16x128xf32>
    %c1_151 = arith.constant 1 : index
    %c0_152 = arith.constant 0 : index
    %c0_153 = arith.constant 0 : index
    %370 = vector.load %arg12[%c1_151, %c0_152, %c0_153] : memref<2x128x64xf32, #tpu.memory_space<vmem>>, vector<1x128x64xf32>
    %371 = vector.shape_cast %370 : vector<1x128x64xf32> to vector<128x64xf32>
    %cst_154 = arith.constant dense<0.000000e+00> : vector<16x64xf32>
    %372 = tpu.matmul %369, %371, %cst_154 {dimension_numbers = #tpu.dot_dimension_numbers<[1], [0], [0], [1], [0, 0, 1, 1], [], []>} : vector<16x128xf32>, vector<128x64xf32>, vector<16x64xf32> -> vector<16x64xf32>
    %373 = arith.addf %325, %372 : vector<16x64xf32>
    %c1_155 = arith.constant 1 : index
    %c0_156 = arith.constant 0 : index
    %c0_157 = arith.constant 0 : index
    %374 = vector.load %arg13[%c1_155, %c0_156, %c0_157] : memref<2x1x64xf32, #tpu.memory_space<vmem>>, vector<1x1x64xf32>
    %375 = vector.shape_cast %374 : vector<1x1x64xf32> to vector<1x64xf32>
    %376 = vector.broadcast %375 : vector<1x64xf32> to vector<16x64xf32>
    %377 = arith.addf %373, %376 : vector<16x64xf32>
    %c0_158 = arith.constant 0 : index
    %c0_159 = arith.constant 0 : index
    %378 = vector.load %arg14[%c0_158, %c0_159] : memref<2x64xf32, #tpu.memory_space<vmem>>, vector<2x64xf32>
    %379 = vector.extract_strided_slice %378 {offsets = [0, 0], sizes = [1, 64], strides = [1, 1]} : vector<2x64xf32> to vector<1x64xf32>
    %380 = vector.extract_strided_slice %378 {offsets = [1, 0], sizes = [1, 64], strides = [1, 1]} : vector<2x64xf32> to vector<1x64xf32>
    %cst_160 = arith.constant dense<0.000000e+00> : vector<16xf32>
    %381 = vector.multi_reduction <add>, %377, %cst_160 [1] : vector<16x64xf32> to vector<16xf32>
    %382 = vector.shape_cast %381 : vector<16xf32> to vector<16x1xf32>
    %cst_161 = arith.constant 6.400000e+01 : f32
    %383 = vector.broadcast %cst_161 : f32 to vector<16x1xf32>
    %384 = arith.divf %382, %383 : vector<16x1xf32>
    %385 = vector.broadcast %384 : vector<16x1xf32> to vector<16x64xf32>
    %386 = arith.subf %377, %385 : vector<16x64xf32>
    %387 = arith.mulf %386, %386 : vector<16x64xf32>
    %cst_162 = arith.constant dense<0.000000e+00> : vector<16xf32>
    %388 = vector.multi_reduction <add>, %387, %cst_162 [1] : vector<16x64xf32> to vector<16xf32>
    %389 = vector.shape_cast %388 : vector<16xf32> to vector<16x1xf32>
    %cst_163 = arith.constant 6.400000e+01 : f32
    %390 = vector.broadcast %cst_163 : f32 to vector<16x1xf32>
    %391 = arith.divf %389, %390 : vector<16x1xf32>
    %cst_164 = arith.constant 9.99999974E-6 : f32
    %392 = vector.broadcast %cst_164 : f32 to vector<16x1xf32>
    %393 = arith.addf %391, %392 : vector<16x1xf32>
    %394 = math.rsqrt %393 : vector<16x1xf32>
    %395 = vector.broadcast %394 : vector<16x1xf32> to vector<16x64xf32>
    %396 = arith.mulf %386, %395 : vector<16x64xf32>
    %397 = vector.broadcast %379 : vector<1x64xf32> to vector<16x64xf32>
    %398 = arith.mulf %396, %397 : vector<16x64xf32>
    %399 = vector.broadcast %380 : vector<1x64xf32> to vector<16x64xf32>
    %400 = arith.addf %398, %399 : vector<16x64xf32>
    %c0_165 = arith.constant 0 : index
    %c0_166 = arith.constant 0 : index
    %401 = vector.load %arg15[%c0_165, %c0_166] : memref<64x128xf32, #tpu.memory_space<vmem>>, vector<64x128xf32>
    %cst_167 = arith.constant dense<0.000000e+00> : vector<16x128xf32>
    %402 = tpu.matmul %400, %401, %cst_167 {dimension_numbers = #tpu.dot_dimension_numbers<[1], [0], [0], [1], [0, 0, 1, 1], [], []>} : vector<16x64xf32>, vector<64x128xf32>, vector<16x128xf32> -> vector<16x128xf32>
    %c0_168 = arith.constant 0 : index
    %c0_169 = arith.constant 0 : index
    %403 = vector.load %arg16[%c0_168, %c0_169] : memref<1x128xf32, #tpu.memory_space<vmem>>, vector<1x128xf32>
    %404 = vector.broadcast %403 : vector<1x128xf32> to vector<16x128xf32>
    %405 = arith.addf %402, %404 : vector<16x128xf32>
    %c0_170 = arith.constant 0 : index
    %c0_171 = arith.constant 0 : index
    %406 = vector.load %arg17[%c0_170, %c0_171] : memref<16x128xf32, #tpu.memory_space<vmem>>, vector<16x128xf32>
    tpu.vector_store %arg17[%c0_170, %c0_171], %405 {strides = array<i32>} : memref<16x128xf32, #tpu.memory_space<vmem>>, vector<16x128xf32>,
    return
  }
}

</mosaic_0001>

<llo_original>
// kernel: tpu_custom_call.1
$region0: #{tpu_custom_call.1}
  #allocation0 [shape = 'u32[]', space=smem, size = 0x4, offset = 0x4, fixed_abs, tag = 'smem constant byte address 0x4 - core index']
  #allocation1 [shape = 'u32[144,128]{1,0:T(1,128)}', space=vmem, size = 0x12000, scoped, tag = 'internal scratch']
  %s0 = inlined_call_operand.hbm [shape: f32[16,64], index: 0, kind: input, shape index: {}]
  %s1 = inlined_call_operand.hbm [shape: f32[2,8,8], index: 1, kind: input, shape index: {}]
  %s2 = inlined_call_operand.vmem [shape: f32[2,2,64], index: 2, kind: input, shape index: {}]
  %s3 = inlined_call_operand.vmem [shape: f32[2,64,192], index: 3, kind: input, shape index: {}]
  %s4 = inlined_call_operand.vmem [shape: f32[2,1,192], index: 4, kind: input, shape index: {}]
  %s5 = inlined_call_operand.vmem [shape: f32[2,64,16], index: 5, kind: input, shape index: {}]
  %s6 = inlined_call_operand.vmem [shape: f32[2,16,192], index: 6, kind: input, shape index: {}]
  %s7 = inlined_call_operand.vmem [shape: f32[2,64,64], index: 7, kind: input, shape index: {}]
  %s8 = inlined_call_operand.hbm [shape: f32[2,1,64], index: 8, kind: input, shape index: {}]
  %s9 = inlined_call_operand.vmem [shape: f32[2,2,64], index: 9, kind: input, shape index: {}]
  %s10 = inlined_call_operand.hbm [shape: f32[2,64,128], index: 10, kind: input, shape index: {}]
  %s11 = inlined_call_operand.hbm [shape: f32[2,1,128], index: 11, kind: input, shape index: {}]
  %s12 = inlined_call_operand.vmem [shape: f32[2,128,64], index: 12, kind: input, shape index: {}]
  %s13 = inlined_call_operand.hbm [shape: f32[2,1,64], index: 13, kind: input, shape index: {}]
  %s14 = inlined_call_operand.vmem [shape: f32[2,64], index: 14, kind: input, shape index: {}]
  %s15 = inlined_call_operand.hbm [shape: f32[64,128], index: 15, kind: input, shape index: {}]
  %s16 = inlined_call_operand.vmem [shape: f32[1,128], index: 16, kind: input, shape index: {}]
  %s17 = inlined_call_operand.hbm [shape: f32[16,128], index: 17, kind: output, shape index: {}]
  %s18 = sld [smem:[#allocation0]]
  $region106: #{tpu_custom_call.1} parent=0
    _
  %s20 = ssub.s32 1, %s18
  %s21 = scalar_select 0, %s20, %s18
  $region1: #{tpu_custom_call.1} parent=0
    #allocation2 [shape = 'u8[8192]{0}', space=vmem, size = 0x2000, scoped, tag = 'input window, operand 0, single buffered']
    #allocation3 [shape = 's32[1]{0}', space=sflag, size = 0x4, scoped, tag = 'scoped memory for tpu_custom_call.1']
    #allocation4 [shape = 's32[1]{0}', space=sflag, size = 0x4, scoped, tag = 'scoped memory for tpu_custom_call.1']
    #allocation5 [shape = 'u8[8192]{0}', space=vmem, size = 0x2000, scoped, tag = 'input window, operand 1, single buffered']
    #allocation6 [shape = 's32[1]{0}', space=sflag, size = 0x4, scoped, tag = 'scoped memory for tpu_custom_call.1']
    #allocation7 [shape = 'u8[1024]{0}', space=vmem, size = 0x400, scoped, tag = 'input window, operand 8, single buffered']
    #allocation8 [shape = 'u8[65536]{0}', space=vmem, size = 0x10000, scoped, tag = 'input window, operand 10, single buffered']
    #allocation9 [shape = 's32[1]{0}', space=sflag, size = 0x4, scoped, tag = 'scoped memory for tpu_custom_call.1']
    #allocation10 [shape = 'u8[1024]{0}', space=vmem, size = 0x400, scoped, tag = 'input window, operand 11, single buffered']
    #allocation11 [shape = 'u8[1024]{0}', space=vmem, size = 0x400, scoped, tag = 'input window, operand 13, single buffered']
    #allocation12 [shape = 's32[1]{0}', space=sflag, size = 0x4, scoped, tag = 'scoped memory for tpu_custom_call.1']
    #allocation13 [shape = 'u8[32768]{0}', space=vmem, size = 0x8000, scoped, tag = 'input window, operand 15, single buffered']
    #allocation14 [shape = 'u8[8192]{0}', space=vmem, size = 0x2000, scoped, tag = 'output window, operand 0, single buffered']
    %22 = vsyncpa [#allocation3], 0
    %23 = vsyncpa [#allocation6], 0
    %24 = vsyncpa [#allocation9], 0
    %25 = vsyncpa [#allocation12], 0
    %26 = vsyncpa [#allocation4], 0
    // Predicated region
    $region2: #{tpu_custom_call.1} parent=1 // pred_check
      _
    $region3: #{tpu_custom_call.1} parent=1 // pred_check_branch
      %28 = sbr.rel (0) target = $region5
    $region4: #{tpu_custom_call.1} parent=1 // pred_region
      %s30 = ssub.s32 256, 256
      %31 = vsyncadd [#allocation3], %s30
      %s32 = sshll.u32 [#allocation2], 4
      %s33 = int_to_ptr.vmem [resolvable:$true] %s32
      %38 = dma.hbm_to_vmem [thread:$0]  %s0, 256, %s33, [#allocation3], 128, 128, 8
    $region5: #{tpu_custom_call.1} parent=1 // pred_fallthru
      _
    // Predicated region
    $region6: #{tpu_custom_call.1} parent=1 // pred_check
      _
    $region7: #{tpu_custom_call.1} parent=1 // pred_check_branch
      %40 = sbr.rel (0) target = $region9
    $region8: #{tpu_custom_call.1} parent=1 // pred_region
      %s42 = ssub.s32 256, 256
      %43 = vsyncadd [#allocation6], %s42
      %s44 = sshll.u32 [#allocation5], 4
      %s45 = int_to_ptr.vmem [resolvable:$true] %s44
      %50 = dma.hbm_to_vmem [thread:$0]  %s1, 256, %s45, [#allocation6], 128, 128, 8
    $region9: #{tpu_custom_call.1} parent=1 // pred_fallthru
      _
    // Predicated region
    $region10: #{tpu_custom_call.1} parent=1 // pred_check
      _
    $region11: #{tpu_custom_call.1} parent=1 // pred_check_branch
      %52 = sbr.rel (0) target = $region13
    $region12: #{tpu_custom_call.1} parent=1 // pred_region
      _
    $region13: #{tpu_custom_call.1} parent=1 // pred_fallthru
      _
    // Predicated region
    $region14: #{tpu_custom_call.1} parent=1 // pred_check
      _
    $region15: #{tpu_custom_call.1} parent=1 // pred_check_branch
      %54 = sbr.rel (0) target = $region17
    $region16: #{tpu_custom_call.1} parent=1 // pred_region
      _
    $region17: #{tpu_custom_call.1} parent=1 // pred_fallthru
      _
    // Predicated region
    $region18: #{tpu_custom_call.1} parent=1 // pred_check
      _
    $region19: #{tpu_custom_call.1} parent=1 // pred_check_branch
      %56 = sbr.rel (0) target = $region21
    $region20: #{tpu_custom_call.1} parent=1 // pred_region
      _
    $region21: #{tpu_custom_call.1} parent=1 // pred_fallthru
      _
    // Predicated region
    $region22: #{tpu_custom_call.1} parent=1 // pred_check
      _
    $region23: #{tpu_custom_call.1} parent=1 // pred_check_branch
      %58 = sbr.rel (0) target = $region25
    $region24: #{tpu_custom_call.1} parent=1 // pred_region
      _
    $region25: #{tpu_custom_call.1} parent=1 // pred_fallthru
      _
    // Predicated region
    $region26: #{tpu_custom_call.1} parent=1 // pred_check
      _
    $region27: #{tpu_custom_call.1} parent=1 // pred_check_branch
      %60 = sbr.rel (0) target = $region29
    $region28: #{tpu_custom_call.1} parent=1 // pred_region
      _
    $region29: #{tpu_custom_call.1} parent=1 // pred_fallthru
      _
    // Predicated region
    $region30: #{tpu_custom_call.1} parent=1 // pred_check
      _
    $region31: #{tpu_custom_call.1} parent=1 // pred_check_branch
      %62 = sbr.rel (0) target = $region33
    $region32: #{tpu_custom_call.1} parent=1 // pred_region
      _
    $region33: #{tpu_custom_call.1} parent=1 // pred_fallthru
      _
    // Predicated region
    $region34: #{tpu_custom_call.1} parent=1 // pred_check
      _
    $region35: #{tpu_custom_call.1} parent=1 // pred_check_branch
      %64 = sbr.rel (0) target = $region37
    $region36: #{tpu_custom_call.1} parent=1 // pred_region
      %s66 = ssub.s32 32, 32
      %67 = vsyncadd [#allocation6], %s66
      %s68 = sshll.u32 [#allocation7], 4
      %s69 = int_to_ptr.vmem [resolvable:$true] %s68
      %74 = dma.hbm_to_vmem [thread:$0]  %s8, 32, %s69, [#allocation6], 16, 16, 1
    $region37: #{tpu_custom_call.1} parent=1 // pred_fallthru
      _
    // Predicated region
    $region38: #{tpu_custom_call.1} parent=1 // pred_check
      _
    $region39: #{tpu_custom_call.1} parent=1 // pred_check_branch
      %76 = sbr.rel (0) target = $region41
    $region40: #{tpu_custom_call.1} parent=1 // pred_region
      _
    $region41: #{tpu_custom_call.1} parent=1 // pred_fallthru
      _
    // Predicated region
    $region42: #{tpu_custom_call.1} parent=1 // pred_check
      _
    $region43: #{tpu_custom_call.1} parent=1 // pred_check_branch
      %78 = sbr.rel (0) target = $region45
    $region44: #{tpu_custom_call.1} parent=1 // pred_region
      %s80 = ssub.s32 2048, 2048
      %81 = vsyncadd [#allocation9], %s80
      %s82 = sshll.u32 [#allocation8], 4
      %s83 = int_to_ptr.vmem [resolvable:$true] %s82
      %88 = dma.hbm_to_vmem [thread:$0]  %s10, 2048, %s83, [#allocation9], 128, 128, 8
    $region45: #{tpu_custom_call.1} parent=1 // pred_fallthru
      _
    // Predicated region
    $region46: #{tpu_custom_call.1} parent=1 // pred_check
      _
    $region47: #{tpu_custom_call.1} parent=1 // pred_check_branch
      %90 = sbr.rel (0) target = $region49
    $region48: #{tpu_custom_call.1} parent=1 // pred_region
      %s92 = ssub.s32 32, 32
      %93 = vsyncadd [#allocation9], %s92
      %s94 = sshll.u32 [#allocation10], 4
      %s95 = int_to_ptr.vmem [resolvable:$true] %s94
      %100 = dma.hbm_to_vmem [thread:$0]  %s11, 32, %s95, [#allocation9], 16, 16, 1
    $region49: #{tpu_custom_call.1} parent=1 // pred_fallthru
      _
    // Predicated region
    $region50: #{tpu_custom_call.1} parent=1 // pred_check
      _
    $region51: #{tpu_custom_call.1} parent=1 // pred_check_branch
      %102 = sbr.rel (0) target = $region53
    $region52: #{tpu_custom_call.1} parent=1 // pred_region
      _
    $region53: #{tpu_custom_call.1} parent=1 // pred_fallthru
      _
    // Predicated region
    $region54: #{tpu_custom_call.1} parent=1 // pred_check
      _
    $region55: #{tpu_custom_call.1} parent=1 // pred_check_branch
      %104 = sbr.rel (0) target = $region57
    $region56: #{tpu_custom_call.1} parent=1 // pred_region
      %s106 = ssub.s32 32, 32
      %107 = vsyncadd [#allocation12], %s106
      %s108 = sshll.u32 [#allocation11], 4
      %s109 = int_to_ptr.vmem [resolvable:$true] %s108
      %114 = dma.hbm_to_vmem [thread:$0]  %s13, 32, %s109, [#allocation12], 16, 16, 1
    $region57: #{tpu_custom_call.1} parent=1 // pred_fallthru
      _
    // Predicated region
    $region58: #{tpu_custom_call.1} parent=1 // pred_check
      _
    $region59: #{tpu_custom_call.1} parent=1 // pred_check_branch
      %116 = sbr.rel (0) target = $region61
    $region60: #{tpu_custom_call.1} parent=1 // pred_region
      _
    $region61: #{tpu_custom_call.1} parent=1 // pred_fallthru
      _
    // Predicated region
    $region62: #{tpu_custom_call.1} parent=1 // pred_check
      _
    $region63: #{tpu_custom_call.1} parent=1 // pred_check_branch
      %118 = sbr.rel (0) target = $region65
    $region64: #{tpu_custom_call.1} parent=1 // pred_region
      %s120 = ssub.s32 1024, 1024
      %121 = vsyncadd [#allocation12], %s120
      %s122 = sshll.u32 [#allocation13], 4
      %s123 = int_to_ptr.vmem [resolvable:$true] %s122
      %128 = dma.hbm_to_vmem [thread:$0]  %s15, 1024, %s123, [#allocation12], 128, 128, 8
    $region65: #{tpu_custom_call.1} parent=1 // pred_fallthru
      _
    // Predicated region
    $region66: #{tpu_custom_call.1} parent=1 // pred_check
      _
    $region67: #{tpu_custom_call.1} parent=1 // pred_check_branch
      %130 = sbr.rel (0) target = $region69
    $region68: #{tpu_custom_call.1} parent=1 // pred_region
      _
    $region69: #{tpu_custom_call.1} parent=1 // pred_fallthru
      _
    // Predicated region
    $region70: #{tpu_custom_call.1} parent=1 // pred_check
      _
    $region71: #{tpu_custom_call.1} parent=1 // pred_check_branch
      %132 = sbr.rel (0) target = $region73
    $region72: #{tpu_custom_call.1} parent=1 // pred_region
      %133 = dma.done [#allocation3], 256
    $region73: #{tpu_custom_call.1} parent=1 // pred_fallthru
      _
    // Predicated region
    $region74: #{tpu_custom_call.1} parent=1 // pred_check
      _
    $region75: #{tpu_custom_call.1} parent=1 // pred_check_branch
      %135 = sbr.rel (0) target = $region77
    $region76: #{tpu_custom_call.1} parent=1 // pred_region
      %136 = dma.done [#allocation6], 256
    $region77: #{tpu_custom_call.1} parent=1 // pred_fallthru
      _
    // Predicated region
    $region78: #{tpu_custom_call.1} parent=1 // pred_check
      _
    $region79: #{tpu_custom_call.1} parent=1 // pred_check_branch
      %138 = sbr.rel (0) target = $region81
    $region80: #{tpu_custom_call.1} parent=1 // pred_region
      %139 = dma.done [#allocation6], 32
    $region81: #{tpu_custom_call.1} parent=1 // pred_fallthru
      _
    // Predicated region
    $region82: #{tpu_custom_call.1} parent=1 // pred_check
      _
    $region83: #{tpu_custom_call.1} parent=1 // pred_check_branch
      %141 = sbr.rel (0) target = $region85
    $region84: #{tpu_custom_call.1} parent=1 // pred_region
      %142 = dma.done [#allocation9], 2048
    $region85: #{tpu_custom_call.1} parent=1 // pred_fallthru
      _
    // Predicated region
    $region86: #{tpu_custom_call.1} parent=1 // pred_check
      _
    $region87: #{tpu_custom_call.1} parent=1 // pred_check_branch
      %144 = sbr.rel (0) target = $region89
    $region88: #{tpu_custom_call.1} parent=1 // pred_region
      %145 = dma.done [#allocation9], 32
    $region89: #{tpu_custom_call.1} parent=1 // pred_fallthru
      _
    // Predicated region
    $region90: #{tpu_custom_call.1} parent=1 // pred_check
      _
    $region91: #{tpu_custom_call.1} parent=1 // pred_check_branch
      %147 = sbr.rel (0) target = $region93
    $region92: #{tpu_custom_call.1} parent=1 // pred_region
      %148 = dma.done [#allocation12], 32
    $region93: #{tpu_custom_call.1} parent=1 // pred_fallthru
      _
    // Predicated region
    $region94: #{tpu_custom_call.1} parent=1 // pred_check
      _
    $region95: #{tpu_custom_call.1} parent=1 // pred_check_branch
      %150 = sbr.rel (0) target = $region97
    $region96: #{tpu_custom_call.1} parent=1 // pred_region
      %151 = dma.done [#allocation12], 1024
    $region97: #{tpu_custom_call.1} parent=1 // pred_fallthru
      _
    %v152 = vld [vmem:[#allocation2] sm:$0xff]
    %v153 = vld [vmem:[#allocation2 + $0x8] sm:$0xff]
    %v154 = vld [vmem:[#allocation5] sm:$0xff]
    %v155 = vld [vmem:[#allocation5 + $0x8] sm:$0xff]
    %v156 = vld [vmem:[%s2] sm:$0x3]
    %vm157 = vcmask 523264
    %v158 = vsel %vm157, %v152, 0.0
    %159 = vadd.xlane.f32.xlu0 %v158
    %v160 = vpop.xlane.xlu0 %159
    %v161 = vsel %vm157, %v153, 0.0
    %162 = vadd.xlane.f32.xlu0 %v161
    %v163 = vpop.xlane.xlu0 %162
    %v164 = vrcp.pop 64.0
    %v165 = vmul.f32 %v160, %v164
    %v166 = vmul.f32 %v163, %v164
    %v167 = vsub.f32 %v152, %v165
    %v168 = vsub.f32 %v153, %v166
    %v169 = vmul.f32 %v167, %v167
    %v170 = vmul.f32 %v168, %v168
    %v171 = vsel %vm157, %v169, 0.0
    %172 = vadd.xlane.f32.xlu0 %v171
    %v173 = vpop.xlane.xlu0 %172
    %v174 = vsel %vm157, %v170, 0.0
    %175 = vadd.xlane.f32.xlu0 %v174
    %v176 = vpop.xlane.xlu0 %175
    %v177 = vmul.f32 %v173, %v164
    %v178 = vmul.f32 %v176, %v164
    %v179 = vadd.f32 %v177, 1e-05
    %v180 = vadd.f32 %v178, 1e-05
    %v181 = vrsqrt.pop %v179
    %v182 = vrsqrt.pop %v180
    %v183 = vmul.f32 %v167, %v181
    %v184 = vmul.f32 %v168, %v182
    %v185 = vlaneseq
    %v186 = vshrl.u32 %v185, 7
    %v187 = vsub.s32 0, %v186
    %v188 = vrot.slane %v156, %v187
    %v189 = vmul.f32 %v183, %v188
    %v190 = vmul.f32 %v184, %v188
    %v191 = vlaneseq
    %v192 = vshrl.u32 %v191, 7
    %v193 = vsub.s32 1, %v192
    %v194 = vrot.slane %v156, %v193
    %v195 = vadd.f32 %v189, %v194
    %v196 = vadd.f32 %v190, %v194
    %v197 = vld [vmem:[%s3] sm:$0xff]
    %v198 = vld [vmem:[%s3 + $0x8] sm:$0xff]
    %v199 = vld [vmem:[%s3 + $0x10] sm:$0xff]
    %v200 = vld [vmem:[%s3 + $0x18] sm:$0xff]
    %v201 = vld [vmem:[%s3 + $0x20] sm:$0xff]
    %v202 = vld [vmem:[%s3 + $0x28] sm:$0xff]
    %v203 = vld [vmem:[%s3 + $0x30] sm:$0xff]
    %v204 = vld [vmem:[%s3 + $0x38] sm:$0xff]
    %v205 = vld [vmem:[%s3 + $0x40] sm:$0xff]
    %v206 = vld [vmem:[%s3 + $0x48] sm:$0xff]
    %v207 = vld [vmem:[%s3 + $0x50] sm:$0xff]
    %v208 = vld [vmem:[%s3 + $0x58] sm:$0xff]
    %v209 = vld [vmem:[%s3 + $0x60] sm:$0xff]
    %v210 = vld [vmem:[%s3 + $0x68] sm:$0xff]
    %v211 = vld [vmem:[%s3 + $0x70] sm:$0xff]
    %v212 = vld [vmem:[%s3 + $0x78] sm:$0xff]
    %v213 = vld [vmem:[%s5] sm:$0xff]
    %v214 = vld [vmem:[%s5 + $0x8] sm:$0xff]
    %v215 = vld [vmem:[%s5 + $0x10] sm:$0xff]
    %v216 = vld [vmem:[%s5 + $0x18] sm:$0xff]
    %v217 = vld [vmem:[%s5 + $0x20] sm:$0xff]
    %v218 = vld [vmem:[%s5 + $0x28] sm:$0xff]
    %v219 = vld [vmem:[%s5 + $0x30] sm:$0xff]
    %v220 = vld [vmem:[%s5 + $0x38] sm:$0xff]
    %v222 = vsel %vm157, %v195, 0
    %v225 = vsel %vm157, %v196, 0
    %227 = vmatprep.subr.mxu0 0.0
    %228 = vmatpush1.msra.mxu0 %v213
    %229 = vmatprep.subr.mxu0 0.0
    %230 = vmatpush1.msra.mxu0 %v214
    %231 = vmatprep.subr.mxu0 0.0
    %232 = vmatpush1.msra.mxu0 %v215
    %233 = vmatprep.subr.mxu0 0.0
    %234 = vmatpush1.msra.mxu0 %v216
    %235 = vmatprep.subr.mxu0 0.0
    %236 = vmatpush1.msra.mxu0 %v217
    %237 = vmatprep.subr.mxu0 0.0
    %238 = vmatpush1.msra.mxu0 %v218
    %239 = vmatprep.subr.mxu0 0.0
    %240 = vmatpush1.msra.mxu0 %v219
    %241 = vmatprep.subr.mxu0 0.0
    %242 = vmatpush1.msra.mxu0 %v220
    %243 = vmatprep.subr.mxu0 0.0
    %244 = vmatpush1.msra.mxu0 0.0
    %245 = vmatprep.subr.mxu0 0.0
    %246 = vmatpush1.msra.mxu0 0.0
    %247 = vmatprep.subr.mxu0 0.0
    %248 = vmatpush1.msra.mxu0 0.0
    %249 = vmatprep.subr.mxu0 0.0
    %250 = vmatpush1.msra.mxu0 0.0
    %251 = vmatprep.subr.mxu0 0.0
    %252 = vmatpush1.msra.mxu0 0.0
    %253 = vmatprep.subr.mxu0 0.0
    %254 = vmatpush1.msra.mxu0 0.0
    %255 = vmatprep.subr.mxu0 0.0
    %256 = vmatpush1.msra.mxu0 0.0
    %257 = vmatprep.subr.mxu0 0.0
    %258 = vmatpush1.msra.mxu0 0.0
    %259 = vmatprep.subr.mxu0 0.0
    %260 = vmatpush1.msra.mxu0 0.0
    %261 = vmatprep.subr.mxu0 0.0
    %262 = vmatpush1.msra.mxu0 0.0
    %263 = vmatprep.subr.mxu0 0.0
    %264 = vmatpush1.msra.mxu0 0.0
    %265 = vmatprep.subr.mxu0 0.0
    %266 = vmatpush1.msra.mxu0 0.0
    %267 = vmatprep.subr.mxu0 0.0
    %268 = vmatpush1.msra.mxu0 0.0
    %269 = vmatprep.subr.mxu0 0.0
    %270 = vmatpush1.msra.mxu0 0.0
    %271 = vmatprep.subr.mxu0 0.0
    %272 = vmatpush1.msra.mxu0 0.0
    %273 = vmatprep.subr.mxu0 0.0
    %274 = vmatpush1.msra.mxu0 0.0
    %275 = vmatprep.subr.mxu0 0.0
    %276 = vmatpush1.msra.mxu0 0.0
    %277 = vmatprep.subr.mxu0 0.0
    %278 = vmatpush1.msra.mxu0 0.0
    %279 = vmatprep.subr.mxu0 0.0
    %280 = vmatpush1.msra.mxu0 0.0
    %281 = vmatprep.subr.mxu0 0.0
    %282 = vmatpush1.msra.mxu0 0.0
    %283 = vmatprep.subr.mxu0 0.0
    %284 = vmatpush1.msra.mxu0 0.0
    %285 = vmatprep.subr.mxu0 0.0
    %286 = vmatpush1.msra.mxu0 0.0
    %287 = vmatprep.subr.mxu0 0.0
    %288 = vmatpush1.msra.mxu0 0.0
    %289 = vmatprep.subr.mxu0 0.0
    %290 = vmatpush1.msra.mxu0 0.0
    %291 = vmatprep.mubr.f32.mxu0 0.0
    %292 = vmatmul.mubr.f32.gmra.mrb[0].mxu0 %v222
    %v293 = vpop.f32.mrb[0].mxu0
    %v294 = vadd.f32 0.0, %v293
    %v295 = vpop.f32.mrb[0].mxu0
    %296 = vmatprep.mubr.f32.mxu0 0.0
    %297 = vmatmul.mubr.f32.gmra.mrb[0].mxu0 %v225
    %v298 = vpop.f32.mrb[0].mxu0
    %v299 = vadd.f32 0.0, %v298
    %v300 = vpop.f32.mrb[0].mxu0
    %301 = vdwg.mxu0
    %v302 = vld [vmem:[%s4] sm:$0x3]
    %v304 = vlaneseq
    %v305 = vshrl.u32 %v304, 7
    %v306 = vsub.s32 0, %v305
    %v307 = vrot.slane %v302, %v306
    %v308 = vlaneseq
    %v309 = vshrl.u32 %v308, 7
    %v310 = vsub.s32 1, %v309
    %v311 = vrot.slane %v302, %v310
    %314 = vmatprep.subr.mxu0 %v198
    %315 = vmatpush1.msra.mxu0 %v197
    %316 = vmatprep.subr.mxu0 %v200
    %317 = vmatpush1.msra.mxu0 %v199
    %318 = vmatprep.subr.mxu0 %v202
    %319 = vmatpush1.msra.mxu0 %v201
    %320 = vmatprep.subr.mxu0 %v204
    %321 = vmatpush1.msra.mxu0 %v203
    %322 = vmatprep.subr.mxu0 %v206
    %323 = vmatpush1.msra.mxu0 %v205
    %324 = vmatprep.subr.mxu0 %v208
    %325 = vmatpush1.msra.mxu0 %v207
    %326 = vmatprep.subr.mxu0 %v210
    %327 = vmatpush1.msra.mxu0 %v209
    %328 = vmatprep.subr.mxu0 %v212
    %329 = vmatpush1.msra.mxu0 %v211
    %330 = vmatprep.subr.mxu0 0.0
    %331 = vmatpush1.msra.mxu0 0.0
    %332 = vmatprep.subr.mxu0 0.0
    %333 = vmatpush1.msra.mxu0 0.0
    %334 = vmatprep.subr.mxu0 0.0
    %335 = vmatpush1.msra.mxu0 0.0
    %336 = vmatprep.subr.mxu0 0.0
    %337 = vmatpush1.msra.mxu0 0.0
    %338 = vmatprep.subr.mxu0 0.0
    %339 = vmatpush1.msra.mxu0 0.0
    %340 = vmatprep.subr.mxu0 0.0
    %341 = vmatpush1.msra.mxu0 0.0
    %342 = vmatprep.subr.mxu0 0.0
    %343 = vmatpush1.msra.mxu0 0.0
    %344 = vmatprep.subr.mxu0 0.0
    %345 = vmatpush1.msra.mxu0 0.0
    %346 = vmatprep.subr.mxu0 0.0
    %347 = vmatpush1.msra.mxu0 0.0
    %348 = vmatprep.subr.mxu0 0.0
    %349 = vmatpush1.msra.mxu0 0.0
    %350 = vmatprep.subr.mxu0 0.0
    %351 = vmatpush1.msra.mxu0 0.0
    %352 = vmatprep.subr.mxu0 0.0
    %353 = vmatpush1.msra.mxu0 0.0
    %354 = vmatprep.subr.mxu0 0.0
    %355 = vmatpush1.msra.mxu0 0.0
    %356 = vmatprep.subr.mxu0 0.0
    %357 = vmatpush1.msra.mxu0 0.0
    %358 = vmatprep.subr.mxu0 0.0
    %359 = vmatpush1.msra.mxu0 0.0
    %360 = vmatprep.subr.mxu0 0.0
    %361 = vmatpush1.msra.mxu0 0.0
    %362 = vmatprep.subr.mxu0 0.0
    %363 = vmatpush1.msra.mxu0 0.0
    %364 = vmatprep.subr.mxu0 0.0
    %365 = vmatpush1.msra.mxu0 0.0
    %366 = vmatprep.subr.mxu0 0.0
    %367 = vmatpush1.msra.mxu0 0.0
    %368 = vmatprep.subr.mxu0 0.0
    %369 = vmatpush1.msra.mxu0 0.0
    %370 = vmatprep.subr.mxu0 0.0
    %371 = vmatpush1.msra.mxu0 0.0
    %372 = vmatprep.subr.mxu0 0.0
    %373 = vmatpush1.msra.mxu0 0.0
    %374 = vmatprep.subr.mxu0 0.0
    %375 = vmatpush1.msra.mxu0 0.0
    %376 = vmatprep.subr.mxu0 0.0
    %377 = vmatpush1.msra.mxu0 0.0
    %378 = vmatprep.mubr.f32.mxu0 0.0
    %379 = vmatmul.mubr.f32.gmra.mrb[0].mxu0 %v222
    %v380 = vpop.f32.mrb[0].mxu0
    %v381 = vadd.f32 %v307, %v380
    %v382 = vpop.f32.mrb[0].mxu0
    %v383 = vadd.f32 %v311, %v382
    %384 = vmatprep.mubr.f32.mxu0 0.0
    %385 = vmatmul.mubr.f32.gmra.mrb[0].mxu0 %v225
    %v386 = vpop.f32.mrb[0].mxu0
    %v387 = vadd.f32 %v307, %v386
    %v388 = vpop.f32.mrb[0].mxu0
    %v389 = vadd.f32 %v311, %v388
    %390 = vdwg.mxu0
    %v391 = vld [vmem:[%s6] sm:$0xff]
    %v392 = vld [vmem:[%s6 + $0x8] sm:$0xff]
    %v393 = vld [vmem:[%s6 + $0x10] sm:$0xff]
    %v394 = vld [vmem:[%s6 + $0x18] sm:$0xff]
    %vm395 = vcmask 130048
    %v397 = vsel %vm395, %v294, 0
    %v400 = vsel %vm395, %v299, 0
    %402 = vmatprep.subr.mxu0 %v392
    %403 = vmatpush1.msra.mxu0 %v391
    %404 = vmatprep.subr.mxu0 %v394
    %405 = vmatpush1.msra.mxu0 %v393
    %406 = vmatprep.subr.mxu0 0.0
    %407 = vmatpush1.msra.mxu0 0.0
    %408 = vmatprep.subr.mxu0 0.0
    %409 = vmatpush1.msra.mxu0 0.0
    %410 = vmatprep.subr.mxu0 0.0
    %411 = vmatpush1.msra.mxu0 0.0
    %412 = vmatprep.subr.mxu0 0.0
    %413 = vmatpush1.msra.mxu0 0.0
    %414 = vmatprep.subr.mxu0 0.0
    %415 = vmatpush1.msra.mxu0 0.0
    %416 = vmatprep.subr.mxu0 0.0
    %417 = vmatpush1.msra.mxu0 0.0
    %418 = vmatprep.subr.mxu0 0.0
    %419 = vmatpush1.msra.mxu0 0.0
    %420 = vmatprep.subr.mxu0 0.0
    %421 = vmatpush1.msra.mxu0 0.0
    %422 = vmatprep.subr.mxu0 0.0
    %423 = vmatpush1.msra.mxu0 0.0
    %424 = vmatprep.subr.mxu0 0.0
    %425 = vmatpush1.msra.mxu0 0.0
    %426 = vmatprep.subr.mxu0 0.0
    %427 = vmatpush1.msra.mxu0 0.0
    %428 = vmatprep.subr.mxu0 0.0
    %429 = vmatpush1.msra.mxu0 0.0
    %430 = vmatprep.subr.mxu0 0.0
    %431 = vmatpush1.msra.mxu0 0.0
    %432 = vmatprep.subr.mxu0 0.0
    %433 = vmatpush1.msra.mxu0 0.0
    %434 = vmatprep.subr.mxu0 0.0
    %435 = vmatpush1.msra.mxu0 0.0
    %436 = vmatprep.subr.mxu0 0.0
    %437 = vmatpush1.msra.mxu0 0.0
    %438 = vmatprep.subr.mxu0 0.0
    %439 = vmatpush1.msra.mxu0 0.0
    %440 = vmatprep.subr.mxu0 0.0
    %441 = vmatpush1.msra.mxu0 0.0
    %442 = vmatprep.subr.mxu0 0.0
    %443 = vmatpush1.msra.mxu0 0.0
    %444 = vmatprep.subr.mxu0 0.0
    %445 = vmatpush1.msra.mxu0 0.0
    %446 = vmatprep.subr.mxu0 0.0
    %447 = vmatpush1.msra.mxu0 0.0
    %448 = vmatprep.subr.mxu0 0.0
    %449 = vmatpush1.msra.mxu0 0.0
    %450 = vmatprep.subr.mxu0 0.0
    %451 = vmatpush1.msra.mxu0 0.0
    %452 = vmatprep.subr.mxu0 0.0
    %453 = vmatpush1.msra.mxu0 0.0
    %454 = vmatprep.subr.mxu0 0.0
    %455 = vmatpush1.msra.mxu0 0.0
    %456 = vmatprep.subr.mxu0 0.0
    %457 = vmatpush1.msra.mxu0 0.0
    %458 = vmatprep.subr.mxu0 0.0
    %459 = vmatpush1.msra.mxu0 0.0
    %460 = vmatprep.subr.mxu0 0.0
    %461 = vmatpush1.msra.mxu0 0.0
    %462 = vmatprep.subr.mxu0 0.0
    %463 = vmatpush1.msra.mxu0 0.0
    %464 = vmatprep.subr.mxu0 0.0
    %465 = vmatpush1.msra.mxu0 0.0
    %466 = vmatprep.mubr.f32.mxu0 0.0
    %467 = vmatmul.mubr.f32.gmra.mrb[0].mxu0 %v397
    %v468 = vpop.f32.mrb[0].mxu0
    %v469 = vadd.f32 0.0, %v468
    %v470 = vpop.f32.mrb[0].mxu0
    %v471 = vadd.f32 0.0, %v470
    %472 = vmatprep.mubr.f32.mxu0 0.0
    %473 = vmatmul.mubr.f32.gmra.mrb[0].mxu0 %v400
    %v474 = vpop.f32.mrb[0].mxu0
    %v475 = vadd.f32 0.0, %v474
    %v476 = vpop.f32.mrb[0].mxu0
    %v477 = vadd.f32 0.0, %v476
    %478 = vdwg.mxu0
    %v479 = vmul.f32 %v469, 2.0
    %v480 = vmul.f32 %v471, 2.0
    %v481 = vmul.f32 %v475, 2.0
    %v482 = vmul.f32 %v477, 2.0
    %v483 = vadd.f32 %v381, %v479
    %v484 = vadd.f32 %v383, %v480
    %v485 = vadd.f32 %v387, %v481
    %v486 = vadd.f32 %v389, %v482
    %v487 = vmul.f32 %v483, 0.25
    %v488 = vmul.f32 %v485, 0.25
    %v489 = vld [vmem:[%s7] sm:$0xff]
    %v490 = vld [vmem:[%s7 + $0x8] sm:$0xff]
    %v491 = vld [vmem:[%s7 + $0x10] sm:$0xff]
    %v492 = vld [vmem:[%s7 + $0x18] sm:$0xff]
    %v493 = vld [vmem:[%s7 + $0x20] sm:$0xff]
    %v494 = vld [vmem:[%s7 + $0x28] sm:$0xff]
    %v495 = vld [vmem:[%s7 + $0x30] sm:$0xff]
    %v496 = vld [vmem:[%s7 + $0x38] sm:$0xff]
    %498 = vrot.lane.b32.xlu0 %v483, 64
    %v499 = vpop.permute.xlu0 %498
    %v501 = vsel %vm395, %v487, 0
    %v503 = vsel %vm395, %v499, 0
    %505 = vmatprep.subr.mxu0 0.0
    %506 = vmatpush1.xpose.msra.mxu0 %v503
    %507 = vmatprep.subr.mxu0 0.0
    %508 = vmatpush1.xpose.msra.mxu0 0.0
    %509 = vmatprep.subr.mxu0 0.0
    %510 = vmatpush1.xpose.msra.mxu0 0.0
    %511 = vmatprep.subr.mxu0 0.0
    %512 = vmatpush1.xpose.msra.mxu0 0.0
    %513 = vmatprep.subr.mxu0 0.0
    %514 = vmatpush1.xpose.msra.mxu0 0.0
    %515 = vmatprep.subr.mxu0 0.0
    %516 = vmatpush1.xpose.msra.mxu0 0.0
    %517 = vmatprep.subr.mxu0 0.0
    %518 = vmatpush1.xpose.msra.mxu0 0.0
    %519 = vmatprep.subr.mxu0 0.0
    %520 = vmatpush1.xpose.msra.mxu0 0.0
    %521 = vmatprep.subr.mxu0 0.0
    %522 = vmatpush1.xpose.msra.mxu0 0.0
    %523 = vmatprep.subr.mxu0 0.0
    %524 = vmatpush1.xpose.msra.mxu0 0.0
    %525 = vmatprep.subr.mxu0 0.0
    %526 = vmatpush1.xpose.msra.mxu0 0.0
    %527 = vmatprep.subr.mxu0 0.0
    %528 = vmatpush1.xpose.msra.mxu0 0.0
    %529 = vmatprep.subr.mxu0 0.0
    %530 = vmatpush1.xpose.msra.mxu0 0.0
    %531 = vmatprep.subr.mxu0 0.0
    %532 = vmatpush1.xpose.msra.mxu0 0.0
    %533 = vmatprep.subr.mxu0 0.0
    %534 = vmatpush1.xpose.msra.mxu0 0.0
    %535 = vmatprep.subr.mxu0 0.0
    %536 = vmatpush1.xpose.msra.mxu0 0.0
    %537 = vmatprep.subr.mxu0 0.0
    %538 = vmatpush1.xpose.msra.mxu0 0.0
    %539 = vmatprep.subr.mxu0 0.0
    %540 = vmatpush1.xpose.msra.mxu0 0.0
    %541 = vmatprep.subr.mxu0 0.0
    %542 = vmatpush1.xpose.msra.mxu0 0.0
    %543 = vmatprep.subr.mxu0 0.0
    %544 = vmatpush1.xpose.msra.mxu0 0.0
    %545 = vmatprep.subr.mxu0 0.0
    %546 = vmatpush1.xpose.msra.mxu0 0.0
    %547 = vmatprep.subr.mxu0 0.0
    %548 = vmatpush1.xpose.msra.mxu0 0.0
    %549 = vmatprep.subr.mxu0 0.0
    %550 = vmatpush1.xpose.msra.mxu0 0.0
    %551 = vmatprep.subr.mxu0 0.0
    %552 = vmatpush1.xpose.msra.mxu0 0.0
    %553 = vmatprep.subr.mxu0 0.0
    %554 = vmatpush1.xpose.msra.mxu0 0.0
    %555 = vmatprep.subr.mxu0 0.0
    %556 = vmatpush1.xpose.msra.mxu0 0.0
    %557 = vmatprep.subr.mxu0 0.0
    %558 = vmatpush1.xpose.msra.mxu0 0.0
    %559 = vmatprep.subr.mxu0 0.0
    %560 = vmatpush1.xpose.msra.mxu0 0.0
    %561 = vmatprep.subr.mxu0 0.0
    %562 = vmatpush1.xpose.msra.mxu0 0.0
    %563 = vmatprep.subr.mxu0 0.0
    %564 = vmatpush1.xpose.msra.mxu0 0.0
    %565 = vmatprep.subr.mxu0 0.0
    %566 = vmatpush1.xpose.msra.mxu0 0.0
    %567 = vmatprep.subr.mxu0 0.0
    %568 = vmatpush1.xpose.msra.mxu0 0.0
    %569 = vmatprep.mubr.f32.mxu0 0.0
    %570 = vmatmul.mubr.f32.gmra.mrb[0].mxu0 %v501
    %v571 = vpop.f32.mrb[0].mxu0
    %v572 = vadd.f32 %v154, %v571
    %v573 = vpop.f32.mrb[0].mxu0
    %574 = vdwg.mxu0
    %576 = vrot.lane.b32.xlu0 %v485, 64
    %v577 = vpop.permute.xlu0 %576
    %v579 = vsel %vm395, %v488, 0
    %v581 = vsel %vm395, %v577, 0
    %583 = vmatprep.subr.mxu0 0.0
    %584 = vmatpush1.xpose.msra.mxu0 %v581
    %585 = vmatprep.subr.mxu0 0.0
    %586 = vmatpush1.xpose.msra.mxu0 0.0
    %587 = vmatprep.subr.mxu0 0.0
    %588 = vmatpush1.xpose.msra.mxu0 0.0
    %589 = vmatprep.subr.mxu0 0.0
    %590 = vmatpush1.xpose.msra.mxu0 0.0
    %591 = vmatprep.subr.mxu0 0.0
    %592 = vmatpush1.xpose.msra.mxu0 0.0
    %593 = vmatprep.subr.mxu0 0.0
    %594 = vmatpush1.xpose.msra.mxu0 0.0
    %595 = vmatprep.subr.mxu0 0.0
    %596 = vmatpush1.xpose.msra.mxu0 0.0
    %597 = vmatprep.subr.mxu0 0.0
    %598 = vmatpush1.xpose.msra.mxu0 0.0
    %599 = vmatprep.subr.mxu0 0.0
    %600 = vmatpush1.xpose.msra.mxu0 0.0
    %601 = vmatprep.subr.mxu0 0.0
    %602 = vmatpush1.xpose.msra.mxu0 0.0
    %603 = vmatprep.subr.mxu0 0.0
    %604 = vmatpush1.xpose.msra.mxu0 0.0
    %605 = vmatprep.subr.mxu0 0.0
    %606 = vmatpush1.xpose.msra.mxu0 0.0
    %607 = vmatprep.subr.mxu0 0.0
    %608 = vmatpush1.xpose.msra.mxu0 0.0
    %609 = vmatprep.subr.mxu0 0.0
    %610 = vmatpush1.xpose.msra.mxu0 0.0
    %611 = vmatprep.subr.mxu0 0.0
    %612 = vmatpush1.xpose.msra.mxu0 0.0
    %613 = vmatprep.subr.mxu0 0.0
    %614 = vmatpush1.xpose.msra.mxu0 0.0
    %615 = vmatprep.subr.mxu0 0.0
    %616 = vmatpush1.xpose.msra.mxu0 0.0
    %617 = vmatprep.subr.mxu0 0.0
    %618 = vmatpush1.xpose.msra.mxu0 0.0
    %619 = vmatprep.subr.mxu0 0.0
    %620 = vmatpush1.xpose.msra.mxu0 0.0
    %621 = vmatprep.subr.mxu0 0.0
    %622 = vmatpush1.xpose.msra.mxu0 0.0
    %623 = vmatprep.subr.mxu0 0.0
    %624 = vmatpush1.xpose.msra.mxu0 0.0
    %625 = vmatprep.subr.mxu0 0.0
    %626 = vmatpush1.xpose.msra.mxu0 0.0
    %627 = vmatprep.subr.mxu0 0.0
    %628 = vmatpush1.xpose.msra.mxu0 0.0
    %629 = vmatprep.subr.mxu0 0.0
    %630 = vmatpush1.xpose.msra.mxu0 0.0
    %631 = vmatprep.subr.mxu0 0.0
    %632 = vmatpush1.xpose.msra.mxu0 0.0
    %633 = vmatprep.subr.mxu0 0.0
    %634 = vmatpush1.xpose.msra.mxu0 0.0
    %635 = vmatprep.subr.mxu0 0.0
    %636 = vmatpush1.xpose.msra.mxu0 0.0
    %637 = vmatprep.subr.mxu0 0.0
    %638 = vmatpush1.xpose.msra.mxu0 0.0
    %639 = vmatprep.subr.mxu0 0.0
    %640 = vmatpush1.xpose.msra.mxu0 0.0
    %641 = vmatprep.subr.mxu0 0.0
    %642 = vmatpush1.xpose.msra.mxu0 0.0
    %643 = vmatprep.subr.mxu0 0.0
    %644 = vmatpush1.xpose.msra.mxu0 0.0
    %645 = vmatprep.subr.mxu0 0.0
    %646 = vmatpush1.xpose.msra.mxu0 0.0
    %647 = vmatprep.mubr.f32.mxu0 0.0
    %648 = vmatmul.mubr.f32.gmra.mrb[0].mxu0 %v579
    %v649 = vpop.f32.mrb[0].mxu0
    %v650 = vadd.f32 %v155, %v649
    %v651 = vpop.f32.mrb[0].mxu0
    %652 = vdwg.mxu0
    %vm653 = vcmask 64512
    %v654 = vsel %vm653, %v572, -inf
    %655 = vmax.xlane.f32.xlu0 %v654
    %v656 = vpop.xlane.xlu0 %655
    %v657 = vsel %vm653, %v650, -inf
    %658 = vmax.xlane.f32.xlu0 %v657
    %v659 = vpop.xlane.xlu0 %658
    %v660 = vsub.f32 %v572, %v656
    %v661 = vsub.f32 %v650, %v659
    %v662 = vmul.f32 %v660, 1.442695
    %v663 = vpow.pop %v662
    %v664 = vmul.f32 %v661, 1.442695
    %v665 = vpow.pop %v664
    %v666 = vsel %vm653, %v663, 0.0
    %667 = vadd.xlane.f32.xlu0 %v666
    %v668 = vpop.xlane.xlu0 %667
    %v669 = vsel %vm653, %v665, 0.0
    %670 = vadd.xlane.f32.xlu0 %v669
    %v671 = vpop.xlane.xlu0 %670
    %v673 = vsel %vm653, %v663, 0
    %675 = vmatprep.subr.mxu0 0.0
    %676 = vmatpush1.msra.mxu0 %v484
    %677 = vmatprep.subr.mxu0 0.0
    %678 = vmatpush1.msra.mxu0 0.0
    %679 = vmatprep.subr.mxu0 0.0
    %680 = vmatpush1.msra.mxu0 0.0
    %681 = vmatprep.subr.mxu0 0.0
    %682 = vmatpush1.msra.mxu0 0.0
    %683 = vmatprep.subr.mxu0 0.0
    %684 = vmatpush1.msra.mxu0 0.0
    %685 = vmatprep.subr.mxu0 0.0
    %686 = vmatpush1.msra.mxu0 0.0
    %687 = vmatprep.subr.mxu0 0.0
    %688 = vmatpush1.msra.mxu0 0.0
    %689 = vmatprep.subr.mxu0 0.0
    %690 = vmatpush1.msra.mxu0 0.0
    %691 = vmatprep.subr.mxu0 0.0
    %692 = vmatpush1.msra.mxu0 0.0
    %693 = vmatprep.subr.mxu0 0.0
    %694 = vmatpush1.msra.mxu0 0.0
    %695 = vmatprep.subr.mxu0 0.0
    %696 = vmatpush1.msra.mxu0 0.0
    %697 = vmatprep.subr.mxu0 0.0
    %698 = vmatpush1.msra.mxu0 0.0
    %699 = vmatprep.subr.mxu0 0.0
    %700 = vmatpush1.msra.mxu0 0.0
    %701 = vmatprep.subr.mxu0 0.0
    %702 = vmatpush1.msra.mxu0 0.0
    %703 = vmatprep.subr.mxu0 0.0
    %704 = vmatpush1.msra.mxu0 0.0
    %705 = vmatprep.subr.mxu0 0.0
    %706 = vmatpush1.msra.mxu0 0.0
    %707 = vmatprep.subr.mxu0 0.0
    %708 = vmatpush1.msra.mxu0 0.0
    %709 = vmatprep.subr.mxu0 0.0
    %710 = vmatpush1.msra.mxu0 0.0
    %711 = vmatprep.subr.mxu0 0.0
    %712 = vmatpush1.msra.mxu0 0.0
    %713 = vmatprep.subr.mxu0 0.0
    %714 = vmatpush1.msra.mxu0 0.0
    %715 = vmatprep.subr.mxu0 0.0
    %716 = vmatpush1.msra.mxu0 0.0
    %717 = vmatprep.subr.mxu0 0.0
    %718 = vmatpush1.msra.mxu0 0.0
    %719 = vmatprep.subr.mxu0 0.0
    %720 = vmatpush1.msra.mxu0 0.0
    %721 = vmatprep.subr.mxu0 0.0
    %722 = vmatpush1.msra.mxu0 0.0
    %723 = vmatprep.subr.mxu0 0.0
    %724 = vmatpush1.msra.mxu0 0.0
    %725 = vmatprep.subr.mxu0 0.0
    %726 = vmatpush1.msra.mxu0 0.0
    %727 = vmatprep.subr.mxu0 0.0
    %728 = vmatpush1.msra.mxu0 0.0
    %729 = vmatprep.subr.mxu0 0.0
    %730 = vmatpush1.msra.mxu0 0.0
    %731 = vmatprep.subr.mxu0 0.0
    %732 = vmatpush1.msra.mxu0 0.0
    %733 = vmatprep.subr.mxu0 0.0
    %734 = vmatpush1.msra.mxu0 0.0
    %735 = vmatprep.subr.mxu0 0.0
    %736 = vmatpush1.msra.mxu0 0.0
    %737 = vmatprep.subr.mxu0 0.0
    %738 = vmatpush1.msra.mxu0 0.0
    %739 = vmatprep.mubr.f32.mxu0 0.0
    %740 = vmatmul.mubr.f32.gmra.mrb[0].mxu0 %v673
    %v741 = vpop.f32.mrb[0].mxu0
    %v742 = vadd.f32 0.0, %v741
    %v743 = vpop.f32.mrb[0].mxu0
    %744 = vdwg.mxu0
    %v746 = vsel %vm653, %v665, 0
    %748 = vmatprep.subr.mxu0 0.0
    %749 = vmatpush1.msra.mxu0 %v486
    %750 = vmatprep.subr.mxu0 0.0
    %751 = vmatpush1.msra.mxu0 0.0
    %752 = vmatprep.subr.mxu0 0.0
    %753 = vmatpush1.msra.mxu0 0.0
    %754 = vmatprep.subr.mxu0 0.0
    %755 = vmatpush1.msra.mxu0 0.0
    %756 = vmatprep.subr.mxu0 0.0
    %757 = vmatpush1.msra.mxu0 0.0
    %758 = vmatprep.subr.mxu0 0.0
    %759 = vmatpush1.msra.mxu0 0.0
    %760 = vmatprep.subr.mxu0 0.0
    %761 = vmatpush1.msra.mxu0 0.0
    %762 = vmatprep.subr.mxu0 0.0
    %763 = vmatpush1.msra.mxu0 0.0
    %764 = vmatprep.subr.mxu0 0.0
    %765 = vmatpush1.msra.mxu0 0.0
    %766 = vmatprep.subr.mxu0 0.0
    %767 = vmatpush1.msra.mxu0 0.0
    %768 = vmatprep.subr.mxu0 0.0
    %769 = vmatpush1.msra.mxu0 0.0
    %770 = vmatprep.subr.mxu0 0.0
    %771 = vmatpush1.msra.mxu0 0.0
    %772 = vmatprep.subr.mxu0 0.0
    %773 = vmatpush1.msra.mxu0 0.0
    %774 = vmatprep.subr.mxu0 0.0
    %775 = vmatpush1.msra.mxu0 0.0
    %776 = vmatprep.subr.mxu0 0.0
    %777 = vmatpush1.msra.mxu0 0.0
    %778 = vmatprep.subr.mxu0 0.0
    %779 = vmatpush1.msra.mxu0 0.0
    %780 = vmatprep.subr.mxu0 0.0
    %781 = vmatpush1.msra.mxu0 0.0
    %782 = vmatprep.subr.mxu0 0.0
    %783 = vmatpush1.msra.mxu0 0.0
    %784 = vmatprep.subr.mxu0 0.0
    %785 = vmatpush1.msra.mxu0 0.0
    %786 = vmatprep.subr.mxu0 0.0
    %787 = vmatpush1.msra.mxu0 0.0
    %788 = vmatprep.subr.mxu0 0.0
    %789 = vmatpush1.msra.mxu0 0.0
    %790 = vmatprep.subr.mxu0 0.0
    %791 = vmatpush1.msra.mxu0 0.0
    %792 = vmatprep.subr.mxu0 0.0
    %793 = vmatpush1.msra.mxu0 0.0
    %794 = vmatprep.subr.mxu0 0.0
    %795 = vmatpush1.msra.mxu0 0.0
    %796 = vmatprep.subr.mxu0 0.0
    %797 = vmatpush1.msra.mxu0 0.0
    %798 = vmatprep.subr.mxu0 0.0
    %799 = vmatpush1.msra.mxu0 0.0
    %800 = vmatprep.subr.mxu0 0.0
    %801 = vmatpush1.msra.mxu0 0.0
    %802 = vmatprep.subr.mxu0 0.0
    %803 = vmatpush1.msra.mxu0 0.0
    %804 = vmatprep.subr.mxu0 0.0
    %805 = vmatpush1.msra.mxu0 0.0
    %806 = vmatprep.subr.mxu0 0.0
    %807 = vmatpush1.msra.mxu0 0.0
    %808 = vmatprep.subr.mxu0 0.0
    %809 = vmatpush1.msra.mxu0 0.0
    %810 = vmatprep.subr.mxu0 0.0
    %811 = vmatpush1.msra.mxu0 0.0
    %812 = vmatprep.mubr.f32.mxu0 0.0
    %813 = vmatmul.mubr.f32.gmra.mrb[0].mxu0 %v746
    %v814 = vpop.f32.mrb[0].mxu0
    %v815 = vadd.f32 0.0, %v814
    %v816 = vpop.f32.mrb[0].mxu0
    %817 = vdwg.mxu0
    %v818 = vrcp.pop %v668
    %v819 = vrcp.pop %v671
    %v820 = vmul.f32 %v742, %v818
    %v821 = vmul.f32 %v815, %v819
    %822 = vrot.lane.b32.xlu0 %v487, 112
    %v823 = vpop.permute.xlu0 %822
    %824 = vrot.lane.b32.xlu0 %v483, 48
    %v825 = vpop.permute.xlu0 %824
    %v826 = vsel %vm395, %v823, 0
    %v828 = vsel %vm395, %v825, 0
    %830 = vmatprep.subr.mxu0 0.0
    %831 = vmatpush1.xpose.msra.mxu0 %v828
    %832 = vmatprep.subr.mxu0 0.0
    %833 = vmatpush1.xpose.msra.mxu0 0.0
    %834 = vmatprep.subr.mxu0 0.0
    %835 = vmatpush1.xpose.msra.mxu0 0.0
    %836 = vmatprep.subr.mxu0 0.0
    %837 = vmatpush1.xpose.msra.mxu0 0.0
    %838 = vmatprep.subr.mxu0 0.0
    %839 = vmatpush1.xpose.msra.mxu0 0.0
    %840 = vmatprep.subr.mxu0 0.0
    %841 = vmatpush1.xpose.msra.mxu0 0.0
    %842 = vmatprep.subr.mxu0 0.0
    %843 = vmatpush1.xpose.msra.mxu0 0.0
    %844 = vmatprep.subr.mxu0 0.0
    %845 = vmatpush1.xpose.msra.mxu0 0.0
    %846 = vmatprep.subr.mxu0 0.0
    %847 = vmatpush1.xpose.msra.mxu0 0.0
    %848 = vmatprep.subr.mxu0 0.0
    %849 = vmatpush1.xpose.msra.mxu0 0.0
    %850 = vmatprep.subr.mxu0 0.0
    %851 = vmatpush1.xpose.msra.mxu0 0.0
    %852 = vmatprep.subr.mxu0 0.0
    %853 = vmatpush1.xpose.msra.mxu0 0.0
    %854 = vmatprep.subr.mxu0 0.0
    %855 = vmatpush1.xpose.msra.mxu0 0.0
    %856 = vmatprep.subr.mxu0 0.0
    %857 = vmatpush1.xpose.msra.mxu0 0.0
    %858 = vmatprep.subr.mxu0 0.0
    %859 = vmatpush1.xpose.msra.mxu0 0.0
    %860 = vmatprep.subr.mxu0 0.0
    %861 = vmatpush1.xpose.msra.mxu0 0.0
    %862 = vmatprep.subr.mxu0 0.0
    %863 = vmatpush1.xpose.msra.mxu0 0.0
    %864 = vmatprep.subr.mxu0 0.0
    %865 = vmatpush1.xpose.msra.mxu0 0.0
    %866 = vmatprep.subr.mxu0 0.0
    %867 = vmatpush1.xpose.msra.mxu0 0.0
    %868 = vmatprep.subr.mxu0 0.0
    %869 = vmatpush1.xpose.msra.mxu0 0.0
    %870 = vmatprep.subr.mxu0 0.0
    %871 = vmatpush1.xpose.msra.mxu0 0.0
    %872 = vmatprep.subr.mxu0 0.0
    %873 = vmatpush1.xpose.msra.mxu0 0.0
    %874 = vmatprep.subr.mxu0 0.0
    %875 = vmatpush1.xpose.msra.mxu0 0.0
    %876 = vmatprep.subr.mxu0 0.0
    %877 = vmatpush1.xpose.msra.mxu0 0.0
    %878 = vmatprep.subr.mxu0 0.0
    %879 = vmatpush1.xpose.msra.mxu0 0.0
    %880 = vmatprep.subr.mxu0 0.0
    %881 = vmatpush1.xpose.msra.mxu0 0.0
    %882 = vmatprep.subr.mxu0 0.0
    %883 = vmatpush1.xpose.msra.mxu0 0.0
    %884 = vmatprep.subr.mxu0 0.0
    %885 = vmatpush1.xpose.msra.mxu0 0.0
    %886 = vmatprep.subr.mxu0 0.0
    %887 = vmatpush1.xpose.msra.mxu0 0.0
    %888 = vmatprep.subr.mxu0 0.0
    %889 = vmatpush1.xpose.msra.mxu0 0.0
    %890 = vmatprep.subr.mxu0 0.0
    %891 = vmatpush1.xpose.msra.mxu0 0.0
    %892 = vmatprep.subr.mxu0 0.0
    %893 = vmatpush1.xpose.msra.mxu0 0.0
    %894 = vmatprep.mubr.f32.mxu0 0.0
    %895 = vmatmul.mubr.f32.gmra.mrb[0].mxu0 %v826
    %v896 = vpop.f32.mrb[0].mxu0
    %v897 = vadd.f32 %v154, %v896
    %v898 = vpop.f32.mrb[0].mxu0
    %899 = vdwg.mxu0
    %900 = vrot.lane.b32.xlu0 %v488, 112
    %v901 = vpop.permute.xlu0 %900
    %902 = vrot.lane.b32.xlu0 %v485, 48
    %v903 = vpop.permute.xlu0 %902
    %v904 = vsel %vm395, %v901, 0
    %v906 = vsel %vm395, %v903, 0
    %908 = vmatprep.subr.mxu0 0.0
    %909 = vmatpush1.xpose.msra.mxu0 %v906
    %910 = vmatprep.subr.mxu0 0.0
    %911 = vmatpush1.xpose.msra.mxu0 0.0
    %912 = vmatprep.subr.mxu0 0.0
    %913 = vmatpush1.xpose.msra.mxu0 0.0
    %914 = vmatprep.subr.mxu0 0.0
    %915 = vmatpush1.xpose.msra.mxu0 0.0
    %916 = vmatprep.subr.mxu0 0.0
    %917 = vmatpush1.xpose.msra.mxu0 0.0
    %918 = vmatprep.subr.mxu0 0.0
    %919 = vmatpush1.xpose.msra.mxu0 0.0
    %920 = vmatprep.subr.mxu0 0.0
    %921 = vmatpush1.xpose.msra.mxu0 0.0
    %922 = vmatprep.subr.mxu0 0.0
    %923 = vmatpush1.xpose.msra.mxu0 0.0
    %924 = vmatprep.subr.mxu0 0.0
    %925 = vmatpush1.xpose.msra.mxu0 0.0
    %926 = vmatprep.subr.mxu0 0.0
    %927 = vmatpush1.xpose.msra.mxu0 0.0
    %928 = vmatprep.subr.mxu0 0.0
    %929 = vmatpush1.xpose.msra.mxu0 0.0
    %930 = vmatprep.subr.mxu0 0.0
    %931 = vmatpush1.xpose.msra.mxu0 0.0
    %932 = vmatprep.subr.mxu0 0.0
    %933 = vmatpush1.xpose.msra.mxu0 0.0
    %934 = vmatprep.subr.mxu0 0.0
    %935 = vmatpush1.xpose.msra.mxu0 0.0
    %936 = vmatprep.subr.mxu0 0.0
    %937 = vmatpush1.xpose.msra.mxu0 0.0
    %938 = vmatprep.subr.mxu0 0.0
    %939 = vmatpush1.xpose.msra.mxu0 0.0
    %940 = vmatprep.subr.mxu0 0.0
    %941 = vmatpush1.xpose.msra.mxu0 0.0
    %942 = vmatprep.subr.mxu0 0.0
    %943 = vmatpush1.xpose.msra.mxu0 0.0
    %944 = vmatprep.subr.mxu0 0.0
    %945 = vmatpush1.xpose.msra.mxu0 0.0
    %946 = vmatprep.subr.mxu0 0.0
    %947 = vmatpush1.xpose.msra.mxu0 0.0
    %948 = vmatprep.subr.mxu0 0.0
    %949 = vmatpush1.xpose.msra.mxu0 0.0
    %950 = vmatprep.subr.mxu0 0.0
    %951 = vmatpush1.xpose.msra.mxu0 0.0
    %952 = vmatprep.subr.mxu0 0.0
    %953 = vmatpush1.xpose.msra.mxu0 0.0
    %954 = vmatprep.subr.mxu0 0.0
    %955 = vmatpush1.xpose.msra.mxu0 0.0
    %956 = vmatprep.subr.mxu0 0.0
    %957 = vmatpush1.xpose.msra.mxu0 0.0
    %958 = vmatprep.subr.mxu0 0.0
    %959 = vmatpush1.xpose.msra.mxu0 0.0
    %960 = vmatprep.subr.mxu0 0.0
    %961 = vmatpush1.xpose.msra.mxu0 0.0
    %962 = vmatprep.subr.mxu0 0.0
    %963 = vmatpush1.xpose.msra.mxu0 0.0
    %964 = vmatprep.subr.mxu0 0.0
    %965 = vmatpush1.xpose.msra.mxu0 0.0
    %966 = vmatprep.subr.mxu0 0.0
    %967 = vmatpush1.xpose.msra.mxu0 0.0
    %968 = vmatprep.subr.mxu0 0.0
    %969 = vmatpush1.xpose.msra.mxu0 0.0
    %970 = vmatprep.subr.mxu0 0.0
    %971 = vmatpush1.xpose.msra.mxu0 0.0
    %972 = vmatprep.mubr.f32.mxu0 0.0
    %973 = vmatmul.mubr.f32.gmra.mrb[0].mxu0 %v904
    %v974 = vpop.f32.mrb[0].mxu0
    %v975 = vadd.f32 %v155, %v974
    %v976 = vpop.f32.mrb[0].mxu0
    %977 = vdwg.mxu0
    %v978 = vsel %vm653, %v897, -inf
    %979 = vmax.xlane.f32.xlu0 %v978
    %v980 = vpop.xlane.xlu0 %979
    %v981 = vsel %vm653, %v975, -inf
    %982 = vmax.xlane.f32.xlu0 %v981
    %v983 = vpop.xlane.xlu0 %982
    %v984 = vsub.f32 %v897, %v980
    %v985 = vsub.f32 %v975, %v983
    %v986 = vmul.f32 %v984, 1.442695
    %v987 = vpow.pop %v986
    %v988 = vmul.f32 %v985, 1.442695
    %v989 = vpow.pop %v988
    %v990 = vsel %vm653, %v987, 0.0
    %991 = vadd.xlane.f32.xlu0 %v990
    %v992 = vpop.xlane.xlu0 %991
    %v993 = vsel %vm653, %v989, 0.0
    %994 = vadd.xlane.f32.xlu0 %v993
    %v995 = vpop.xlane.xlu0 %994
    %997 = vrot.lane.b32.xlu0 %v484, 112
    %v998 = vpop.permute.xlu0 %997
    %v1001 = vsel %vm653, %v987, 0
    %1003 = vmatprep.subr.mxu0 0.0
    %1004 = vmatpush1.msra.mxu0 %v998
    %1005 = vmatprep.subr.mxu0 0.0
    %1006 = vmatpush1.msra.mxu0 0.0
    %1007 = vmatprep.subr.mxu0 0.0
    %1008 = vmatpush1.msra.mxu0 0.0
    %1009 = vmatprep.subr.mxu0 0.0
    %1010 = vmatpush1.msra.mxu0 0.0
    %1011 = vmatprep.subr.mxu0 0.0
    %1012 = vmatpush1.msra.mxu0 0.0
    %1013 = vmatprep.subr.mxu0 0.0
    %1014 = vmatpush1.msra.mxu0 0.0
    %1015 = vmatprep.subr.mxu0 0.0
    %1016 = vmatpush1.msra.mxu0 0.0
    %1017 = vmatprep.subr.mxu0 0.0
    %1018 = vmatpush1.msra.mxu0 0.0
    %1019 = vmatprep.subr.mxu0 0.0
    %1020 = vmatpush1.msra.mxu0 0.0
    %1021 = vmatprep.subr.mxu0 0.0
    %1022 = vmatpush1.msra.mxu0 0.0
    %1023 = vmatprep.subr.mxu0 0.0
    %1024 = vmatpush1.msra.mxu0 0.0
    %1025 = vmatprep.subr.mxu0 0.0
    %1026 = vmatpush1.msra.mxu0 0.0
    %1027 = vmatprep.subr.mxu0 0.0
    %1028 = vmatpush1.msra.mxu0 0.0
    %1029 = vmatprep.subr.mxu0 0.0
    %1030 = vmatpush1.msra.mxu0 0.0
    %1031 = vmatprep.subr.mxu0 0.0
    %1032 = vmatpush1.msra.mxu0 0.0
    %1033 = vmatprep.subr.mxu0 0.0
    %1034 = vmatpush1.msra.mxu0 0.0
    %1035 = vmatprep.subr.mxu0 0.0
    %1036 = vmatpush1.msra.mxu0 0.0
    %1037 = vmatprep.subr.mxu0 0.0
    %1038 = vmatpush1.msra.mxu0 0.0
    %1039 = vmatprep.subr.mxu0 0.0
    %1040 = vmatpush1.msra.mxu0 0.0
    %1041 = vmatprep.subr.mxu0 0.0
    %1042 = vmatpush1.msra.mxu0 0.0
    %1043 = vmatprep.subr.mxu0 0.0
    %1044 = vmatpush1.msra.mxu0 0.0
    %1045 = vmatprep.subr.mxu0 0.0
    %1046 = vmatpush1.msra.mxu0 0.0
    %1047 = vmatprep.subr.mxu0 0.0
    %1048 = vmatpush1.msra.mxu0 0.0
    %1049 = vmatprep.subr.mxu0 0.0
    %1050 = vmatpush1.msra.mxu0 0.0
    %1051 = vmatprep.subr.mxu0 0.0
    %1052 = vmatpush1.msra.mxu0 0.0
    %1053 = vmatprep.subr.mxu0 0.0
    %1054 = vmatpush1.msra.mxu0 0.0
    %1055 = vmatprep.subr.mxu0 0.0
    %1056 = vmatpush1.msra.mxu0 0.0
    %1057 = vmatprep.subr.mxu0 0.0
    %1058 = vmatpush1.msra.mxu0 0.0
    %1059 = vmatprep.subr.mxu0 0.0
    %1060 = vmatpush1.msra.mxu0 0.0
    %1061 = vmatprep.subr.mxu0 0.0
    %1062 = vmatpush1.msra.mxu0 0.0
    %1063 = vmatprep.subr.mxu0 0.0
    %1064 = vmatpush1.msra.mxu0 0.0
    %1065 = vmatprep.subr.mxu0 0.0
    %1066 = vmatpush1.msra.mxu0 0.0
    %1067 = vmatprep.mubr.f32.mxu0 0.0
    %1068 = vmatmul.mubr.f32.gmra.mrb[0].mxu0 %v1001
    %v1069 = vpop.f32.mrb[0].mxu0
    %v1070 = vadd.f32 0.0, %v1069
    %v1071 = vpop.f32.mrb[0].mxu0
    %1072 = vdwg.mxu0
    %1074 = vrot.lane.b32.xlu0 %v486, 112
    %v1075 = vpop.permute.xlu0 %1074
    %v1078 = vsel %vm653, %v989, 0
    %1080 = vmatprep.subr.mxu0 0.0
    %1081 = vmatpush1.msra.mxu0 %v1075
    %1082 = vmatprep.subr.mxu0 0.0
    %1083 = vmatpush1.msra.mxu0 0.0
    %1084 = vmatprep.subr.mxu0 0.0
    %1085 = vmatpush1.msra.mxu0 0.0
    %1086 = vmatprep.subr.mxu0 0.0
    %1087 = vmatpush1.msra.mxu0 0.0
    %1088 = vmatprep.subr.mxu0 0.0
    %1089 = vmatpush1.msra.mxu0 0.0
    %1090 = vmatprep.subr.mxu0 0.0
    %1091 = vmatpush1.msra.mxu0 0.0
    %1092 = vmatprep.subr.mxu0 0.0
    %1093 = vmatpush1.msra.mxu0 0.0
    %1094 = vmatprep.subr.mxu0 0.0
    %1095 = vmatpush1.msra.mxu0 0.0
    %1096 = vmatprep.subr.mxu0 0.0
    %1097 = vmatpush1.msra.mxu0 0.0
    %1098 = vmatprep.subr.mxu0 0.0
    %1099 = vmatpush1.msra.mxu0 0.0
    %1100 = vmatprep.subr.mxu0 0.0
    %1101 = vmatpush1.msra.mxu0 0.0
    %1102 = vmatprep.subr.mxu0 0.0
    %1103 = vmatpush1.msra.mxu0 0.0
    %1104 = vmatprep.subr.mxu0 0.0
    %1105 = vmatpush1.msra.mxu0 0.0
    %1106 = vmatprep.subr.mxu0 0.0
    %1107 = vmatpush1.msra.mxu0 0.0
    %1108 = vmatprep.subr.mxu0 0.0
    %1109 = vmatpush1.msra.mxu0 0.0
    %1110 = vmatprep.subr.mxu0 0.0
    %1111 = vmatpush1.msra.mxu0 0.0
    %1112 = vmatprep.subr.mxu0 0.0
    %1113 = vmatpush1.msra.mxu0 0.0
    %1114 = vmatprep.subr.mxu0 0.0
    %1115 = vmatpush1.msra.mxu0 0.0
    %1116 = vmatprep.subr.mxu0 0.0
    %1117 = vmatpush1.msra.mxu0 0.0
    %1118 = vmatprep.subr.mxu0 0.0
    %1119 = vmatpush1.msra.mxu0 0.0
    %1120 = vmatprep.subr.mxu0 0.0
    %1121 = vmatpush1.msra.mxu0 0.0
    %1122 = vmatprep.subr.mxu0 0.0
    %1123 = vmatpush1.msra.mxu0 0.0
    %1124 = vmatprep.subr.mxu0 0.0
    %1125 = vmatpush1.msra.mxu0 0.0
    %1126 = vmatprep.subr.mxu0 0.0
    %1127 = vmatpush1.msra.mxu0 0.0
    %1128 = vmatprep.subr.mxu0 0.0
    %1129 = vmatpush1.msra.mxu0 0.0
    %1130 = vmatprep.subr.mxu0 0.0
    %1131 = vmatpush1.msra.mxu0 0.0
    %1132 = vmatprep.subr.mxu0 0.0
    %1133 = vmatpush1.msra.mxu0 0.0
    %1134 = vmatprep.subr.mxu0 0.0
    %1135 = vmatpush1.msra.mxu0 0.0
    %1136 = vmatprep.subr.mxu0 0.0
    %1137 = vmatpush1.msra.mxu0 0.0
    %1138 = vmatprep.subr.mxu0 0.0
    %1139 = vmatpush1.msra.mxu0 0.0
    %1140 = vmatprep.subr.mxu0 0.0
    %1141 = vmatpush1.msra.mxu0 0.0
    %1142 = vmatprep.subr.mxu0 0.0
    %1143 = vmatpush1.msra.mxu0 0.0
    %1144 = vmatprep.mubr.f32.mxu0 0.0
    %1145 = vmatmul.mubr.f32.gmra.mrb[0].mxu0 %v1078
    %v1146 = vpop.f32.mrb[0].mxu0
    %v1147 = vadd.f32 0.0, %v1146
    %v1148 = vpop.f32.mrb[0].mxu0
    %1149 = vdwg.mxu0
    %v1150 = vrcp.pop %v992
    %v1151 = vrcp.pop %v995
    %v1152 = vmul.f32 %v1070, %v1150
    %v1153 = vmul.f32 %v1147, %v1151
    %v1155 = vsel %vm395, %v1152, 0
    %v1158 = vsel %vm395, %v1153, 0
    %1160 = vmatprep.subr.mxu0 0.0
    %1161 = vmatpush1.msra.mxu0 %v491
    %1162 = vmatprep.subr.mxu0 0.0
    %1163 = vmatpush1.msra.mxu0 %v492
    %1164 = vmatprep.subr.mxu0 0.0
    %1165 = vmatpush1.msra.mxu0 0.0
    %1166 = vmatprep.subr.mxu0 0.0
    %1167 = vmatpush1.msra.mxu0 0.0
    %1168 = vmatprep.subr.mxu0 0.0
    %1169 = vmatpush1.msra.mxu0 0.0
    %1170 = vmatprep.subr.mxu0 0.0
    %1171 = vmatpush1.msra.mxu0 0.0
    %1172 = vmatprep.subr.mxu0 0.0
    %1173 = vmatpush1.msra.mxu0 0.0
    %1174 = vmatprep.subr.mxu0 0.0
    %1175 = vmatpush1.msra.mxu0 0.0
    %1176 = vmatprep.subr.mxu0 0.0
    %1177 = vmatpush1.msra.mxu0 0.0
    %1178 = vmatprep.subr.mxu0 0.0
    %1179 = vmatpush1.msra.mxu0 0.0
    %1180 = vmatprep.subr.mxu0 0.0
    %1181 = vmatpush1.msra.mxu0 0.0
    %1182 = vmatprep.subr.mxu0 0.0
    %1183 = vmatpush1.msra.mxu0 0.0
    %1184 = vmatprep.subr.mxu0 0.0
    %1185 = vmatpush1.msra.mxu0 0.0
    %1186 = vmatprep.subr.mxu0 0.0
    %1187 = vmatpush1.msra.mxu0 0.0
    %1188 = vmatprep.subr.mxu0 0.0
    %1189 = vmatpush1.msra.mxu0 0.0
    %1190 = vmatprep.subr.mxu0 0.0
    %1191 = vmatpush1.msra.mxu0 0.0
    %1192 = vmatprep.subr.mxu0 0.0
    %1193 = vmatpush1.msra.mxu0 0.0
    %1194 = vmatprep.subr.mxu0 0.0
    %1195 = vmatpush1.msra.mxu0 0.0
    %1196 = vmatprep.subr.mxu0 0.0
    %1197 = vmatpush1.msra.mxu0 0.0
    %1198 = vmatprep.subr.mxu0 0.0
    %1199 = vmatpush1.msra.mxu0 0.0
    %1200 = vmatprep.subr.mxu0 0.0
    %1201 = vmatpush1.msra.mxu0 0.0
    %1202 = vmatprep.subr.mxu0 0.0
    %1203 = vmatpush1.msra.mxu0 0.0
    %1204 = vmatprep.subr.mxu0 0.0
    %1205 = vmatpush1.msra.mxu0 0.0
    %1206 = vmatprep.subr.mxu0 0.0
    %1207 = vmatpush1.msra.mxu0 0.0
    %1208 = vmatprep.subr.mxu0 0.0
    %1209 = vmatpush1.msra.mxu0 0.0
    %1210 = vmatprep.subr.mxu0 0.0
    %1211 = vmatpush1.msra.mxu0 0.0
    %1212 = vmatprep.subr.mxu0 0.0
    %1213 = vmatpush1.msra.mxu0 0.0
    %1214 = vmatprep.subr.mxu0 0.0
    %1215 = vmatpush1.msra.mxu0 0.0
    %1216 = vmatprep.subr.mxu0 0.0
    %1217 = vmatpush1.msra.mxu0 0.0
    %1218 = vmatprep.subr.mxu0 0.0
    %1219 = vmatpush1.msra.mxu0 0.0
    %1220 = vmatprep.subr.mxu0 0.0
    %1221 = vmatpush1.msra.mxu0 0.0
    %1222 = vmatprep.subr.mxu0 0.0
    %1223 = vmatpush1.msra.mxu0 0.0
    %1224 = vmatprep.mubr.f32.mxu0 0.0
    %1225 = vmatmul.mubr.f32.gmra.mrb[0].mxu0 %v1155
    %v1226 = vpop.f32.mrb[0].mxu0
    %v1227 = vadd.f32 0.0, %v1226
    %v1228 = vpop.f32.mrb[0].mxu0
    %1229 = vmatprep.mubr.f32.mxu0 0.0
    %1230 = vmatmul.mubr.f32.gmra.mrb[0].mxu0 %v1158
    %v1231 = vpop.f32.mrb[0].mxu0
    %v1232 = vadd.f32 0.0, %v1231
    %v1233 = vpop.f32.mrb[0].mxu0
    %1234 = vdwg.mxu0
    %v1236 = vsel %vm395, %v820, 0
    %v1239 = vsel %vm395, %v821, 0
    %1241 = vmatprep.subr.mxu0 0.0
    %1242 = vmatpush1.msra.mxu0 %v489
    %1243 = vmatprep.subr.mxu0 0.0
    %1244 = vmatpush1.msra.mxu0 %v490
    %1245 = vmatprep.subr.mxu0 0.0
    %1246 = vmatpush1.msra.mxu0 0.0
    %1247 = vmatprep.subr.mxu0 0.0
    %1248 = vmatpush1.msra.mxu0 0.0
    %1249 = vmatprep.subr.mxu0 0.0
    %1250 = vmatpush1.msra.mxu0 0.0
    %1251 = vmatprep.subr.mxu0 0.0
    %1252 = vmatpush1.msra.mxu0 0.0
    %1253 = vmatprep.subr.mxu0 0.0
    %1254 = vmatpush1.msra.mxu0 0.0
    %1255 = vmatprep.subr.mxu0 0.0
    %1256 = vmatpush1.msra.mxu0 0.0
    %1257 = vmatprep.subr.mxu0 0.0
    %1258 = vmatpush1.msra.mxu0 0.0
    %1259 = vmatprep.subr.mxu0 0.0
    %1260 = vmatpush1.msra.mxu0 0.0
    %1261 = vmatprep.subr.mxu0 0.0
    %1262 = vmatpush1.msra.mxu0 0.0
    %1263 = vmatprep.subr.mxu0 0.0
    %1264 = vmatpush1.msra.mxu0 0.0
    %1265 = vmatprep.subr.mxu0 0.0
    %1266 = vmatpush1.msra.mxu0 0.0
    %1267 = vmatprep.subr.mxu0 0.0
    %1268 = vmatpush1.msra.mxu0 0.0
    %1269 = vmatprep.subr.mxu0 0.0
    %1270 = vmatpush1.msra.mxu0 0.0
    %1271 = vmatprep.subr.mxu0 0.0
    %1272 = vmatpush1.msra.mxu0 0.0
    %1273 = vmatprep.subr.mxu0 0.0
    %1274 = vmatpush1.msra.mxu0 0.0
    %1275 = vmatprep.subr.mxu0 0.0
    %1276 = vmatpush1.msra.mxu0 0.0
    %1277 = vmatprep.subr.mxu0 0.0
    %1278 = vmatpush1.msra.mxu0 0.0
    %1279 = vmatprep.subr.mxu0 0.0
    %1280 = vmatpush1.msra.mxu0 0.0
    %1281 = vmatprep.subr.mxu0 0.0
    %1282 = vmatpush1.msra.mxu0 0.0
    %1283 = vmatprep.subr.mxu0 0.0
    %1284 = vmatpush1.msra.mxu0 0.0
    %1285 = vmatprep.subr.mxu0 0.0
    %1286 = vmatpush1.msra.mxu0 0.0
    %1287 = vmatprep.subr.mxu0 0.0
    %1288 = vmatpush1.msra.mxu0 0.0
    %1289 = vmatprep.subr.mxu0 0.0
    %1290 = vmatpush1.msra.mxu0 0.0
    %1291 = vmatprep.subr.mxu0 0.0
    %1292 = vmatpush1.msra.mxu0 0.0
    %1293 = vmatprep.subr.mxu0 0.0
    %1294 = vmatpush1.msra.mxu0 0.0
    %1295 = vmatprep.subr.mxu0 0.0
    %1296 = vmatpush1.msra.mxu0 0.0
    %1297 = vmatprep.subr.mxu0 0.0
    %1298 = vmatpush1.msra.mxu0 0.0
    %1299 = vmatprep.subr.mxu0 0.0
    %1300 = vmatpush1.msra.mxu0 0.0
    %1301 = vmatprep.subr.mxu0 0.0
    %1302 = vmatpush1.msra.mxu0 0.0
    %1303 = vmatprep.subr.mxu0 0.0
    %1304 = vmatpush1.msra.mxu0 0.0
    %1305 = vmatprep.mubr.f32.mxu0 0.0
    %1306 = vmatmul.mubr.f32.gmra.mrb[0].mxu0 %v1236
    %v1307 = vpop.f32.mrb[0].mxu0
    %v1308 = vadd.f32 %v1227, %v1307
    %v1309 = vpop.f32.mrb[0].mxu0
    %1310 = vmatprep.mubr.f32.mxu0 0.0
    %1311 = vmatmul.mubr.f32.gmra.mrb[0].mxu0 %v1239
    %v1312 = vpop.f32.mrb[0].mxu0
    %v1313 = vadd.f32 %v1232, %v1312
    %v1314 = vpop.f32.mrb[0].mxu0
    %1315 = vdwg.mxu0
    %1316 = vrot.lane.b32.xlu0 %v487, 96
    %v1317 = vpop.permute.xlu0 %1316
    %1318 = vrot.lane.b32.xlu0 %v483, 32
    %v1319 = vpop.permute.xlu0 %1318
    %v1320 = vsel %vm395, %v1317, 0
    %v1322 = vsel %vm395, %v1319, 0
    %1324 = vmatprep.subr.mxu0 0.0
    %1325 = vmatpush1.xpose.msra.mxu0 %v1322
    %1326 = vmatprep.subr.mxu0 0.0
    %1327 = vmatpush1.xpose.msra.mxu0 0.0
    %1328 = vmatprep.subr.mxu0 0.0
    %1329 = vmatpush1.xpose.msra.mxu0 0.0
    %1330 = vmatprep.subr.mxu0 0.0
    %1331 = vmatpush1.xpose.msra.mxu0 0.0
    %1332 = vmatprep.subr.mxu0 0.0
    %1333 = vmatpush1.xpose.msra.mxu0 0.0
    %1334 = vmatprep.subr.mxu0 0.0
    %1335 = vmatpush1.xpose.msra.mxu0 0.0
    %1336 = vmatprep.subr.mxu0 0.0
    %1337 = vmatpush1.xpose.msra.mxu0 0.0
    %1338 = vmatprep.subr.mxu0 0.0
    %1339 = vmatpush1.xpose.msra.mxu0 0.0
    %1340 = vmatprep.subr.mxu0 0.0
    %1341 = vmatpush1.xpose.msra.mxu0 0.0
    %1342 = vmatprep.subr.mxu0 0.0
    %1343 = vmatpush1.xpose.msra.mxu0 0.0
    %1344 = vmatprep.subr.mxu0 0.0
    %1345 = vmatpush1.xpose.msra.mxu0 0.0
    %1346 = vmatprep.subr.mxu0 0.0
    %1347 = vmatpush1.xpose.msra.mxu0 0.0
    %1348 = vmatprep.subr.mxu0 0.0
    %1349 = vmatpush1.xpose.msra.mxu0 0.0
    %1350 = vmatprep.subr.mxu0 0.0
    %1351 = vmatpush1.xpose.msra.mxu0 0.0
    %1352 = vmatprep.subr.mxu0 0.0
    %1353 = vmatpush1.xpose.msra.mxu0 0.0
    %1354 = vmatprep.subr.mxu0 0.0
    %1355 = vmatpush1.xpose.msra.mxu0 0.0
    %1356 = vmatprep.subr.mxu0 0.0
    %1357 = vmatpush1.xpose.msra.mxu0 0.0
    %1358 = vmatprep.subr.mxu0 0.0
    %1359 = vmatpush1.xpose.msra.mxu0 0.0
    %1360 = vmatprep.subr.mxu0 0.0
    %1361 = vmatpush1.xpose.msra.mxu0 0.0
    %1362 = vmatprep.subr.mxu0 0.0
    %1363 = vmatpush1.xpose.msra.mxu0 0.0
    %1364 = vmatprep.subr.mxu0 0.0
    %1365 = vmatpush1.xpose.msra.mxu0 0.0
    %1366 = vmatprep.subr.mxu0 0.0
    %1367 = vmatpush1.xpose.msra.mxu0 0.0
    %1368 = vmatprep.subr.mxu0 0.0
    %1369 = vmatpush1.xpose.msra.mxu0 0.0
    %1370 = vmatprep.subr.mxu0 0.0
    %1371 = vmatpush1.xpose.msra.mxu0 0.0
    %1372 = vmatprep.subr.mxu0 0.0
    %1373 = vmatpush1.xpose.msra.mxu0 0.0
    %1374 = vmatprep.subr.mxu0 0.0
    %1375 = vmatpush1.xpose.msra.mxu0 0.0
    %1376 = vmatprep.subr.mxu0 0.0
    %1377 = vmatpush1.xpose.msra.mxu0 0.0
    %1378 = vmatprep.subr.mxu0 0.0
    %1379 = vmatpush1.xpose.msra.mxu0 0.0
    %1380 = vmatprep.subr.mxu0 0.0
    %1381 = vmatpush1.xpose.msra.mxu0 0.0
    %1382 = vmatprep.subr.mxu0 0.0
    %1383 = vmatpush1.xpose.msra.mxu0 0.0
    %1384 = vmatprep.subr.mxu0 0.0
    %1385 = vmatpush1.xpose.msra.mxu0 0.0
    %1386 = vmatprep.subr.mxu0 0.0
    %1387 = vmatpush1.xpose.msra.mxu0 0.0
    %1388 = vmatprep.mubr.f32.mxu0 0.0
    %1389 = vmatmul.mubr.f32.gmra.mrb[0].mxu0 %v1320
    %v1390 = vpop.f32.mrb[0].mxu0
    %v1391 = vadd.f32 %v154, %v1390
    %v1392 = vpop.f32.mrb[0].mxu0
    %1393 = vdwg.mxu0
    %1394 = vrot.lane.b32.xlu0 %v488, 96
    %v1395 = vpop.permute.xlu0 %1394
    %1396 = vrot.lane.b32.xlu0 %v485, 32
    %v1397 = vpop.permute.xlu0 %1396
    %v1398 = vsel %vm395, %v1395, 0
    %v1400 = vsel %vm395, %v1397, 0
    %1402 = vmatprep.subr.mxu0 0.0
    %1403 = vmatpush1.xpose.msra.mxu0 %v1400
    %1404 = vmatprep.subr.mxu0 0.0
    %1405 = vmatpush1.xpose.msra.mxu0 0.0
    %1406 = vmatprep.subr.mxu0 0.0
    %1407 = vmatpush1.xpose.msra.mxu0 0.0
    %1408 = vmatprep.subr.mxu0 0.0
    %1409 = vmatpush1.xpose.msra.mxu0 0.0
    %1410 = vmatprep.subr.mxu0 0.0
    %1411 = vmatpush1.xpose.msra.mxu0 0.0
    %1412 = vmatprep.subr.mxu0 0.0
    %1413 = vmatpush1.xpose.msra.mxu0 0.0
    %1414 = vmatprep.subr.mxu0 0.0
    %1415 = vmatpush1.xpose.msra.mxu0 0.0
    %1416 = vmatprep.subr.mxu0 0.0
    %1417 = vmatpush1.xpose.msra.mxu0 0.0
    %1418 = vmatprep.subr.mxu0 0.0
    %1419 = vmatpush1.xpose.msra.mxu0 0.0
    %1420 = vmatprep.subr.mxu0 0.0
    %1421 = vmatpush1.xpose.msra.mxu0 0.0
    %1422 = vmatprep.subr.mxu0 0.0
    %1423 = vmatpush1.xpose.msra.mxu0 0.0
    %1424 = vmatprep.subr.mxu0 0.0
    %1425 = vmatpush1.xpose.msra.mxu0 0.0
    %1426 = vmatprep.subr.mxu0 0.0
    %1427 = vmatpush1.xpose.msra.mxu0 0.0
    %1428 = vmatprep.subr.mxu0 0.0
    %1429 = vmatpush1.xpose.msra.mxu0 0.0
    %1430 = vmatprep.subr.mxu0 0.0
    %1431 = vmatpush1.xpose.msra.mxu0 0.0
    %1432 = vmatprep.subr.mxu0 0.0
    %1433 = vmatpush1.xpose.msra.mxu0 0.0
    %1434 = vmatprep.subr.mxu0 0.0
    %1435 = vmatpush1.xpose.msra.mxu0 0.0
    %1436 = vmatprep.subr.mxu0 0.0
    %1437 = vmatpush1.xpose.msra.mxu0 0.0
    %1438 = vmatprep.subr.mxu0 0.0
    %1439 = vmatpush1.xpose.msra.mxu0 0.0
    %1440 = vmatprep.subr.mxu0 0.0
    %1441 = vmatpush1.xpose.msra.mxu0 0.0
    %1442 = vmatprep.subr.mxu0 0.0
    %1443 = vmatpush1.xpose.msra.mxu0 0.0
    %1444 = vmatprep.subr.mxu0 0.0
    %1445 = vmatpush1.xpose.msra.mxu0 0.0
    %1446 = vmatprep.subr.mxu0 0.0
    %1447 = vmatpush1.xpose.msra.mxu0 0.0
    %1448 = vmatprep.subr.mxu0 0.0
    %1449 = vmatpush1.xpose.msra.mxu0 0.0
    %1450 = vmatprep.subr.mxu0 0.0
    %1451 = vmatpush1.xpose.msra.mxu0 0.0
    %1452 = vmatprep.subr.mxu0 0.0
    %1453 = vmatpush1.xpose.msra.mxu0 0.0
    %1454 = vmatprep.subr.mxu0 0.0
    %1455 = vmatpush1.xpose.msra.mxu0 0.0
    %1456 = vmatprep.subr.mxu0 0.0
    %1457 = vmatpush1.xpose.msra.mxu0 0.0
    %1458 = vmatprep.subr.mxu0 0.0
    %1459 = vmatpush1.xpose.msra.mxu0 0.0
    %1460 = vmatprep.subr.mxu0 0.0
    %1461 = vmatpush1.xpose.msra.mxu0 0.0
    %1462 = vmatprep.subr.mxu0 0.0
    %1463 = vmatpush1.xpose.msra.mxu0 0.0
    %1464 = vmatprep.subr.mxu0 0.0
    %1465 = vmatpush1.xpose.msra.mxu0 0.0
    %1466 = vmatprep.mubr.f32.mxu0 0.0
    %1467 = vmatmul.mubr.f32.gmra.mrb[0].mxu0 %v1398
    %v1468 = vpop.f32.mrb[0].mxu0
    %v1469 = vadd.f32 %v155, %v1468
    %v1470 = vpop.f32.mrb[0].mxu0
    %1471 = vdwg.mxu0
    %v1472 = vsel %vm653, %v1391, -inf
    %1473 = vmax.xlane.f32.xlu0 %v1472
    %v1474 = vpop.xlane.xlu0 %1473
    %v1475 = vsel %vm653, %v1469, -inf
    %1476 = vmax.xlane.f32.xlu0 %v1475
    %v1477 = vpop.xlane.xlu0 %1476
    %v1478 = vsub.f32 %v1391, %v1474
    %v1479 = vsub.f32 %v1469, %v1477
    %v1480 = vmul.f32 %v1478, 1.442695
    %v1481 = vpow.pop %v1480
    %v1482 = vmul.f32 %v1479, 1.442695
    %v1483 = vpow.pop %v1482
    %v1484 = vsel %vm653, %v1481, 0.0
    %1485 = vadd.xlane.f32.xlu0 %v1484
    %v1486 = vpop.xlane.xlu0 %1485
    %v1487 = vsel %vm653, %v1483, 0.0
    %1488 = vadd.xlane.f32.xlu0 %v1487
    %v1489 = vpop.xlane.xlu0 %1488
    %1490 = vrot.lane.b32.xlu0 %v484, 96
    %v1491 = vpop.permute.xlu0 %1490
    %v1494 = vsel %vm653, %v1481, 0
    %1496 = vmatprep.subr.mxu0 0.0
    %1497 = vmatpush1.msra.mxu0 %v1491
    %1498 = vmatprep.subr.mxu0 0.0
    %1499 = vmatpush1.msra.mxu0 0.0
    %1500 = vmatprep.subr.mxu0 0.0
    %1501 = vmatpush1.msra.mxu0 0.0
    %1502 = vmatprep.subr.mxu0 0.0
    %1503 = vmatpush1.msra.mxu0 0.0
    %1504 = vmatprep.subr.mxu0 0.0
    %1505 = vmatpush1.msra.mxu0 0.0
    %1506 = vmatprep.subr.mxu0 0.0
    %1507 = vmatpush1.msra.mxu0 0.0
    %1508 = vmatprep.subr.mxu0 0.0
    %1509 = vmatpush1.msra.mxu0 0.0
    %1510 = vmatprep.subr.mxu0 0.0
    %1511 = vmatpush1.msra.mxu0 0.0
    %1512 = vmatprep.subr.mxu0 0.0
    %1513 = vmatpush1.msra.mxu0 0.0
    %1514 = vmatprep.subr.mxu0 0.0
    %1515 = vmatpush1.msra.mxu0 0.0
    %1516 = vmatprep.subr.mxu0 0.0
    %1517 = vmatpush1.msra.mxu0 0.0
    %1518 = vmatprep.subr.mxu0 0.0
    %1519 = vmatpush1.msra.mxu0 0.0
    %1520 = vmatprep.subr.mxu0 0.0
    %1521 = vmatpush1.msra.mxu0 0.0
    %1522 = vmatprep.subr.mxu0 0.0
    %1523 = vmatpush1.msra.mxu0 0.0
    %1524 = vmatprep.subr.mxu0 0.0
    %1525 = vmatpush1.msra.mxu0 0.0
    %1526 = vmatprep.subr.mxu0 0.0
    %1527 = vmatpush1.msra.mxu0 0.0
    %1528 = vmatprep.subr.mxu0 0.0
    %1529 = vmatpush1.msra.mxu0 0.0
    %1530 = vmatprep.subr.mxu0 0.0
    %1531 = vmatpush1.msra.mxu0 0.0
    %1532 = vmatprep.subr.mxu0 0.0
    %1533 = vmatpush1.msra.mxu0 0.0
    %1534 = vmatprep.subr.mxu0 0.0
    %1535 = vmatpush1.msra.mxu0 0.0
    %1536 = vmatprep.subr.mxu0 0.0
    %1537 = vmatpush1.msra.mxu0 0.0
    %1538 = vmatprep.subr.mxu0 0.0
    %1539 = vmatpush1.msra.mxu0 0.0
    %1540 = vmatprep.subr.mxu0 0.0
    %1541 = vmatpush1.msra.mxu0 0.0
    %1542 = vmatprep.subr.mxu0 0.0
    %1543 = vmatpush1.msra.mxu0 0.0
    %1544 = vmatprep.subr.mxu0 0.0
    %1545 = vmatpush1.msra.mxu0 0.0
    %1546 = vmatprep.subr.mxu0 0.0
    %1547 = vmatpush1.msra.mxu0 0.0
    %1548 = vmatprep.subr.mxu0 0.0
    %1549 = vmatpush1.msra.mxu0 0.0
    %1550 = vmatprep.subr.mxu0 0.0
    %1551 = vmatpush1.msra.mxu0 0.0
    %1552 = vmatprep.subr.mxu0 0.0
    %1553 = vmatpush1.msra.mxu0 0.0
    %1554 = vmatprep.subr.mxu0 0.0
    %1555 = vmatpush1.msra.mxu0 0.0
    %1556 = vmatprep.subr.mxu0 0.0
    %1557 = vmatpush1.msra.mxu0 0.0
    %1558 = vmatprep.subr.mxu0 0.0
    %1559 = vmatpush1.msra.mxu0 0.0
    %1560 = vmatprep.mubr.f32.mxu0 0.0
    %1561 = vmatmul.mubr.f32.gmra.mrb[0].mxu0 %v1494
    %v1562 = vpop.f32.mrb[0].mxu0
    %v1563 = vadd.f32 0.0, %v1562
    %v1564 = vpop.f32.mrb[0].mxu0
    %1565 = vdwg.mxu0
    %1566 = vrot.lane.b32.xlu0 %v486, 96
    %v1567 = vpop.permute.xlu0 %1566
    %v1570 = vsel %vm653, %v1483, 0
    %1572 = vmatprep.subr.mxu0 0.0
    %1573 = vmatpush1.msra.mxu0 %v1567
    %1574 = vmatprep.subr.mxu0 0.0
    %1575 = vmatpush1.msra.mxu0 0.0
    %1576 = vmatprep.subr.mxu0 0.0
    %1577 = vmatpush1.msra.mxu0 0.0
    %1578 = vmatprep.subr.mxu0 0.0
    %1579 = vmatpush1.msra.mxu0 0.0
    %1580 = vmatprep.subr.mxu0 0.0
    %1581 = vmatpush1.msra.mxu0 0.0
    %1582 = vmatprep.subr.mxu0 0.0
    %1583 = vmatpush1.msra.mxu0 0.0
    %1584 = vmatprep.subr.mxu0 0.0
    %1585 = vmatpush1.msra.mxu0 0.0
    %1586 = vmatprep.subr.mxu0 0.0
    %1587 = vmatpush1.msra.mxu0 0.0
    %1588 = vmatprep.subr.mxu0 0.0
    %1589 = vmatpush1.msra.mxu0 0.0
    %1590 = vmatprep.subr.mxu0 0.0
    %1591 = vmatpush1.msra.mxu0 0.0
    %1592 = vmatprep.subr.mxu0 0.0
    %1593 = vmatpush1.msra.mxu0 0.0
    %1594 = vmatprep.subr.mxu0 0.0
    %1595 = vmatpush1.msra.mxu0 0.0
    %1596 = vmatprep.subr.mxu0 0.0
    %1597 = vmatpush1.msra.mxu0 0.0
    %1598 = vmatprep.subr.mxu0 0.0
    %1599 = vmatpush1.msra.mxu0 0.0
    %1600 = vmatprep.subr.mxu0 0.0
    %1601 = vmatpush1.msra.mxu0 0.0
    %1602 = vmatprep.subr.mxu0 0.0
    %1603 = vmatpush1.msra.mxu0 0.0
    %1604 = vmatprep.subr.mxu0 0.0
    %1605 = vmatpush1.msra.mxu0 0.0
    %1606 = vmatprep.subr.mxu0 0.0
    %1607 = vmatpush1.msra.mxu0 0.0
    %1608 = vmatprep.subr.mxu0 0.0
    %1609 = vmatpush1.msra.mxu0 0.0
    %1610 = vmatprep.subr.mxu0 0.0
    %1611 = vmatpush1.msra.mxu0 0.0
    %1612 = vmatprep.subr.mxu0 0.0
    %1613 = vmatpush1.msra.mxu0 0.0
    %1614 = vmatprep.subr.mxu0 0.0
    %1615 = vmatpush1.msra.mxu0 0.0
    %1616 = vmatprep.subr.mxu0 0.0
    %1617 = vmatpush1.msra.mxu0 0.0
    %1618 = vmatprep.subr.mxu0 0.0
    %1619 = vmatpush1.msra.mxu0 0.0
    %1620 = vmatprep.subr.mxu0 0.0
    %1621 = vmatpush1.msra.mxu0 0.0
    %1622 = vmatprep.subr.mxu0 0.0
    %1623 = vmatpush1.msra.mxu0 0.0
    %1624 = vmatprep.subr.mxu0 0.0
    %1625 = vmatpush1.msra.mxu0 0.0
    %1626 = vmatprep.subr.mxu0 0.0
    %1627 = vmatpush1.msra.mxu0 0.0
    %1628 = vmatprep.subr.mxu0 0.0
    %1629 = vmatpush1.msra.mxu0 0.0
    %1630 = vmatprep.subr.mxu0 0.0
    %1631 = vmatpush1.msra.mxu0 0.0
    %1632 = vmatprep.subr.mxu0 0.0
    %1633 = vmatpush1.msra.mxu0 0.0
    %1634 = vmatprep.subr.mxu0 0.0
    %1635 = vmatpush1.msra.mxu0 0.0
    %1636 = vmatprep.mubr.f32.mxu0 0.0
    %1637 = vmatmul.mubr.f32.gmra.mrb[0].mxu0 %v1570
    %v1638 = vpop.f32.mrb[0].mxu0
    %v1639 = vadd.f32 0.0, %v1638
    %v1640 = vpop.f32.mrb[0].mxu0
    %1641 = vdwg.mxu0
    %v1642 = vrcp.pop %v1486
    %v1643 = vrcp.pop %v1489
    %v1644 = vmul.f32 %v1563, %v1642
    %v1645 = vmul.f32 %v1639, %v1643
    %v1647 = vsel %vm395, %v1644, 0
    %v1650 = vsel %vm395, %v1645, 0
    %1652 = vmatprep.subr.mxu0 0.0
    %1653 = vmatpush1.msra.mxu0 %v493
    %1654 = vmatprep.subr.mxu0 0.0
    %1655 = vmatpush1.msra.mxu0 %v494
    %1656 = vmatprep.subr.mxu0 0.0
    %1657 = vmatpush1.msra.mxu0 0.0
    %1658 = vmatprep.subr.mxu0 0.0
    %1659 = vmatpush1.msra.mxu0 0.0
    %1660 = vmatprep.subr.mxu0 0.0
    %1661 = vmatpush1.msra.mxu0 0.0
    %1662 = vmatprep.subr.mxu0 0.0
    %1663 = vmatpush1.msra.mxu0 0.0
    %1664 = vmatprep.subr.mxu0 0.0
    %1665 = vmatpush1.msra.mxu0 0.0
    %1666 = vmatprep.subr.mxu0 0.0
    %1667 = vmatpush1.msra.mxu0 0.0
    %1668 = vmatprep.subr.mxu0 0.0
    %1669 = vmatpush1.msra.mxu0 0.0
    %1670 = vmatprep.subr.mxu0 0.0
    %1671 = vmatpush1.msra.mxu0 0.0
    %1672 = vmatprep.subr.mxu0 0.0
    %1673 = vmatpush1.msra.mxu0 0.0
    %1674 = vmatprep.subr.mxu0 0.0
    %1675 = vmatpush1.msra.mxu0 0.0
    %1676 = vmatprep.subr.mxu0 0.0
    %1677 = vmatpush1.msra.mxu0 0.0
    %1678 = vmatprep.subr.mxu0 0.0
    %1679 = vmatpush1.msra.mxu0 0.0
    %1680 = vmatprep.subr.mxu0 0.0
    %1681 = vmatpush1.msra.mxu0 0.0
    %1682 = vmatprep.subr.mxu0 0.0
    %1683 = vmatpush1.msra.mxu0 0.0
    %1684 = vmatprep.subr.mxu0 0.0
    %1685 = vmatpush1.msra.mxu0 0.0
    %1686 = vmatprep.subr.mxu0 0.0
    %1687 = vmatpush1.msra.mxu0 0.0
    %1688 = vmatprep.subr.mxu0 0.0
    %1689 = vmatpush1.msra.mxu0 0.0
    %1690 = vmatprep.subr.mxu0 0.0
    %1691 = vmatpush1.msra.mxu0 0.0
    %1692 = vmatprep.subr.mxu0 0.0
    %1693 = vmatpush1.msra.mxu0 0.0
    %1694 = vmatprep.subr.mxu0 0.0
    %1695 = vmatpush1.msra.mxu0 0.0
    %1696 = vmatprep.subr.mxu0 0.0
    %1697 = vmatpush1.msra.mxu0 0.0
    %1698 = vmatprep.subr.mxu0 0.0
    %1699 = vmatpush1.msra.mxu0 0.0
    %1700 = vmatprep.subr.mxu0 0.0
    %1701 = vmatpush1.msra.mxu0 0.0
    %1702 = vmatprep.subr.mxu0 0.0
    %1703 = vmatpush1.msra.mxu0 0.0
    %1704 = vmatprep.subr.mxu0 0.0
    %1705 = vmatpush1.msra.mxu0 0.0
    %1706 = vmatprep.subr.mxu0 0.0
    %1707 = vmatpush1.msra.mxu0 0.0
    %1708 = vmatprep.subr.mxu0 0.0
    %1709 = vmatpush1.msra.mxu0 0.0
    %1710 = vmatprep.subr.mxu0 0.0
    %1711 = vmatpush1.msra.mxu0 0.0
    %1712 = vmatprep.subr.mxu0 0.0
    %1713 = vmatpush1.msra.mxu0 0.0
    %1714 = vmatprep.subr.mxu0 0.0
    %1715 = vmatpush1.msra.mxu0 0.0
    %1716 = vmatprep.mubr.f32.mxu0 0.0
    %1717 = vmatmul.mubr.f32.gmra.mrb[0].mxu0 %v1647
    %v1718 = vpop.f32.mrb[0].mxu0
    %v1719 = vadd.f32 0.0, %v1718
    %v1720 = vpop.f32.mrb[0].mxu0
    %1721 = vmatprep.mubr.f32.mxu0 0.0
    %1722 = vmatmul.mubr.f32.gmra.mrb[0].mxu0 %v1650
    %v1723 = vpop.f32.mrb[0].mxu0
    %v1724 = vadd.f32 0.0, %v1723
    %v1725 = vpop.f32.mrb[0].mxu0
    %1726 = vdwg.mxu0
    %v1727 = vadd.f32 %v1308, %v1719
    %v1728 = vadd.f32 %v1313, %v1724
    %1729 = vrot.lane.b32.xlu0 %v487, 80
    %v1730 = vpop.permute.xlu0 %1729
    %1731 = vrot.lane.b32.xlu0 %v483, 16
    %v1732 = vpop.permute.xlu0 %1731
    %v1733 = vsel %vm395, %v1730, 0
    %v1735 = vsel %vm395, %v1732, 0
    %1737 = vmatprep.subr.mxu0 0.0
    %1738 = vmatpush1.xpose.msra.mxu0 %v1735
    %1739 = vmatprep.subr.mxu0 0.0
    %1740 = vmatpush1.xpose.msra.mxu0 0.0
    %1741 = vmatprep.subr.mxu0 0.0
    %1742 = vmatpush1.xpose.msra.mxu0 0.0
    %1743 = vmatprep.subr.mxu0 0.0
    %1744 = vmatpush1.xpose.msra.mxu0 0.0
    %1745 = vmatprep.subr.mxu0 0.0
    %1746 = vmatpush1.xpose.msra.mxu0 0.0
    %1747 = vmatprep.subr.mxu0 0.0
    %1748 = vmatpush1.xpose.msra.mxu0 0.0
    %1749 = vmatprep.subr.mxu0 0.0
    %1750 = vmatpush1.xpose.msra.mxu0 0.0
    %1751 = vmatprep.subr.mxu0 0.0
    %1752 = vmatpush1.xpose.msra.mxu0 0.0
    %1753 = vmatprep.subr.mxu0 0.0
    %1754 = vmatpush1.xpose.msra.mxu0 0.0
    %1755 = vmatprep.subr.mxu0 0.0
    %1756 = vmatpush1.xpose.msra.mxu0 0.0
    %1757 = vmatprep.subr.mxu0 0.0
    %1758 = vmatpush1.xpose.msra.mxu0 0.0
    %1759 = vmatprep.subr.mxu0 0.0
    %1760 = vmatpush1.xpose.msra.mxu0 0.0
    %1761 = vmatprep.subr.mxu0 0.0
    %1762 = vmatpush1.xpose.msra.mxu0 0.0
    %1763 = vmatprep.subr.mxu0 0.0
    %1764 = vmatpush1.xpose.msra.mxu0 0.0
    %1765 = vmatprep.subr.mxu0 0.0
    %1766 = vmatpush1.xpose.msra.mxu0 0.0
    %1767 = vmatprep.subr.mxu0 0.0
    %1768 = vmatpush1.xpose.msra.mxu0 0.0
    %1769 = vmatprep.subr.mxu0 0.0
    %1770 = vmatpush1.xpose.msra.mxu0 0.0
    %1771 = vmatprep.subr.mxu0 0.0
    %1772 = vmatpush1.xpose.msra.mxu0 0.0
    %1773 = vmatprep.subr.mxu0 0.0
    %1774 = vmatpush1.xpose.msra.mxu0 0.0
    %1775 = vmatprep.subr.mxu0 0.0
    %1776 = vmatpush1.xpose.msra.mxu0 0.0
    %1777 = vmatprep.subr.mxu0 0.0
    %1778 = vmatpush1.xpose.msra.mxu0 0.0
    %1779 = vmatprep.subr.mxu0 0.0
    %1780 = vmatpush1.xpose.msra.mxu0 0.0
    %1781 = vmatprep.subr.mxu0 0.0
    %1782 = vmatpush1.xpose.msra.mxu0 0.0
    %1783 = vmatprep.subr.mxu0 0.0
    %1784 = vmatpush1.xpose.msra.mxu0 0.0
    %1785 = vmatprep.subr.mxu0 0.0
    %1786 = vmatpush1.xpose.msra.mxu0 0.0
    %1787 = vmatprep.subr.mxu0 0.0
    %1788 = vmatpush1.xpose.msra.mxu0 0.0
    %1789 = vmatprep.subr.mxu0 0.0
    %1790 = vmatpush1.xpose.msra.mxu0 0.0
    %1791 = vmatprep.subr.mxu0 0.0
    %1792 = vmatpush1.xpose.msra.mxu0 0.0
    %1793 = vmatprep.subr.mxu0 0.0
    %1794 = vmatpush1.xpose.msra.mxu0 0.0
    %1795 = vmatprep.subr.mxu0 0.0
    %1796 = vmatpush1.xpose.msra.mxu0 0.0
    %1797 = vmatprep.subr.mxu0 0.0
    %1798 = vmatpush1.xpose.msra.mxu0 0.0
    %1799 = vmatprep.subr.mxu0 0.0
    %1800 = vmatpush1.xpose.msra.mxu0 0.0
    %1801 = vmatprep.mubr.f32.mxu0 0.0
    %1802 = vmatmul.mubr.f32.gmra.mrb[0].mxu0 %v1733
    %v1803 = vpop.f32.mrb[0].mxu0
    %v1804 = vadd.f32 %v154, %v1803
    %v1805 = vpop.f32.mrb[0].mxu0
    %1806 = vdwg.mxu0
    %1807 = vrot.lane.b32.xlu0 %v488, 80
    %v1808 = vpop.permute.xlu0 %1807
    %1809 = vrot.lane.b32.xlu0 %v485, 16
    %v1810 = vpop.permute.xlu0 %1809
    %v1811 = vsel %vm395, %v1808, 0
    %v1813 = vsel %vm395, %v1810, 0
    %1815 = vmatprep.subr.mxu0 0.0
    %1816 = vmatpush1.xpose.msra.mxu0 %v1813
    %1817 = vmatprep.subr.mxu0 0.0
    %1818 = vmatpush1.xpose.msra.mxu0 0.0
    %1819 = vmatprep.subr.mxu0 0.0
    %1820 = vmatpush1.xpose.msra.mxu0 0.0
    %1821 = vmatprep.subr.mxu0 0.0
    %1822 = vmatpush1.xpose.msra.mxu0 0.0
    %1823 = vmatprep.subr.mxu0 0.0
    %1824 = vmatpush1.xpose.msra.mxu0 0.0
    %1825 = vmatprep.subr.mxu0 0.0
    %1826 = vmatpush1.xpose.msra.mxu0 0.0
    %1827 = vmatprep.subr.mxu0 0.0
    %1828 = vmatpush1.xpose.msra.mxu0 0.0
    %1829 = vmatprep.subr.mxu0 0.0
    %1830 = vmatpush1.xpose.msra.mxu0 0.0
    %1831 = vmatprep.subr.mxu0 0.0
    %1832 = vmatpush1.xpose.msra.mxu0 0.0
    %1833 = vmatprep.subr.mxu0 0.0
    %1834 = vmatpush1.xpose.msra.mxu0 0.0
    %1835 = vmatprep.subr.mxu0 0.0
    %1836 = vmatpush1.xpose.msra.mxu0 0.0
    %1837 = vmatprep.subr.mxu0 0.0
    %1838 = vmatpush1.xpose.msra.mxu0 0.0
    %1839 = vmatprep.subr.mxu0 0.0
    %1840 = vmatpush1.xpose.msra.mxu0 0.0
    %1841 = vmatprep.subr.mxu0 0.0
    %1842 = vmatpush1.xpose.msra.mxu0 0.0
    %1843 = vmatprep.subr.mxu0 0.0
    %1844 = vmatpush1.xpose.msra.mxu0 0.0
    %1845 = vmatprep.subr.mxu0 0.0
    %1846 = vmatpush1.xpose.msra.mxu0 0.0
    %1847 = vmatprep.subr.mxu0 0.0
    %1848 = vmatpush1.xpose.msra.mxu0 0.0
    %1849 = vmatprep.subr.mxu0 0.0
    %1850 = vmatpush1.xpose.msra.mxu0 0.0
    %1851 = vmatprep.subr.mxu0 0.0
    %1852 = vmatpush1.xpose.msra.mxu0 0.0
    %1853 = vmatprep.subr.mxu0 0.0
    %1854 = vmatpush1.xpose.msra.mxu0 0.0
    %1855 = vmatprep.subr.mxu0 0.0
    %1856 = vmatpush1.xpose.msra.mxu0 0.0
    %1857 = vmatprep.subr.mxu0 0.0
    %1858 = vmatpush1.xpose.msra.mxu0 0.0
    %1859 = vmatprep.subr.mxu0 0.0
    %1860 = vmatpush1.xpose.msra.mxu0 0.0
    %1861 = vmatprep.subr.mxu0 0.0
    %1862 = vmatpush1.xpose.msra.mxu0 0.0
    %1863 = vmatprep.subr.mxu0 0.0
    %1864 = vmatpush1.xpose.msra.mxu0 0.0
    %1865 = vmatprep.subr.mxu0 0.0
    %1866 = vmatpush1.xpose.msra.mxu0 0.0
    %1867 = vmatprep.subr.mxu0 0.0
    %1868 = vmatpush1.xpose.msra.mxu0 0.0
    %1869 = vmatprep.subr.mxu0 0.0
    %1870 = vmatpush1.xpose.msra.mxu0 0.0
    %1871 = vmatprep.subr.mxu0 0.0
    %1872 = vmatpush1.xpose.msra.mxu0 0.0
    %1873 = vmatprep.subr.mxu0 0.0
    %1874 = vmatpush1.xpose.msra.mxu0 0.0
    %1875 = vmatprep.subr.mxu0 0.0
    %1876 = vmatpush1.xpose.msra.mxu0 0.0
    %1877 = vmatprep.subr.mxu0 0.0
    %1878 = vmatpush1.xpose.msra.mxu0 0.0
    %1879 = vmatprep.mubr.f32.mxu0 0.0
    %1880 = vmatmul.mubr.f32.gmra.mrb[0].mxu0 %v1811
    %v1881 = vpop.f32.mrb[0].mxu0
    %v1882 = vadd.f32 %v155, %v1881
    %v1883 = vpop.f32.mrb[0].mxu0
    %1884 = vdwg.mxu0
    %v1885 = vsel %vm653, %v1804, -inf
    %1886 = vmax.xlane.f32.xlu0 %v1885
    %v1887 = vpop.xlane.xlu0 %1886
    %v1888 = vsel %vm653, %v1882, -inf
    %1889 = vmax.xlane.f32.xlu0 %v1888
    %v1890 = vpop.xlane.xlu0 %1889
    %v1891 = vsub.f32 %v1804, %v1887
    %v1892 = vsub.f32 %v1882, %v1890
    %v1893 = vmul.f32 %v1891, 1.442695
    %v1894 = vpow.pop %v1893
    %v1895 = vmul.f32 %v1892, 1.442695
    %v1896 = vpow.pop %v1895
    %v1897 = vsel %vm653, %v1894, 0.0
    %1898 = vadd.xlane.f32.xlu0 %v1897
    %v1899 = vpop.xlane.xlu0 %1898
    %v1900 = vsel %vm653, %v1896, 0.0
    %1901 = vadd.xlane.f32.xlu0 %v1900
    %v1902 = vpop.xlane.xlu0 %1901
    %1903 = vrot.lane.b32.xlu0 %v484, 80
    %v1904 = vpop.permute.xlu0 %1903
    %v1907 = vsel %vm653, %v1894, 0
    %1909 = vmatprep.subr.mxu0 0.0
    %1910 = vmatpush1.msra.mxu0 %v1904
    %1911 = vmatprep.subr.mxu0 0.0
    %1912 = vmatpush1.msra.mxu0 0.0
    %1913 = vmatprep.subr.mxu0 0.0
    %1914 = vmatpush1.msra.mxu0 0.0
    %1915 = vmatprep.subr.mxu0 0.0
    %1916 = vmatpush1.msra.mxu0 0.0
    %1917 = vmatprep.subr.mxu0 0.0
    %1918 = vmatpush1.msra.mxu0 0.0
    %1919 = vmatprep.subr.mxu0 0.0
    %1920 = vmatpush1.msra.mxu0 0.0
    %1921 = vmatprep.subr.mxu0 0.0
    %1922 = vmatpush1.msra.mxu0 0.0
    %1923 = vmatprep.subr.mxu0 0.0
    %1924 = vmatpush1.msra.mxu0 0.0
    %1925 = vmatprep.subr.mxu0 0.0
    %1926 = vmatpush1.msra.mxu0 0.0
    %1927 = vmatprep.subr.mxu0 0.0
    %1928 = vmatpush1.msra.mxu0 0.0
    %1929 = vmatprep.subr.mxu0 0.0
    %1930 = vmatpush1.msra.mxu0 0.0
    %1931 = vmatprep.subr.mxu0 0.0
    %1932 = vmatpush1.msra.mxu0 0.0
    %1933 = vmatprep.subr.mxu0 0.0
    %1934 = vmatpush1.msra.mxu0 0.0
    %1935 = vmatprep.subr.mxu0 0.0
    %1936 = vmatpush1.msra.mxu0 0.0
    %1937 = vmatprep.subr.mxu0 0.0
    %1938 = vmatpush1.msra.mxu0 0.0
    %1939 = vmatprep.subr.mxu0 0.0
    %1940 = vmatpush1.msra.mxu0 0.0
    %1941 = vmatprep.subr.mxu0 0.0
    %1942 = vmatpush1.msra.mxu0 0.0
    %1943 = vmatprep.subr.mxu0 0.0
    %1944 = vmatpush1.msra.mxu0 0.0
    %1945 = vmatprep.subr.mxu0 0.0
    %1946 = vmatpush1.msra.mxu0 0.0
    %1947 = vmatprep.subr.mxu0 0.0
    %1948 = vmatpush1.msra.mxu0 0.0
    %1949 = vmatprep.subr.mxu0 0.0
    %1950 = vmatpush1.msra.mxu0 0.0
    %1951 = vmatprep.subr.mxu0 0.0
    %1952 = vmatpush1.msra.mxu0 0.0
    %1953 = vmatprep.subr.mxu0 0.0
    %1954 = vmatpush1.msra.mxu0 0.0
    %1955 = vmatprep.subr.mxu0 0.0
    %1956 = vmatpush1.msra.mxu0 0.0
    %1957 = vmatprep.subr.mxu0 0.0
    %1958 = vmatpush1.msra.mxu0 0.0
    %1959 = vmatprep.subr.mxu0 0.0
    %1960 = vmatpush1.msra.mxu0 0.0
    %1961 = vmatprep.subr.mxu0 0.0
    %1962 = vmatpush1.msra.mxu0 0.0
    %1963 = vmatprep.subr.mxu0 0.0
    %1964 = vmatpush1.msra.mxu0 0.0
    %1965 = vmatprep.subr.mxu0 0.0
    %1966 = vmatpush1.msra.mxu0 0.0
    %1967 = vmatprep.subr.mxu0 0.0
    %1968 = vmatpush1.msra.mxu0 0.0
    %1969 = vmatprep.subr.mxu0 0.0
    %1970 = vmatpush1.msra.mxu0 0.0
    %1971 = vmatprep.subr.mxu0 0.0
    %1972 = vmatpush1.msra.mxu0 0.0
    %1973 = vmatprep.mubr.f32.mxu0 0.0
    %1974 = vmatmul.mubr.f32.gmra.mrb[0].mxu0 %v1907
    %v1975 = vpop.f32.mrb[0].mxu0
    %v1976 = vadd.f32 0.0, %v1975
    %v1977 = vpop.f32.mrb[0].mxu0
    %1978 = vdwg.mxu0
    %1979 = vrot.lane.b32.xlu0 %v486, 80
    %v1980 = vpop.permute.xlu0 %1979
    %v1983 = vsel %vm653, %v1896, 0
    %1985 = vmatprep.subr.mxu0 0.0
    %1986 = vmatpush1.msra.mxu0 %v1980
    %1987 = vmatprep.subr.mxu0 0.0
    %1988 = vmatpush1.msra.mxu0 0.0
    %1989 = vmatprep.subr.mxu0 0.0
    %1990 = vmatpush1.msra.mxu0 0.0
    %1991 = vmatprep.subr.mxu0 0.0
    %1992 = vmatpush1.msra.mxu0 0.0
    %1993 = vmatprep.subr.mxu0 0.0
    %1994 = vmatpush1.msra.mxu0 0.0
    %1995 = vmatprep.subr.mxu0 0.0
    %1996 = vmatpush1.msra.mxu0 0.0
    %1997 = vmatprep.subr.mxu0 0.0
    %1998 = vmatpush1.msra.mxu0 0.0
    %1999 = vmatprep.subr.mxu0 0.0
    %2000 = vmatpush1.msra.mxu0 0.0
    %2001 = vmatprep.subr.mxu0 0.0
    %2002 = vmatpush1.msra.mxu0 0.0
    %2003 = vmatprep.subr.mxu0 0.0
    %2004 = vmatpush1.msra.mxu0 0.0
    %2005 = vmatprep.subr.mxu0 0.0
    %2006 = vmatpush1.msra.mxu0 0.0
    %2007 = vmatprep.subr.mxu0 0.0
    %2008 = vmatpush1.msra.mxu0 0.0
    %2009 = vmatprep.subr.mxu0 0.0
    %2010 = vmatpush1.msra.mxu0 0.0
    %2011 = vmatprep.subr.mxu0 0.0
    %2012 = vmatpush1.msra.mxu0 0.0
    %2013 = vmatprep.subr.mxu0 0.0
    %2014 = vmatpush1.msra.mxu0 0.0
    %2015 = vmatprep.subr.mxu0 0.0
    %2016 = vmatpush1.msra.mxu0 0.0
    %2017 = vmatprep.subr.mxu0 0.0
    %2018 = vmatpush1.msra.mxu0 0.0
    %2019 = vmatprep.subr.mxu0 0.0
    %2020 = vmatpush1.msra.mxu0 0.0
    %2021 = vmatprep.subr.mxu0 0.0
    %2022 = vmatpush1.msra.mxu0 0.0
    %2023 = vmatprep.subr.mxu0 0.0
    %2024 = vmatpush1.msra.mxu0 0.0
    %2025 = vmatprep.subr.mxu0 0.0
    %2026 = vmatpush1.msra.mxu0 0.0
    %2027 = vmatprep.subr.mxu0 0.0
    %2028 = vmatpush1.msra.mxu0 0.0
    %2029 = vmatprep.subr.mxu0 0.0
    %2030 = vmatpush1.msra.mxu0 0.0
    %2031 = vmatprep.subr.mxu0 0.0
    %2032 = vmatpush1.msra.mxu0 0.0
    %2033 = vmatprep.subr.mxu0 0.0
    %2034 = vmatpush1.msra.mxu0 0.0
    %2035 = vmatprep.subr.mxu0 0.0
    %2036 = vmatpush1.msra.mxu0 0.0
    %2037 = vmatprep.subr.mxu0 0.0
    %2038 = vmatpush1.msra.mxu0 0.0
    %2039 = vmatprep.subr.mxu0 0.0
    %2040 = vmatpush1.msra.mxu0 0.0
    %2041 = vmatprep.subr.mxu0 0.0
    %2042 = vmatpush1.msra.mxu0 0.0
    %2043 = vmatprep.subr.mxu0 0.0
    %2044 = vmatpush1.msra.mxu0 0.0
    %2045 = vmatprep.subr.mxu0 0.0
    %2046 = vmatpush1.msra.mxu0 0.0
    %2047 = vmatprep.subr.mxu0 0.0
    %2048 = vmatpush1.msra.mxu0 0.0
    %2049 = vmatprep.mubr.f32.mxu0 0.0
    %2050 = vmatmul.mubr.f32.gmra.mrb[0].mxu0 %v1983
    %v2051 = vpop.f32.mrb[0].mxu0
    %v2052 = vadd.f32 0.0, %v2051
    %v2053 = vpop.f32.mrb[0].mxu0
    %2054 = vdwg.mxu0
    %v2055 = vrcp.pop %v1899
    %v2056 = vrcp.pop %v1902
    %v2057 = vmul.f32 %v1976, %v2055
    %v2058 = vmul.f32 %v2052, %v2056
    %v2060 = vsel %vm395, %v2057, 0
    %v2063 = vsel %vm395, %v2058, 0
    %2065 = vmatprep.subr.mxu0 0.0
    %2066 = vmatpush1.msra.mxu0 %v495
    %2067 = vmatprep.subr.mxu0 0.0
    %2068 = vmatpush1.msra.mxu0 %v496
    %2069 = vmatprep.subr.mxu0 0.0
    %2070 = vmatpush1.msra.mxu0 0.0
    %2071 = vmatprep.subr.mxu0 0.0
    %2072 = vmatpush1.msra.mxu0 0.0
    %2073 = vmatprep.subr.mxu0 0.0
    %2074 = vmatpush1.msra.mxu0 0.0
    %2075 = vmatprep.subr.mxu0 0.0
    %2076 = vmatpush1.msra.mxu0 0.0
    %2077 = vmatprep.subr.mxu0 0.0
    %2078 = vmatpush1.msra.mxu0 0.0
    %2079 = vmatprep.subr.mxu0 0.0
    %2080 = vmatpush1.msra.mxu0 0.0
    %2081 = vmatprep.subr.mxu0 0.0
    %2082 = vmatpush1.msra.mxu0 0.0
    %2083 = vmatprep.subr.mxu0 0.0
    %2084 = vmatpush1.msra.mxu0 0.0
    %2085 = vmatprep.subr.mxu0 0.0
    %2086 = vmatpush1.msra.mxu0 0.0
    %2087 = vmatprep.subr.mxu0 0.0
    %2088 = vmatpush1.msra.mxu0 0.0
    %2089 = vmatprep.subr.mxu0 0.0
    %2090 = vmatpush1.msra.mxu0 0.0
    %2091 = vmatprep.subr.mxu0 0.0
    %2092 = vmatpush1.msra.mxu0 0.0
    %2093 = vmatprep.subr.mxu0 0.0
    %2094 = vmatpush1.msra.mxu0 0.0
    %2095 = vmatprep.subr.mxu0 0.0
    %2096 = vmatpush1.msra.mxu0 0.0
    %2097 = vmatprep.subr.mxu0 0.0
    %2098 = vmatpush1.msra.mxu0 0.0
    %2099 = vmatprep.subr.mxu0 0.0
    %2100 = vmatpush1.msra.mxu0 0.0
    %2101 = vmatprep.subr.mxu0 0.0
    %2102 = vmatpush1.msra.mxu0 0.0
    %2103 = vmatprep.subr.mxu0 0.0
    %2104 = vmatpush1.msra.mxu0 0.0
    %2105 = vmatprep.subr.mxu0 0.0
    %2106 = vmatpush1.msra.mxu0 0.0
    %2107 = vmatprep.subr.mxu0 0.0
    %2108 = vmatpush1.msra.mxu0 0.0
    %2109 = vmatprep.subr.mxu0 0.0
    %2110 = vmatpush1.msra.mxu0 0.0
    %2111 = vmatprep.subr.mxu0 0.0
    %2112 = vmatpush1.msra.mxu0 0.0
    %2113 = vmatprep.subr.mxu0 0.0
    %2114 = vmatpush1.msra.mxu0 0.0
    %2115 = vmatprep.subr.mxu0 0.0
    %2116 = vmatpush1.msra.mxu0 0.0
    %2117 = vmatprep.subr.mxu0 0.0
    %2118 = vmatpush1.msra.mxu0 0.0
    %2119 = vmatprep.subr.mxu0 0.0
    %2120 = vmatpush1.msra.mxu0 0.0
    %2121 = vmatprep.subr.mxu0 0.0
    %2122 = vmatpush1.msra.mxu0 0.0
    %2123 = vmatprep.subr.mxu0 0.0
    %2124 = vmatpush1.msra.mxu0 0.0
    %2125 = vmatprep.subr.mxu0 0.0
    %2126 = vmatpush1.msra.mxu0 0.0
    %2127 = vmatprep.subr.mxu0 0.0
    %2128 = vmatpush1.msra.mxu0 0.0
    %2129 = vmatprep.mubr.f32.mxu0 0.0
    %2130 = vmatmul.mubr.f32.gmra.mrb[0].mxu0 %v2060
    %v2131 = vpop.f32.mrb[0].mxu0
    %v2132 = vadd.f32 0.0, %v2131
    %v2133 = vpop.f32.mrb[0].mxu0
    %2134 = vmatprep.mubr.f32.mxu0 0.0
    %2135 = vmatmul.mubr.f32.gmra.mrb[0].mxu0 %v2063
    %v2136 = vpop.f32.mrb[0].mxu0
    %v2137 = vadd.f32 0.0, %v2136
    %v2138 = vpop.f32.mrb[0].mxu0
    %2139 = vdwg.mxu0
    %v2140 = vadd.f32 %v1727, %v2132
    %v2141 = vadd.f32 %v1728, %v2137
    %v2142 = vadd.f32 %v152, %v2140
    %v2143 = vadd.f32 %v153, %v2141
    %v2144 = vld [vmem:[#allocation7] sm:$0x1]
    %v2146 = vlaneseq
    %v2147 = vshrl.u32 %v2146, 7
    %v2148 = vsub.s32 0, %v2147
    %v2149 = vrot.slane %v2144, %v2148
    %v2151 = vadd.f32 %v2142, %v2149
    %v2152 = vadd.f32 %v2143, %v2149
    %v2153 = vld [vmem:[%s9] sm:$0x3]
    %v2154 = vsel %vm157, %v2151, 0.0
    %2155 = vadd.xlane.f32.xlu0 %v2154
    %v2156 = vpop.xlane.xlu0 %2155
    %v2157 = vsel %vm157, %v2152, 0.0
    %2158 = vadd.xlane.f32.xlu0 %v2157
    %v2159 = vpop.xlane.xlu0 %2158
    %v2160 = vmul.f32 %v2156, %v164
    %v2161 = vmul.f32 %v2159, %v164
    %v2162 = vsub.f32 %v2151, %v2160
    %v2163 = vsub.f32 %v2152, %v2161
    %v2164 = vmul.f32 %v2162, %v2162
    %v2165 = vmul.f32 %v2163, %v2163
    %v2166 = vsel %vm157, %v2164, 0.0
    %2167 = vadd.xlane.f32.xlu0 %v2166
    %v2168 = vpop.xlane.xlu0 %2167
    %v2169 = vsel %vm157, %v2165, 0.0
    %2170 = vadd.xlane.f32.xlu0 %v2169
    %v2171 = vpop.xlane.xlu0 %2170
    %v2172 = vmul.f32 %v2168, %v164
    %v2173 = vmul.f32 %v2171, %v164
    %v2174 = vadd.f32 %v2172, 1e-05
    %v2175 = vadd.f32 %v2173, 1e-05
    %v2176 = vrsqrt.pop %v2174
    %v2177 = vrsqrt.pop %v2175
    %v2178 = vmul.f32 %v2162, %v2176
    %v2179 = vmul.f32 %v2163, %v2177
    %v2180 = vlaneseq
    %v2181 = vshrl.u32 %v2180, 7
    %v2182 = vsub.s32 0, %v2181
    %v2183 = vrot.slane %v2153, %v2182
    %v2184 = vmul.f32 %v2178, %v2183
    %v2185 = vmul.f32 %v2179, %v2183
    %v2186 = vlaneseq
    %v2187 = vshrl.u32 %v2186, 7
    %v2188 = vsub.s32 1, %v2187
    %v2189 = vrot.slane %v2153, %v2188
    %v2190 = vadd.f32 %v2184, %v2189
    %v2191 = vadd.f32 %v2185, %v2189
    %v2192 = vld [vmem:[#allocation8] sm:$0xff]
    %v2193 = vld [vmem:[#allocation8 + $0x8] sm:$0xff]
    %v2194 = vld [vmem:[#allocation8 + $0x10] sm:$0xff]
    %v2195 = vld [vmem:[#allocation8 + $0x18] sm:$0xff]
    %v2196 = vld [vmem:[#allocation8 + $0x20] sm:$0xff]
    %v2197 = vld [vmem:[#allocation8 + $0x28] sm:$0xff]
    %v2198 = vld [vmem:[#allocation8 + $0x30] sm:$0xff]
    %v2199 = vld [vmem:[#allocation8 + $0x38] sm:$0xff]
    %v2200 = vld [vmem:[#allocation10] sm:$0x1]
    %v2202 = vlaneseq
    %v2203 = vshrl.u32 %v2202, 7
    %v2204 = vsub.s32 0, %v2203
    %v2205 = vrot.slane %v2200, %v2204
    %v2208 = vsel %vm157, %v2190, 0
    %v2211 = vsel %vm157, %v2191, 0
    %2213 = vmatprep.subr.mxu0 0.0
    %2214 = vmatpush1.msra.mxu0 %v2192
    %2215 = vmatprep.subr.mxu0 0.0
    %2216 = vmatpush1.msra.mxu0 %v2193
    %2217 = vmatprep.subr.mxu0 0.0
    %2218 = vmatpush1.msra.mxu0 %v2194
    %2219 = vmatprep.subr.mxu0 0.0
    %2220 = vmatpush1.msra.mxu0 %v2195
    %2221 = vmatprep.subr.mxu0 0.0
    %2222 = vmatpush1.msra.mxu0 %v2196
    %2223 = vmatprep.subr.mxu0 0.0
    %2224 = vmatpush1.msra.mxu0 %v2197
    %2225 = vmatprep.subr.mxu0 0.0
    %2226 = vmatpush1.msra.mxu0 %v2198
    %2227 = vmatprep.subr.mxu0 0.0
    %2228 = vmatpush1.msra.mxu0 %v2199
    %2229 = vmatprep.subr.mxu0 0.0
    %2230 = vmatpush1.msra.mxu0 0.0
    %2231 = vmatprep.subr.mxu0 0.0
    %2232 = vmatpush1.msra.mxu0 0.0
    %2233 = vmatprep.subr.mxu0 0.0
    %2234 = vmatpush1.msra.mxu0 0.0
    %2235 = vmatprep.subr.mxu0 0.0
    %2236 = vmatpush1.msra.mxu0 0.0
    %2237 = vmatprep.subr.mxu0 0.0
    %2238 = vmatpush1.msra.mxu0 0.0
    %2239 = vmatprep.subr.mxu0 0.0
    %2240 = vmatpush1.msra.mxu0 0.0
    %2241 = vmatprep.subr.mxu0 0.0
    %2242 = vmatpush1.msra.mxu0 0.0
    %2243 = vmatprep.subr.mxu0 0.0
    %2244 = vmatpush1.msra.mxu0 0.0
    %2245 = vmatprep.subr.mxu0 0.0
    %2246 = vmatpush1.msra.mxu0 0.0
    %2247 = vmatprep.subr.mxu0 0.0
    %2248 = vmatpush1.msra.mxu0 0.0
    %2249 = vmatprep.subr.mxu0 0.0
    %2250 = vmatpush1.msra.mxu0 0.0
    %2251 = vmatprep.subr.mxu0 0.0
    %2252 = vmatpush1.msra.mxu0 0.0
    %2253 = vmatprep.subr.mxu0 0.0
    %2254 = vmatpush1.msra.mxu0 0.0
    %2255 = vmatprep.subr.mxu0 0.0
    %2256 = vmatpush1.msra.mxu0 0.0
    %2257 = vmatprep.subr.mxu0 0.0
    %2258 = vmatpush1.msra.mxu0 0.0
    %2259 = vmatprep.subr.mxu0 0.0
    %2260 = vmatpush1.msra.mxu0 0.0
    %2261 = vmatprep.subr.mxu0 0.0
    %2262 = vmatpush1.msra.mxu0 0.0
    %2263 = vmatprep.subr.mxu0 0.0
    %2264 = vmatpush1.msra.mxu0 0.0
    %2265 = vmatprep.subr.mxu0 0.0
    %2266 = vmatpush1.msra.mxu0 0.0
    %2267 = vmatprep.subr.mxu0 0.0
    %2268 = vmatpush1.msra.mxu0 0.0
    %2269 = vmatprep.subr.mxu0 0.0
    %2270 = vmatpush1.msra.mxu0 0.0
    %2271 = vmatprep.subr.mxu0 0.0
    %2272 = vmatpush1.msra.mxu0 0.0
    %2273 = vmatprep.subr.mxu0 0.0
    %2274 = vmatpush1.msra.mxu0 0.0
    %2275 = vmatprep.subr.mxu0 0.0
    %2276 = vmatpush1.msra.mxu0 0.0
    %2277 = vmatprep.mubr.f32.mxu0 0.0
    %2278 = vmatmul.mubr.f32.gmra.mrb[0].mxu0 %v2208
    %v2279 = vpop.f32.mrb[0].mxu0
    %v2280 = vadd.f32 %v2205, %v2279
    %v2281 = vpop.f32.mrb[0].mxu0
    %2282 = vmatprep.mubr.f32.mxu0 0.0
    %2283 = vmatmul.mubr.f32.gmra.mrb[0].mxu0 %v2211
    %v2284 = vpop.f32.mrb[0].mxu0
    %v2285 = vadd.f32 %v2205, %v2284
    %v2286 = vpop.f32.mrb[0].mxu0
    %2287 = vdwg.mxu0
    %v2288 = vmul.f32 %v2280, %v2280
    %v2289 = vmul.f32 %v2285, %v2285
    %v2290 = vmul.f32 %v2280, %v2288
    %v2291 = vmul.f32 %v2285, %v2289
    %v2292 = vmul.f32 %v2290, 0.044715
    %v2293 = vmul.f32 %v2291, 0.044715
    %v2294 = vadd.f32 %v2280, %v2292
    %v2295 = vadd.f32 %v2285, %v2293
    %v2296 = vmul.f32 %v2294, 0.7978846
    %v2297 = vmul.f32 %v2295, 0.7978846
    %v2298 = vtanh.pop %v2296
    %v2299 = vtanh.pop %v2297
    %v2300 = vadd.f32 %v2298, 1.0
    %v2301 = vadd.f32 %v2299, 1.0
    %v2302 = vmul.f32 %v2300, 0.5
    %v2303 = vmul.f32 %v2301, 0.5
    %v2304 = vmul.f32 %v2280, %v2302
    %v2305 = vmul.f32 %v2285, %v2303
    %v2306 = vld [vmem:[%s12] sm:$0xff]
    %v2307 = vld [vmem:[%s12 + $0x8] sm:$0xff]
    %v2308 = vld [vmem:[%s12 + $0x10] sm:$0xff]
    %v2309 = vld [vmem:[%s12 + $0x18] sm:$0xff]
    %v2310 = vld [vmem:[%s12 + $0x20] sm:$0xff]
    %v2311 = vld [vmem:[%s12 + $0x28] sm:$0xff]
    %v2312 = vld [vmem:[%s12 + $0x30] sm:$0xff]
    %v2313 = vld [vmem:[%s12 + $0x38] sm:$0xff]
    %v2314 = vld [vmem:[%s12 + $0x40] sm:$0xff]
    %v2315 = vld [vmem:[%s12 + $0x48] sm:$0xff]
    %v2316 = vld [vmem:[%s12 + $0x50] sm:$0xff]
    %v2317 = vld [vmem:[%s12 + $0x58] sm:$0xff]
    %v2318 = vld [vmem:[%s12 + $0x60] sm:$0xff]
    %v2319 = vld [vmem:[%s12 + $0x68] sm:$0xff]
    %v2320 = vld [vmem:[%s12 + $0x70] sm:$0xff]
    %v2321 = vld [vmem:[%s12 + $0x78] sm:$0xff]
    %2322 = vmatprep.subr.mxu0 0.0
    %2323 = vmatpush1.msra.mxu0 %v2306
    %2324 = vmatprep.subr.mxu0 0.0
    %2325 = vmatpush1.msra.mxu0 %v2307
    %2326 = vmatprep.subr.mxu0 0.0
    %2327 = vmatpush1.msra.mxu0 %v2308
    %2328 = vmatprep.subr.mxu0 0.0
    %2329 = vmatpush1.msra.mxu0 %v2309
    %2330 = vmatprep.subr.mxu0 0.0
    %2331 = vmatpush1.msra.mxu0 %v2310
    %2332 = vmatprep.subr.mxu0 0.0
    %2333 = vmatpush1.msra.mxu0 %v2311
    %2334 = vmatprep.subr.mxu0 0.0
    %2335 = vmatpush1.msra.mxu0 %v2312
    %2336 = vmatprep.subr.mxu0 0.0
    %2337 = vmatpush1.msra.mxu0 %v2313
    %2338 = vmatprep.subr.mxu0 0.0
    %2339 = vmatpush1.msra.mxu0 %v2314
    %2340 = vmatprep.subr.mxu0 0.0
    %2341 = vmatpush1.msra.mxu0 %v2315
    %2342 = vmatprep.subr.mxu0 0.0
    %2343 = vmatpush1.msra.mxu0 %v2316
    %2344 = vmatprep.subr.mxu0 0.0
    %2345 = vmatpush1.msra.mxu0 %v2317
    %2346 = vmatprep.subr.mxu0 0.0
    %2347 = vmatpush1.msra.mxu0 %v2318
    %2348 = vmatprep.subr.mxu0 0.0
    %2349 = vmatpush1.msra.mxu0 %v2319
    %2350 = vmatprep.subr.mxu0 0.0
    %2351 = vmatpush1.msra.mxu0 %v2320
    %2352 = vmatprep.subr.mxu0 0.0
    %2353 = vmatpush1.msra.mxu0 %v2321
    %2354 = vmatprep.subr.mxu0 0.0
    %2355 = vmatpush1.msra.mxu0 0.0
    %2356 = vmatprep.subr.mxu0 0.0
    %2357 = vmatpush1.msra.mxu0 0.0
    %2358 = vmatprep.subr.mxu0 0.0
    %2359 = vmatpush1.msra.mxu0 0.0
    %2360 = vmatprep.subr.mxu0 0.0
    %2361 = vmatpush1.msra.mxu0 0.0
    %2362 = vmatprep.subr.mxu0 0.0
    %2363 = vmatpush1.msra.mxu0 0.0
    %2364 = vmatprep.subr.mxu0 0.0
    %2365 = vmatpush1.msra.mxu0 0.0
    %2366 = vmatprep.subr.mxu0 0.0
    %2367 = vmatpush1.msra.mxu0 0.0
    %2368 = vmatprep.subr.mxu0 0.0
    %2369 = vmatpush1.msra.mxu0 0.0
    %2370 = vmatprep.subr.mxu0 0.0
    %2371 = vmatpush1.msra.mxu0 0.0
    %2372 = vmatprep.subr.mxu0 0.0
    %2373 = vmatpush1.msra.mxu0 0.0
    %2374 = vmatprep.subr.mxu0 0.0
    %2375 = vmatpush1.msra.mxu0 0.0
    %2376 = vmatprep.subr.mxu0 0.0
    %2377 = vmatpush1.msra.mxu0 0.0
    %2378 = vmatprep.subr.mxu0 0.0
    %2379 = vmatpush1.msra.mxu0 0.0
    %2380 = vmatprep.subr.mxu0 0.0
    %2381 = vmatpush1.msra.mxu0 0.0
    %2382 = vmatprep.subr.mxu0 0.0
    %2383 = vmatpush1.msra.mxu0 0.0
    %2384 = vmatprep.subr.mxu0 0.0
    %2385 = vmatpush1.msra.mxu0 0.0
    %2386 = vmatprep.mubr.f32.mxu0 0.0
    %2387 = vmatmul.mubr.f32.gmra.mrb[0].mxu0 %v2304
    %v2388 = vpop.f32.mrb[0].mxu0
    %v2389 = vadd.f32 0.0, %v2388
    %v2390 = vpop.f32.mrb[0].mxu0
    %2391 = vmatprep.mubr.f32.mxu0 0.0
    %2392 = vmatmul.mubr.f32.gmra.mrb[0].mxu0 %v2305
    %v2393 = vpop.f32.mrb[0].mxu0
    %v2394 = vadd.f32 0.0, %v2393
    %v2395 = vpop.f32.mrb[0].mxu0
    %2396 = vdwg.mxu0
    %v2397 = vadd.f32 %v2151, %v2389
    %v2398 = vadd.f32 %v2152, %v2394
    %v2399 = vld [vmem:[#allocation11] sm:$0x1]
    %v2401 = vlaneseq
    %v2402 = vshrl.u32 %v2401, 7
    %v2403 = vsub.s32 0, %v2402
    %v2404 = vrot.slane %v2399, %v2403
    %v2406 = vadd.f32 %v2397, %v2404
    %v2407 = vadd.f32 %v2398, %v2404
    %s2408 = scalar_lea.vmem %s2, 2
    %v2409 = vld [vmem:[%s2408] sm:$0x3]
    %v2410 = vsel %vm157, %v2406, 0.0
    %2411 = vadd.xlane.f32.xlu0 %v2410
    %v2412 = vpop.xlane.xlu0 %2411
    %v2413 = vsel %vm157, %v2407, 0.0
    %2414 = vadd.xlane.f32.xlu0 %v2413
    %v2415 = vpop.xlane.xlu0 %2414
    %v2416 = vmul.f32 %v2412, %v164
    %v2417 = vmul.f32 %v2415, %v164
    %v2418 = vsub.f32 %v2406, %v2416
    %v2419 = vsub.f32 %v2407, %v2417
    %v2420 = vmul.f32 %v2418, %v2418
    %v2421 = vmul.f32 %v2419, %v2419
    %v2422 = vsel %vm157, %v2420, 0.0
    %2423 = vadd.xlane.f32.xlu0 %v2422
    %v2424 = vpop.xlane.xlu0 %2423
    %v2425 = vsel %vm157, %v2421, 0.0
    %2426 = vadd.xlane.f32.xlu0 %v2425
    %v2427 = vpop.xlane.xlu0 %2426
    %v2428 = vmul.f32 %v2424, %v164
    %v2429 = vmul.f32 %v2427, %v164
    %v2430 = vadd.f32 %v2428, 1e-05
    %v2431 = vadd.f32 %v2429, 1e-05
    %v2432 = vrsqrt.pop %v2430
    %v2433 = vrsqrt.pop %v2431
    %v2434 = vmul.f32 %v2418, %v2432
    %v2435 = vmul.f32 %v2419, %v2433
    %v2436 = vlaneseq
    %v2437 = vshrl.u32 %v2436, 7
    %v2438 = vsub.s32 0, %v2437
    %v2439 = vrot.slane %v2409, %v2438
    %v2440 = vmul.f32 %v2434, %v2439
    %v2441 = vmul.f32 %v2435, %v2439
    %v2442 = vlaneseq
    %v2443 = vshrl.u32 %v2442, 7
    %v2444 = vsub.s32 1, %v2443
    %v2445 = vrot.slane %v2409, %v2444
    %v2446 = vadd.f32 %v2440, %v2445
    %v2447 = vadd.f32 %v2441, %v2445
    %s2448 = scalar_lea.vmem %s3, 128
    %v2449 = vld [vmem:[%s2448] sm:$0xff]
    %v2450 = vld [vmem:[%s2448 + $0x8] sm:$0xff]
    %v2451 = vld [vmem:[%s2448 + $0x10] sm:$0xff]
    %v2452 = vld [vmem:[%s2448 + $0x18] sm:$0xff]
    %v2453 = vld [vmem:[%s2448 + $0x20] sm:$0xff]
    %v2454 = vld [vmem:[%s2448 + $0x28] sm:$0xff]
    %v2455 = vld [vmem:[%s2448 + $0x30] sm:$0xff]
    %v2456 = vld [vmem:[%s2448 + $0x38] sm:$0xff]
    %v2457 = vld [vmem:[%s2448 + $0x40] sm:$0xff]
    %v2458 = vld [vmem:[%s2448 + $0x48] sm:$0xff]
    %v2459 = vld [vmem:[%s2448 + $0x50] sm:$0xff]
    %v2460 = vld [vmem:[%s2448 + $0x58] sm:$0xff]
    %v2461 = vld [vmem:[%s2448 + $0x60] sm:$0xff]
    %v2462 = vld [vmem:[%s2448 + $0x68] sm:$0xff]
    %v2463 = vld [vmem:[%s2448 + $0x70] sm:$0xff]
    %v2464 = vld [vmem:[%s2448 + $0x78] sm:$0xff]
    %s2465 = scalar_lea.vmem %s5, 64
    %v2466 = vld [vmem:[%s2465] sm:$0xff]
    %v2467 = vld [vmem:[%s2465 + $0x8] sm:$0xff]
    %v2468 = vld [vmem:[%s2465 + $0x10] sm:$0xff]
    %v2469 = vld [vmem:[%s2465 + $0x18] sm:$0xff]
    %v2470 = vld [vmem:[%s2465 + $0x20] sm:$0xff]
    %v2471 = vld [vmem:[%s2465 + $0x28] sm:$0xff]
    %v2472 = vld [vmem:[%s2465 + $0x30] sm:$0xff]
    %v2473 = vld [vmem:[%s2465 + $0x38] sm:$0xff]
    %v2475 = vsel %vm157, %v2446, 0
    %v2478 = vsel %vm157, %v2447, 0
    %2480 = vmatprep.subr.mxu0 0.0
    %2481 = vmatpush1.msra.mxu0 %v2466
    %2482 = vmatprep.subr.mxu0 0.0
    %2483 = vmatpush1.msra.mxu0 %v2467
    %2484 = vmatprep.subr.mxu0 0.0
    %2485 = vmatpush1.msra.mxu0 %v2468
    %2486 = vmatprep.subr.mxu0 0.0
    %2487 = vmatpush1.msra.mxu0 %v2469
    %2488 = vmatprep.subr.mxu0 0.0
    %2489 = vmatpush1.msra.mxu0 %v2470
    %2490 = vmatprep.subr.mxu0 0.0
    %2491 = vmatpush1.msra.mxu0 %v2471
    %2492 = vmatprep.subr.mxu0 0.0
    %2493 = vmatpush1.msra.mxu0 %v2472
    %2494 = vmatprep.subr.mxu0 0.0
    %2495 = vmatpush1.msra.mxu0 %v2473
    %2496 = vmatprep.subr.mxu0 0.0
    %2497 = vmatpush1.msra.mxu0 0.0
    %2498 = vmatprep.subr.mxu0 0.0
    %2499 = vmatpush1.msra.mxu0 0.0
    %2500 = vmatprep.subr.mxu0 0.0
    %2501 = vmatpush1.msra.mxu0 0.0
    %2502 = vmatprep.subr.mxu0 0.0
    %2503 = vmatpush1.msra.mxu0 0.0
    %2504 = vmatprep.subr.mxu0 0.0
    %2505 = vmatpush1.msra.mxu0 0.0
    %2506 = vmatprep.subr.mxu0 0.0
    %2507 = vmatpush1.msra.mxu0 0.0
    %2508 = vmatprep.subr.mxu0 0.0
    %2509 = vmatpush1.msra.mxu0 0.0
    %2510 = vmatprep.subr.mxu0 0.0
    %2511 = vmatpush1.msra.mxu0 0.0
    %2512 = vmatprep.subr.mxu0 0.0
    %2513 = vmatpush1.msra.mxu0 0.0
    %2514 = vmatprep.subr.mxu0 0.0
    %2515 = vmatpush1.msra.mxu0 0.0
    %2516 = vmatprep.subr.mxu0 0.0
    %2517 = vmatpush1.msra.mxu0 0.0
    %2518 = vmatprep.subr.mxu0 0.0
    %2519 = vmatpush1.msra.mxu0 0.0
    %2520 = vmatprep.subr.mxu0 0.0
    %2521 = vmatpush1.msra.mxu0 0.0
    %2522 = vmatprep.subr.mxu0 0.0
    %2523 = vmatpush1.msra.mxu0 0.0
    %2524 = vmatprep.subr.mxu0 0.0
    %2525 = vmatpush1.msra.mxu0 0.0
    %2526 = vmatprep.subr.mxu0 0.0
    %2527 = vmatpush1.msra.mxu0 0.0
    %2528 = vmatprep.subr.mxu0 0.0
    %2529 = vmatpush1.msra.mxu0 0.0
    %2530 = vmatprep.subr.mxu0 0.0
    %2531 = vmatpush1.msra.mxu0 0.0
    %2532 = vmatprep.subr.mxu0 0.0
    %2533 = vmatpush1.msra.mxu0 0.0
    %2534 = vmatprep.subr.mxu0 0.0
    %2535 = vmatpush1.msra.mxu0 0.0
    %2536 = vmatprep.subr.mxu0 0.0
    %2537 = vmatpush1.msra.mxu0 0.0
    %2538 = vmatprep.subr.mxu0 0.0
    %2539 = vmatpush1.msra.mxu0 0.0
    %2540 = vmatprep.subr.mxu0 0.0
    %2541 = vmatpush1.msra.mxu0 0.0
    %2542 = vmatprep.subr.mxu0 0.0
    %2543 = vmatpush1.msra.mxu0 0.0
    %2544 = vmatprep.mubr.f32.mxu0 0.0
    %2545 = vmatmul.mubr.f32.gmra.mrb[0].mxu0 %v2475
    %v2546 = vpop.f32.mrb[0].mxu0
    %v2547 = vadd.f32 0.0, %v2546
    %v2548 = vpop.f32.mrb[0].mxu0
    %2549 = vmatprep.mubr.f32.mxu0 0.0
    %2550 = vmatmul.mubr.f32.gmra.mrb[0].mxu0 %v2478
    %v2551 = vpop.f32.mrb[0].mxu0
    %v2552 = vadd.f32 0.0, %v2551
    %v2553 = vpop.f32.mrb[0].mxu0
    %2554 = vdwg.mxu0
    %s2555 = scalar_lea.vmem %s4, 2
    %v2556 = vld [vmem:[%s2555] sm:$0x3]
    %v2558 = vlaneseq
    %v2559 = vshrl.u32 %v2558, 7
    %v2560 = vsub.s32 0, %v2559
    %v2561 = vrot.slane %v2556, %v2560
    %v2562 = vlaneseq
    %v2563 = vshrl.u32 %v2562, 7
    %v2564 = vsub.s32 1, %v2563
    %v2565 = vrot.slane %v2556, %v2564
    %2568 = vmatprep.subr.mxu0 %v2450
    %2569 = vmatpush1.msra.mxu0 %v2449
    %2570 = vmatprep.subr.mxu0 %v2452
    %2571 = vmatpush1.msra.mxu0 %v2451
    %2572 = vmatprep.subr.mxu0 %v2454
    %2573 = vmatpush1.msra.mxu0 %v2453
    %2574 = vmatprep.subr.mxu0 %v2456
    %2575 = vmatpush1.msra.mxu0 %v2455
    %2576 = vmatprep.subr.mxu0 %v2458
    %2577 = vmatpush1.msra.mxu0 %v2457
    %2578 = vmatprep.subr.mxu0 %v2460
    %2579 = vmatpush1.msra.mxu0 %v2459
    %2580 = vmatprep.subr.mxu0 %v2462
    %2581 = vmatpush1.msra.mxu0 %v2461
    %2582 = vmatprep.subr.mxu0 %v2464
    %2583 = vmatpush1.msra.mxu0 %v2463
    %2584 = vmatprep.subr.mxu0 0.0
    %2585 = vmatpush1.msra.mxu0 0.0
    %2586 = vmatprep.subr.mxu0 0.0
    %2587 = vmatpush1.msra.mxu0 0.0
    %2588 = vmatprep.subr.mxu0 0.0
    %2589 = vmatpush1.msra.mxu0 0.0
    %2590 = vmatprep.subr.mxu0 0.0
    %2591 = vmatpush1.msra.mxu0 0.0
    %2592 = vmatprep.subr.mxu0 0.0
    %2593 = vmatpush1.msra.mxu0 0.0
    %2594 = vmatprep.subr.mxu0 0.0
    %2595 = vmatpush1.msra.mxu0 0.0
    %2596 = vmatprep.subr.mxu0 0.0
    %2597 = vmatpush1.msra.mxu0 0.0
    %2598 = vmatprep.subr.mxu0 0.0
    %2599 = vmatpush1.msra.mxu0 0.0
    %2600 = vmatprep.subr.mxu0 0.0
    %2601 = vmatpush1.msra.mxu0 0.0
    %2602 = vmatprep.subr.mxu0 0.0
    %2603 = vmatpush1.msra.mxu0 0.0
    %2604 = vmatprep.subr.mxu0 0.0
    %2605 = vmatpush1.msra.mxu0 0.0
    %2606 = vmatprep.subr.mxu0 0.0
    %2607 = vmatpush1.msra.mxu0 0.0
    %2608 = vmatprep.subr.mxu0 0.0
    %2609 = vmatpush1.msra.mxu0 0.0
    %2610 = vmatprep.subr.mxu0 0.0
    %2611 = vmatpush1.msra.mxu0 0.0
    %2612 = vmatprep.subr.mxu0 0.0
    %2613 = vmatpush1.msra.mxu0 0.0
    %2614 = vmatprep.subr.mxu0 0.0
    %2615 = vmatpush1.msra.mxu0 0.0
    %2616 = vmatprep.subr.mxu0 0.0
    %2617 = vmatpush1.msra.mxu0 0.0
    %2618 = vmatprep.subr.mxu0 0.0
    %2619 = vmatpush1.msra.mxu0 0.0
    %2620 = vmatprep.subr.mxu0 0.0
    %2621 = vmatpush1.msra.mxu0 0.0
    %2622 = vmatprep.subr.mxu0 0.0
    %2623 = vmatpush1.msra.mxu0 0.0
    %2624 = vmatprep.subr.mxu0 0.0
    %2625 = vmatpush1.msra.mxu0 0.0
    %2626 = vmatprep.subr.mxu0 0.0
    %2627 = vmatpush1.msra.mxu0 0.0
    %2628 = vmatprep.subr.mxu0 0.0
    %2629 = vmatpush1.msra.mxu0 0.0
    %2630 = vmatprep.subr.mxu0 0.0
    %2631 = vmatpush1.msra.mxu0 0.0
    %2632 = vmatprep.mubr.f32.mxu0 0.0
    %2633 = vmatmul.mubr.f32.gmra.mrb[0].mxu0 %v2475
    %v2634 = vpop.f32.mrb[0].mxu0
    %v2635 = vadd.f32 %v2561, %v2634
    %v2636 = vpop.f32.mrb[0].mxu0
    %v2637 = vadd.f32 %v2565, %v2636
    %2638 = vmatprep.mubr.f32.mxu0 0.0
    %2639 = vmatmul.mubr.f32.gmra.mrb[0].mxu0 %v2478
    %v2640 = vpop.f32.mrb[0].mxu0
    %v2641 = vadd.f32 %v2561, %v2640
    %v2642 = vpop.f32.mrb[0].mxu0
    %v2643 = vadd.f32 %v2565, %v2642
    %2644 = vdwg.mxu0
    %s2645 = scalar_lea.vmem %s6, 32
    %v2646 = vld [vmem:[%s2645] sm:$0xff]
    %v2647 = vld [vmem:[%s2645 + $0x8] sm:$0xff]
    %v2648 = vld [vmem:[%s2645 + $0x10] sm:$0xff]
    %v2649 = vld [vmem:[%s2645 + $0x18] sm:$0xff]
    %v2651 = vsel %vm395, %v2547, 0
    %v2654 = vsel %vm395, %v2552, 0
    %2656 = vmatprep.subr.mxu0 %v2647
    %2657 = vmatpush1.msra.mxu0 %v2646
    %2658 = vmatprep.subr.mxu0 %v2649
    %2659 = vmatpush1.msra.mxu0 %v2648
    %2660 = vmatprep.subr.mxu0 0.0
    %2661 = vmatpush1.msra.mxu0 0.0
    %2662 = vmatprep.subr.mxu0 0.0
    %2663 = vmatpush1.msra.mxu0 0.0
    %2664 = vmatprep.subr.mxu0 0.0
    %2665 = vmatpush1.msra.mxu0 0.0
    %2666 = vmatprep.subr.mxu0 0.0
    %2667 = vmatpush1.msra.mxu0 0.0
    %2668 = vmatprep.subr.mxu0 0.0
    %2669 = vmatpush1.msra.mxu0 0.0
    %2670 = vmatprep.subr.mxu0 0.0
    %2671 = vmatpush1.msra.mxu0 0.0
    %2672 = vmatprep.subr.mxu0 0.0
    %2673 = vmatpush1.msra.mxu0 0.0
    %2674 = vmatprep.subr.mxu0 0.0
    %2675 = vmatpush1.msra.mxu0 0.0
    %2676 = vmatprep.subr.mxu0 0.0
    %2677 = vmatpush1.msra.mxu0 0.0
    %2678 = vmatprep.subr.mxu0 0.0
    %2679 = vmatpush1.msra.mxu0 0.0
    %2680 = vmatprep.subr.mxu0 0.0
    %2681 = vmatpush1.msra.mxu0 0.0
    %2682 = vmatprep.subr.mxu0 0.0
    %2683 = vmatpush1.msra.mxu0 0.0
    %2684 = vmatprep.subr.mxu0 0.0
    %2685 = vmatpush1.msra.mxu0 0.0
    %2686 = vmatprep.subr.mxu0 0.0
    %2687 = vmatpush1.msra.mxu0 0.0
    %2688 = vmatprep.subr.mxu0 0.0
    %2689 = vmatpush1.msra.mxu0 0.0
    %2690 = vmatprep.subr.mxu0 0.0
    %2691 = vmatpush1.msra.mxu0 0.0
    %2692 = vmatprep.subr.mxu0 0.0
    %2693 = vmatpush1.msra.mxu0 0.0
    %2694 = vmatprep.subr.mxu0 0.0
    %2695 = vmatpush1.msra.mxu0 0.0
    %2696 = vmatprep.subr.mxu0 0.0
    %2697 = vmatpush1.msra.mxu0 0.0
    %2698 = vmatprep.subr.mxu0 0.0
    %2699 = vmatpush1.msra.mxu0 0.0
    %2700 = vmatprep.subr.mxu0 0.0
    %2701 = vmatpush1.msra.mxu0 0.0
    %2702 = vmatprep.subr.mxu0 0.0
    %2703 = vmatpush1.msra.mxu0 0.0
    %2704 = vmatprep.subr.mxu0 0.0
    %2705 = vmatpush1.msra.mxu0 0.0
    %2706 = vmatprep.subr.mxu0 0.0
    %2707 = vmatpush1.msra.mxu0 0.0
    %2708 = vmatprep.subr.mxu0 0.0
    %2709 = vmatpush1.msra.mxu0 0.0
    %2710 = vmatprep.subr.mxu0 0.0
    %2711 = vmatpush1.msra.mxu0 0.0
    %2712 = vmatprep.subr.mxu0 0.0
    %2713 = vmatpush1.msra.mxu0 0.0
    %2714 = vmatprep.subr.mxu0 0.0
    %2715 = vmatpush1.msra.mxu0 0.0
    %2716 = vmatprep.subr.mxu0 0.0
    %2717 = vmatpush1.msra.mxu0 0.0
    %2718 = vmatprep.subr.mxu0 0.0
    %2719 = vmatpush1.msra.mxu0 0.0
    %2720 = vmatprep.mubr.f32.mxu0 0.0
    %2721 = vmatmul.mubr.f32.gmra.mrb[0].mxu0 %v2651
    %v2722 = vpop.f32.mrb[0].mxu0
    %v2723 = vadd.f32 0.0, %v2722
    %v2724 = vpop.f32.mrb[0].mxu0
    %v2725 = vadd.f32 0.0, %v2724
    %2726 = vmatprep.mubr.f32.mxu0 0.0
    %2727 = vmatmul.mubr.f32.gmra.mrb[0].mxu0 %v2654
    %v2728 = vpop.f32.mrb[0].mxu0
    %v2729 = vadd.f32 0.0, %v2728
    %v2730 = vpop.f32.mrb[0].mxu0
    %v2731 = vadd.f32 0.0, %v2730
    %2732 = vdwg.mxu0
    %v2733 = vmul.f32 %v2723, 2.0
    %v2734 = vmul.f32 %v2725, 2.0
    %v2735 = vmul.f32 %v2729, 2.0
    %v2736 = vmul.f32 %v2731, 2.0
    %v2737 = vadd.f32 %v2635, %v2733
    %v2738 = vadd.f32 %v2637, %v2734
    %v2739 = vadd.f32 %v2641, %v2735
    %v2740 = vadd.f32 %v2643, %v2736
    %v2741 = vmul.f32 %v2737, 0.25
    %v2742 = vmul.f32 %v2739, 0.25
    %s2743 = scalar_lea.vmem %s7, 64
    %v2744 = vld [vmem:[%s2743] sm:$0xff]
    %v2745 = vld [vmem:[%s2743 + $0x8] sm:$0xff]
    %v2746 = vld [vmem:[%s2743 + $0x10] sm:$0xff]
    %v2747 = vld [vmem:[%s2743 + $0x18] sm:$0xff]
    %v2748 = vld [vmem:[%s2743 + $0x20] sm:$0xff]
    %v2749 = vld [vmem:[%s2743 + $0x28] sm:$0xff]
    %v2750 = vld [vmem:[%s2743 + $0x30] sm:$0xff]
    %v2751 = vld [vmem:[%s2743 + $0x38] sm:$0xff]
    %2753 = vrot.lane.b32.xlu0 %v2737, 64
    %v2754 = vpop.permute.xlu0 %2753
    %v2756 = vsel %vm395, %v2741, 0
    %v2758 = vsel %vm395, %v2754, 0
    %2760 = vmatprep.subr.mxu0 0.0
    %2761 = vmatpush1.xpose.msra.mxu0 %v2758
    %2762 = vmatprep.subr.mxu0 0.0
    %2763 = vmatpush1.xpose.msra.mxu0 0.0
    %2764 = vmatprep.subr.mxu0 0.0
    %2765 = vmatpush1.xpose.msra.mxu0 0.0
    %2766 = vmatprep.subr.mxu0 0.0
    %2767 = vmatpush1.xpose.msra.mxu0 0.0
    %2768 = vmatprep.subr.mxu0 0.0
    %2769 = vmatpush1.xpose.msra.mxu0 0.0
    %2770 = vmatprep.subr.mxu0 0.0
    %2771 = vmatpush1.xpose.msra.mxu0 0.0
    %2772 = vmatprep.subr.mxu0 0.0
    %2773 = vmatpush1.xpose.msra.mxu0 0.0
    %2774 = vmatprep.subr.mxu0 0.0
    %2775 = vmatpush1.xpose.msra.mxu0 0.0
    %2776 = vmatprep.subr.mxu0 0.0
    %2777 = vmatpush1.xpose.msra.mxu0 0.0
    %2778 = vmatprep.subr.mxu0 0.0
    %2779 = vmatpush1.xpose.msra.mxu0 0.0
    %2780 = vmatprep.subr.mxu0 0.0
    %2781 = vmatpush1.xpose.msra.mxu0 0.0
    %2782 = vmatprep.subr.mxu0 0.0
    %2783 = vmatpush1.xpose.msra.mxu0 0.0
    %2784 = vmatprep.subr.mxu0 0.0
    %2785 = vmatpush1.xpose.msra.mxu0 0.0
    %2786 = vmatprep.subr.mxu0 0.0
    %2787 = vmatpush1.xpose.msra.mxu0 0.0
    %2788 = vmatprep.subr.mxu0 0.0
    %2789 = vmatpush1.xpose.msra.mxu0 0.0
    %2790 = vmatprep.subr.mxu0 0.0
    %2791 = vmatpush1.xpose.msra.mxu0 0.0
    %2792 = vmatprep.subr.mxu0 0.0
    %2793 = vmatpush1.xpose.msra.mxu0 0.0
    %2794 = vmatprep.subr.mxu0 0.0
    %2795 = vmatpush1.xpose.msra.mxu0 0.0
    %2796 = vmatprep.subr.mxu0 0.0
    %2797 = vmatpush1.xpose.msra.mxu0 0.0
    %2798 = vmatprep.subr.mxu0 0.0
    %2799 = vmatpush1.xpose.msra.mxu0 0.0
    %2800 = vmatprep.subr.mxu0 0.0
    %2801 = vmatpush1.xpose.msra.mxu0 0.0
    %2802 = vmatprep.subr.mxu0 0.0
    %2803 = vmatpush1.xpose.msra.mxu0 0.0
    %2804 = vmatprep.subr.mxu0 0.0
    %2805 = vmatpush1.xpose.msra.mxu0 0.0
    %2806 = vmatprep.subr.mxu0 0.0
    %2807 = vmatpush1.xpose.msra.mxu0 0.0
    %2808 = vmatprep.subr.mxu0 0.0
    %2809 = vmatpush1.xpose.msra.mxu0 0.0
    %2810 = vmatprep.subr.mxu0 0.0
    %2811 = vmatpush1.xpose.msra.mxu0 0.0
    %2812 = vmatprep.subr.mxu0 0.0
    %2813 = vmatpush1.xpose.msra.mxu0 0.0
    %2814 = vmatprep.subr.mxu0 0.0
    %2815 = vmatpush1.xpose.msra.mxu0 0.0
    %2816 = vmatprep.subr.mxu0 0.0
    %2817 = vmatpush1.xpose.msra.mxu0 0.0
    %2818 = vmatprep.subr.mxu0 0.0
    %2819 = vmatpush1.xpose.msra.mxu0 0.0
    %2820 = vmatprep.subr.mxu0 0.0
    %2821 = vmatpush1.xpose.msra.mxu0 0.0
    %2822 = vmatprep.subr.mxu0 0.0
    %2823 = vmatpush1.xpose.msra.mxu0 0.0
    %2824 = vmatprep.mubr.f32.mxu0 0.0
    %2825 = vmatmul.mubr.f32.gmra.mrb[0].mxu0 %v2756
    %v2826 = vpop.f32.mrb[0].mxu0
    %v2827 = vadd.f32 %v154, %v2826
    %v2828 = vpop.f32.mrb[0].mxu0
    %2829 = vdwg.mxu0
    %2831 = vrot.lane.b32.xlu0 %v2739, 64
    %v2832 = vpop.permute.xlu0 %2831
    %v2834 = vsel %vm395, %v2742, 0
    %v2836 = vsel %vm395, %v2832, 0
    %2838 = vmatprep.subr.mxu0 0.0
    %2839 = vmatpush1.xpose.msra.mxu0 %v2836
    %2840 = vmatprep.subr.mxu0 0.0
    %2841 = vmatpush1.xpose.msra.mxu0 0.0
    %2842 = vmatprep.subr.mxu0 0.0
    %2843 = vmatpush1.xpose.msra.mxu0 0.0
    %2844 = vmatprep.subr.mxu0 0.0
    %2845 = vmatpush1.xpose.msra.mxu0 0.0
    %2846 = vmatprep.subr.mxu0 0.0
    %2847 = vmatpush1.xpose.msra.mxu0 0.0
    %2848 = vmatprep.subr.mxu0 0.0
    %2849 = vmatpush1.xpose.msra.mxu0 0.0
    %2850 = vmatprep.subr.mxu0 0.0
    %2851 = vmatpush1.xpose.msra.mxu0 0.0
    %2852 = vmatprep.subr.mxu0 0.0
    %2853 = vmatpush1.xpose.msra.mxu0 0.0
    %2854 = vmatprep.subr.mxu0 0.0
    %2855 = vmatpush1.xpose.msra.mxu0 0.0
    %2856 = vmatprep.subr.mxu0 0.0
    %2857 = vmatpush1.xpose.msra.mxu0 0.0
    %2858 = vmatprep.subr.mxu0 0.0
    %2859 = vmatpush1.xpose.msra.mxu0 0.0
    %2860 = vmatprep.subr.mxu0 0.0
    %2861 = vmatpush1.xpose.msra.mxu0 0.0
    %2862 = vmatprep.subr.mxu0 0.0
    %2863 = vmatpush1.xpose.msra.mxu0 0.0
    %2864 = vmatprep.subr.mxu0 0.0
    %2865 = vmatpush1.xpose.msra.mxu0 0.0
    %2866 = vmatprep.subr.mxu0 0.0
    %2867 = vmatpush1.xpose.msra.mxu0 0.0
    %2868 = vmatprep.subr.mxu0 0.0
    %2869 = vmatpush1.xpose.msra.mxu0 0.0
    %2870 = vmatprep.subr.mxu0 0.0
    %2871 = vmatpush1.xpose.msra.mxu0 0.0
    %2872 = vmatprep.subr.mxu0 0.0
    %2873 = vmatpush1.xpose.msra.mxu0 0.0
    %2874 = vmatprep.subr.mxu0 0.0
    %2875 = vmatpush1.xpose.msra.mxu0 0.0
    %2876 = vmatprep.subr.mxu0 0.0
    %2877 = vmatpush1.xpose.msra.mxu0 0.0
    %2878 = vmatprep.subr.mxu0 0.0
    %2879 = vmatpush1.xpose.msra.mxu0 0.0
    %2880 = vmatprep.subr.mxu0 0.0
    %2881 = vmatpush1.xpose.msra.mxu0 0.0
    %2882 = vmatprep.subr.mxu0 0.0
    %2883 = vmatpush1.xpose.msra.mxu0 0.0
    %2884 = vmatprep.subr.mxu0 0.0
    %2885 = vmatpush1.xpose.msra.mxu0 0.0
    %2886 = vmatprep.subr.mxu0 0.0
    %2887 = vmatpush1.xpose.msra.mxu0 0.0
    %2888 = vmatprep.subr.mxu0 0.0
    %2889 = vmatpush1.xpose.msra.mxu0 0.0
    %2890 = vmatprep.subr.mxu0 0.0
    %2891 = vmatpush1.xpose.msra.mxu0 0.0
    %2892 = vmatprep.subr.mxu0 0.0
    %2893 = vmatpush1.xpose.msra.mxu0 0.0
    %2894 = vmatprep.subr.mxu0 0.0
    %2895 = vmatpush1.xpose.msra.mxu0 0.0
    %2896 = vmatprep.subr.mxu0 0.0
    %2897 = vmatpush1.xpose.msra.mxu0 0.0
    %2898 = vmatprep.subr.mxu0 0.0
    %2899 = vmatpush1.xpose.msra.mxu0 0.0
    %2900 = vmatprep.subr.mxu0 0.0
    %2901 = vmatpush1.xpose.msra.mxu0 0.0
    %2902 = vmatprep.mubr.f32.mxu0 0.0
    %2903 = vmatmul.mubr.f32.gmra.mrb[0].mxu0 %v2834
    %v2904 = vpop.f32.mrb[0].mxu0
    %v2905 = vadd.f32 %v155, %v2904
    %v2906 = vpop.f32.mrb[0].mxu0
    %2907 = vdwg.mxu0
    %v2908 = vsel %vm653, %v2827, -inf
    %2909 = vmax.xlane.f32.xlu0 %v2908
    %v2910 = vpop.xlane.xlu0 %2909
    %v2911 = vsel %vm653, %v2905, -inf
    %2912 = vmax.xlane.f32.xlu0 %v2911
    %v2913 = vpop.xlane.xlu0 %2912
    %v2914 = vsub.f32 %v2827, %v2910
    %v2915 = vsub.f32 %v2905, %v2913
    %v2916 = vmul.f32 %v2914, 1.442695
    %v2917 = vpow.pop %v2916
    %v2918 = vmul.f32 %v2915, 1.442695
    %v2919 = vpow.pop %v2918
    %v2920 = vsel %vm653, %v2917, 0.0
    %2921 = vadd.xlane.f32.xlu0 %v2920
    %v2922 = vpop.xlane.xlu0 %2921
    %v2923 = vsel %vm653, %v2919, 0.0
    %2924 = vadd.xlane.f32.xlu0 %v2923
    %v2925 = vpop.xlane.xlu0 %2924
    %v2927 = vsel %vm653, %v2917, 0
    %2929 = vmatprep.subr.mxu0 0.0
    %2930 = vmatpush1.msra.mxu0 %v2738
    %2931 = vmatprep.subr.mxu0 0.0
    %2932 = vmatpush1.msra.mxu0 0.0
    %2933 = vmatprep.subr.mxu0 0.0
    %2934 = vmatpush1.msra.mxu0 0.0
    %2935 = vmatprep.subr.mxu0 0.0
    %2936 = vmatpush1.msra.mxu0 0.0
    %2937 = vmatprep.subr.mxu0 0.0
    %2938 = vmatpush1.msra.mxu0 0.0
    %2939 = vmatprep.subr.mxu0 0.0
    %2940 = vmatpush1.msra.mxu0 0.0
    %2941 = vmatprep.subr.mxu0 0.0
    %2942 = vmatpush1.msra.mxu0 0.0
    %2943 = vmatprep.subr.mxu0 0.0
    %2944 = vmatpush1.msra.mxu0 0.0
    %2945 = vmatprep.subr.mxu0 0.0
    %2946 = vmatpush1.msra.mxu0 0.0
    %2947 = vmatprep.subr.mxu0 0.0
    %2948 = vmatpush1.msra.mxu0 0.0
    %2949 = vmatprep.subr.mxu0 0.0
    %2950 = vmatpush1.msra.mxu0 0.0
    %2951 = vmatprep.subr.mxu0 0.0
    %2952 = vmatpush1.msra.mxu0 0.0
    %2953 = vmatprep.subr.mxu0 0.0
    %2954 = vmatpush1.msra.mxu0 0.0
    %2955 = vmatprep.subr.mxu0 0.0
    %2956 = vmatpush1.msra.mxu0 0.0
    %2957 = vmatprep.subr.mxu0 0.0
    %2958 = vmatpush1.msra.mxu0 0.0
    %2959 = vmatprep.subr.mxu0 0.0
    %2960 = vmatpush1.msra.mxu0 0.0
    %2961 = vmatprep.subr.mxu0 0.0
    %2962 = vmatpush1.msra.mxu0 0.0
    %2963 = vmatprep.subr.mxu0 0.0
    %2964 = vmatpush1.msra.mxu0 0.0
    %2965 = vmatprep.subr.mxu0 0.0
    %2966 = vmatpush1.msra.mxu0 0.0
    %2967 = vmatprep.subr.mxu0 0.0
    %2968 = vmatpush1.msra.mxu0 0.0
    %2969 = vmatprep.subr.mxu0 0.0
    %2970 = vmatpush1.msra.mxu0 0.0
    %2971 = vmatprep.subr.mxu0 0.0
    %2972 = vmatpush1.msra.mxu0 0.0
    %2973 = vmatprep.subr.mxu0 0.0
    %2974 = vmatpush1.msra.mxu0 0.0
    %2975 = vmatprep.subr.mxu0 0.0
    %2976 = vmatpush1.msra.mxu0 0.0
    %2977 = vmatprep.subr.mxu0 0.0
    %2978 = vmatpush1.msra.mxu0 0.0
    %2979 = vmatprep.subr.mxu0 0.0
    %2980 = vmatpush1.msra.mxu0 0.0
    %2981 = vmatprep.subr.mxu0 0.0
    %2982 = vmatpush1.msra.mxu0 0.0
    %2983 = vmatprep.subr.mxu0 0.0
    %2984 = vmatpush1.msra.mxu0 0.0
    %2985 = vmatprep.subr.mxu0 0.0
    %2986 = vmatpush1.msra.mxu0 0.0
    %2987 = vmatprep.subr.mxu0 0.0
    %2988 = vmatpush1.msra.mxu0 0.0
    %2989 = vmatprep.subr.mxu0 0.0
    %2990 = vmatpush1.msra.mxu0 0.0
    %2991 = vmatprep.subr.mxu0 0.0
    %2992 = vmatpush1.msra.mxu0 0.0
    %2993 = vmatprep.mubr.f32.mxu0 0.0
    %2994 = vmatmul.mubr.f32.gmra.mrb[0].mxu0 %v2927
    %v2995 = vpop.f32.mrb[0].mxu0
    %v2996 = vadd.f32 0.0, %v2995
    %v2997 = vpop.f32.mrb[0].mxu0
    %2998 = vdwg.mxu0
    %v3000 = vsel %vm653, %v2919, 0
    %3002 = vmatprep.subr.mxu0 0.0
    %3003 = vmatpush1.msra.mxu0 %v2740
    %3004 = vmatprep.subr.mxu0 0.0
    %3005 = vmatpush1.msra.mxu0 0.0
    %3006 = vmatprep.subr.mxu0 0.0
    %3007 = vmatpush1.msra.mxu0 0.0
    %3008 = vmatprep.subr.mxu0 0.0
    %3009 = vmatpush1.msra.mxu0 0.0
    %3010 = vmatprep.subr.mxu0 0.0
    %3011 = vmatpush1.msra.mxu0 0.0
    %3012 = vmatprep.subr.mxu0 0.0
    %3013 = vmatpush1.msra.mxu0 0.0
    %3014 = vmatprep.subr.mxu0 0.0
    %3015 = vmatpush1.msra.mxu0 0.0
    %3016 = vmatprep.subr.mxu0 0.0
    %3017 = vmatpush1.msra.mxu0 0.0
    %3018 = vmatprep.subr.mxu0 0.0
    %3019 = vmatpush1.msra.mxu0 0.0
    %3020 = vmatprep.subr.mxu0 0.0
    %3021 = vmatpush1.msra.mxu0 0.0
    %3022 = vmatprep.subr.mxu0 0.0
    %3023 = vmatpush1.msra.mxu0 0.0
    %3024 = vmatprep.subr.mxu0 0.0
    %3025 = vmatpush1.msra.mxu0 0.0
    %3026 = vmatprep.subr.mxu0 0.0
    %3027 = vmatpush1.msra.mxu0 0.0
    %3028 = vmatprep.subr.mxu0 0.0
    %3029 = vmatpush1.msra.mxu0 0.0
    %3030 = vmatprep.subr.mxu0 0.0
    %3031 = vmatpush1.msra.mxu0 0.0
    %3032 = vmatprep.subr.mxu0 0.0
    %3033 = vmatpush1.msra.mxu0 0.0
    %3034 = vmatprep.subr.mxu0 0.0
    %3035 = vmatpush1.msra.mxu0 0.0
    %3036 = vmatprep.subr.mxu0 0.0
    %3037 = vmatpush1.msra.mxu0 0.0
    %3038 = vmatprep.subr.mxu0 0.0
    %3039 = vmatpush1.msra.mxu0 0.0
    %3040 = vmatprep.subr.mxu0 0.0
    %3041 = vmatpush1.msra.mxu0 0.0
    %3042 = vmatprep.subr.mxu0 0.0
    %3043 = vmatpush1.msra.mxu0 0.0
    %3044 = vmatprep.subr.mxu0 0.0
    %3045 = vmatpush1.msra.mxu0 0.0
    %3046 = vmatprep.subr.mxu0 0.0
    %3047 = vmatpush1.msra.mxu0 0.0
    %3048 = vmatprep.subr.mxu0 0.0
    %3049 = vmatpush1.msra.mxu0 0.0
    %3050 = vmatprep.subr.mxu0 0.0
    %3051 = vmatpush1.msra.mxu0 0.0
    %3052 = vmatprep.subr.mxu0 0.0
    %3053 = vmatpush1.msra.mxu0 0.0
    %3054 = vmatprep.subr.mxu0 0.0
    %3055 = vmatpush1.msra.mxu0 0.0
    %3056 = vmatprep.subr.mxu0 0.0
    %3057 = vmatpush1.msra.mxu0 0.0
    %3058 = vmatprep.subr.mxu0 0.0
    %3059 = vmatpush1.msra.mxu0 0.0
    %3060 = vmatprep.subr.mxu0 0.0
    %3061 = vmatpush1.msra.mxu0 0.0
    %3062 = vmatprep.subr.mxu0 0.0
    %3063 = vmatpush1.msra.mxu0 0.0
    %3064 = vmatprep.subr.mxu0 0.0
    %3065 = vmatpush1.msra.mxu0 0.0
    %3066 = vmatprep.mubr.f32.mxu0 0.0
    %3067 = vmatmul.mubr.f32.gmra.mrb[0].mxu0 %v3000
    %v3068 = vpop.f32.mrb[0].mxu0
    %v3069 = vadd.f32 0.0, %v3068
    %v3070 = vpop.f32.mrb[0].mxu0
    %3071 = vdwg.mxu0
    %v3072 = vrcp.pop %v2922
    %v3073 = vrcp.pop %v2925
    %v3074 = vmul.f32 %v2996, %v3072
    %v3075 = vmul.f32 %v3069, %v3073
    %3076 = vrot.lane.b32.xlu0 %v2741, 112
    %v3077 = vpop.permute.xlu0 %3076
    %3078 = vrot.lane.b32.xlu0 %v2737, 48
    %v3079 = vpop.permute.xlu0 %3078
    %v3080 = vsel %vm395, %v3077, 0
    %v3082 = vsel %vm395, %v3079, 0
    %3084 = vmatprep.subr.mxu0 0.0
    %3085 = vmatpush1.xpose.msra.mxu0 %v3082
    %3086 = vmatprep.subr.mxu0 0.0
    %3087 = vmatpush1.xpose.msra.mxu0 0.0
    %3088 = vmatprep.subr.mxu0 0.0
    %3089 = vmatpush1.xpose.msra.mxu0 0.0
    %3090 = vmatprep.subr.mxu0 0.0
    %3091 = vmatpush1.xpose.msra.mxu0 0.0
    %3092 = vmatprep.subr.mxu0 0.0
    %3093 = vmatpush1.xpose.msra.mxu0 0.0
    %3094 = vmatprep.subr.mxu0 0.0
    %3095 = vmatpush1.xpose.msra.mxu0 0.0
    %3096 = vmatprep.subr.mxu0 0.0
    %3097 = vmatpush1.xpose.msra.mxu0 0.0
    %3098 = vmatprep.subr.mxu0 0.0
    %3099 = vmatpush1.xpose.msra.mxu0 0.0
    %3100 = vmatprep.subr.mxu0 0.0
    %3101 = vmatpush1.xpose.msra.mxu0 0.0
    %3102 = vmatprep.subr.mxu0 0.0
    %3103 = vmatpush1.xpose.msra.mxu0 0.0
    %3104 = vmatprep.subr.mxu0 0.0
    %3105 = vmatpush1.xpose.msra.mxu0 0.0
    %3106 = vmatprep.subr.mxu0 0.0
    %3107 = vmatpush1.xpose.msra.mxu0 0.0
    %3108 = vmatprep.subr.mxu0 0.0
    %3109 = vmatpush1.xpose.msra.mxu0 0.0
    %3110 = vmatprep.subr.mxu0 0.0
    %3111 = vmatpush1.xpose.msra.mxu0 0.0
    %3112 = vmatprep.subr.mxu0 0.0
    %3113 = vmatpush1.xpose.msra.mxu0 0.0
    %3114 = vmatprep.subr.mxu0 0.0
    %3115 = vmatpush1.xpose.msra.mxu0 0.0
    %3116 = vmatprep.subr.mxu0 0.0
    %3117 = vmatpush1.xpose.msra.mxu0 0.0
    %3118 = vmatprep.subr.mxu0 0.0
    %3119 = vmatpush1.xpose.msra.mxu0 0.0
    %3120 = vmatprep.subr.mxu0 0.0
    %3121 = vmatpush1.xpose.msra.mxu0 0.0
    %3122 = vmatprep.subr.mxu0 0.0
    %3123 = vmatpush1.xpose.msra.mxu0 0.0
    %3124 = vmatprep.subr.mxu0 0.0
    %3125 = vmatpush1.xpose.msra.mxu0 0.0
    %3126 = vmatprep.subr.mxu0 0.0
    %3127 = vmatpush1.xpose.msra.mxu0 0.0
    %3128 = vmatprep.subr.mxu0 0.0
    %3129 = vmatpush1.xpose.msra.mxu0 0.0
    %3130 = vmatprep.subr.mxu0 0.0
    %3131 = vmatpush1.xpose.msra.mxu0 0.0
    %3132 = vmatprep.subr.mxu0 0.0
    %3133 = vmatpush1.xpose.msra.mxu0 0.0
    %3134 = vmatprep.subr.mxu0 0.0
    %3135 = vmatpush1.xpose.msra.mxu0 0.0
    %3136 = vmatprep.subr.mxu0 0.0
    %3137 = vmatpush1.xpose.msra.mxu0 0.0
    %3138 = vmatprep.subr.mxu0 0.0
    %3139 = vmatpush1.xpose.msra.mxu0 0.0
    %3140 = vmatprep.subr.mxu0 0.0
    %3141 = vmatpush1.xpose.msra.mxu0 0.0
    %3142 = vmatprep.subr.mxu0 0.0
    %3143 = vmatpush1.xpose.msra.mxu0 0.0
    %3144 = vmatprep.subr.mxu0 0.0
    %3145 = vmatpush1.xpose.msra.mxu0 0.0
    %3146 = vmatprep.subr.mxu0 0.0
    %3147 = vmatpush1.xpose.msra.mxu0 0.0
    %3148 = vmatprep.mubr.f32.mxu0 0.0
    %3149 = vmatmul.mubr.f32.gmra.mrb[0].mxu0 %v3080
    %v3150 = vpop.f32.mrb[0].mxu0
    %v3151 = vadd.f32 %v154, %v3150
    %v3152 = vpop.f32.mrb[0].mxu0
    %3153 = vdwg.mxu0
    %3154 = vrot.lane.b32.xlu0 %v2742, 112
    %v3155 = vpop.permute.xlu0 %3154
    %3156 = vrot.lane.b32.xlu0 %v2739, 48
    %v3157 = vpop.permute.xlu0 %3156
    %v3158 = vsel %vm395, %v3155, 0
    %v3160 = vsel %vm395, %v3157, 0
    %3162 = vmatprep.subr.mxu0 0.0
    %3163 = vmatpush1.xpose.msra.mxu0 %v3160
    %3164 = vmatprep.subr.mxu0 0.0
    %3165 = vmatpush1.xpose.msra.mxu0 0.0
    %3166 = vmatprep.subr.mxu0 0.0
    %3167 = vmatpush1.xpose.msra.mxu0 0.0
    %3168 = vmatprep.subr.mxu0 0.0
    %3169 = vmatpush1.xpose.msra.mxu0 0.0
    %3170 = vmatprep.subr.mxu0 0.0
    %3171 = vmatpush1.xpose.msra.mxu0 0.0
    %3172 = vmatprep.subr.mxu0 0.0
    %3173 = vmatpush1.xpose.msra.mxu0 0.0
    %3174 = vmatprep.subr.mxu0 0.0
    %3175 = vmatpush1.xpose.msra.mxu0 0.0
    %3176 = vmatprep.subr.mxu0 0.0
    %3177 = vmatpush1.xpose.msra.mxu0 0.0
    %3178 = vmatprep.subr.mxu0 0.0
    %3179 = vmatpush1.xpose.msra.mxu0 0.0
    %3180 = vmatprep.subr.mxu0 0.0
    %3181 = vmatpush1.xpose.msra.mxu0 0.0
    %3182 = vmatprep.subr.mxu0 0.0
    %3183 = vmatpush1.xpose.msra.mxu0 0.0
    %3184 = vmatprep.subr.mxu0 0.0
    %3185 = vmatpush1.xpose.msra.mxu0 0.0
    %3186 = vmatprep.subr.mxu0 0.0
    %3187 = vmatpush1.xpose.msra.mxu0 0.0
    %3188 = vmatprep.subr.mxu0 0.0
    %3189 = vmatpush1.xpose.msra.mxu0 0.0
    %3190 = vmatprep.subr.mxu0 0.0
    %3191 = vmatpush1.xpose.msra.mxu0 0.0
    %3192 = vmatprep.subr.mxu0 0.0
    %3193 = vmatpush1.xpose.msra.mxu0 0.0
    %3194 = vmatprep.subr.mxu0 0.0
    %3195 = vmatpush1.xpose.msra.mxu0 0.0
    %3196 = vmatprep.subr.mxu0 0.0
    %3197 = vmatpush1.xpose.msra.mxu0 0.0
    %3198 = vmatprep.subr.mxu0 0.0
    %3199 = vmatpush1.xpose.msra.mxu0 0.0
    %3200 = vmatprep.subr.mxu0 0.0
    %3201 = vmatpush1.xpose.msra.mxu0 0.0
    %3202 = vmatprep.subr.mxu0 0.0
    %3203 = vmatpush1.xpose.msra.mxu0 0.0
    %3204 = vmatprep.subr.mxu0 0.0
    %3205 = vmatpush1.xpose.msra.mxu0 0.0
    %3206 = vmatprep.subr.mxu0 0.0
    %3207 = vmatpush1.xpose.msra.mxu0 0.0
    %3208 = vmatprep.subr.mxu0 0.0
    %3209 = vmatpush1.xpose.msra.mxu0 0.0
    %3210 = vmatprep.subr.mxu0 0.0
    %3211 = vmatpush1.xpose.msra.mxu0 0.0
    %3212 = vmatprep.subr.mxu0 0.0
    %3213 = vmatpush1.xpose.msra.mxu0 0.0
    %3214 = vmatprep.subr.mxu0 0.0
    %3215 = vmatpush1.xpose.msra.mxu0 0.0
    %3216 = vmatprep.subr.mxu0 0.0
    %3217 = vmatpush1.xpose.msra.mxu0 0.0
    %3218 = vmatprep.subr.mxu0 0.0
    %3219 = vmatpush1.xpose.msra.mxu0 0.0
    %3220 = vmatprep.subr.mxu0 0.0
    %3221 = vmatpush1.xpose.msra.mxu0 0.0
    %3222 = vmatprep.subr.mxu0 0.0
    %3223 = vmatpush1.xpose.msra.mxu0 0.0
    %3224 = vmatprep.subr.mxu0 0.0
    %3225 = vmatpush1.xpose.msra.mxu0 0.0
    %3226 = vmatprep.mubr.f32.mxu0 0.0
    %3227 = vmatmul.mubr.f32.gmra.mrb[0].mxu0 %v3158
    %v3228 = vpop.f32.mrb[0].mxu0
    %v3229 = vadd.f32 %v155, %v3228
    %v3230 = vpop.f32.mrb[0].mxu0
    %3231 = vdwg.mxu0
    %v3232 = vsel %vm653, %v3151, -inf
    %3233 = vmax.xlane.f32.xlu0 %v3232
    %v3234 = vpop.xlane.xlu0 %3233
    %v3235 = vsel %vm653, %v3229, -inf
    %3236 = vmax.xlane.f32.xlu0 %v3235
    %v3237 = vpop.xlane.xlu0 %3236
    %v3238 = vsub.f32 %v3151, %v3234
    %v3239 = vsub.f32 %v3229, %v3237
    %v3240 = vmul.f32 %v3238, 1.442695
    %v3241 = vpow.pop %v3240
    %v3242 = vmul.f32 %v3239, 1.442695
    %v3243 = vpow.pop %v3242
    %v3244 = vsel %vm653, %v3241, 0.0
    %3245 = vadd.xlane.f32.xlu0 %v3244
    %v3246 = vpop.xlane.xlu0 %3245
    %v3247 = vsel %vm653, %v3243, 0.0
    %3248 = vadd.xlane.f32.xlu0 %v3247
    %v3249 = vpop.xlane.xlu0 %3248
    %3251 = vrot.lane.b32.xlu0 %v2738, 112
    %v3252 = vpop.permute.xlu0 %3251
    %v3255 = vsel %vm653, %v3241, 0
    %3257 = vmatprep.subr.mxu0 0.0
    %3258 = vmatpush1.msra.mxu0 %v3252
    %3259 = vmatprep.subr.mxu0 0.0
    %3260 = vmatpush1.msra.mxu0 0.0
    %3261 = vmatprep.subr.mxu0 0.0
    %3262 = vmatpush1.msra.mxu0 0.0
    %3263 = vmatprep.subr.mxu0 0.0
    %3264 = vmatpush1.msra.mxu0 0.0
    %3265 = vmatprep.subr.mxu0 0.0
    %3266 = vmatpush1.msra.mxu0 0.0
    %3267 = vmatprep.subr.mxu0 0.0
    %3268 = vmatpush1.msra.mxu0 0.0
    %3269 = vmatprep.subr.mxu0 0.0
    %3270 = vmatpush1.msra.mxu0 0.0
    %3271 = vmatprep.subr.mxu0 0.0
    %3272 = vmatpush1.msra.mxu0 0.0
    %3273 = vmatprep.subr.mxu0 0.0
    %3274 = vmatpush1.msra.mxu0 0.0
    %3275 = vmatprep.subr.mxu0 0.0
    %3276 = vmatpush1.msra.mxu0 0.0
    %3277 = vmatprep.subr.mxu0 0.0
    %3278 = vmatpush1.msra.mxu0 0.0
    %3279 = vmatprep.subr.mxu0 0.0
    %3280 = vmatpush1.msra.mxu0 0.0
    %3281 = vmatprep.subr.mxu0 0.0
    %3282 = vmatpush1.msra.mxu0 0.0
    %3283 = vmatprep.subr.mxu0 0.0
    %3284 = vmatpush1.msra.mxu0 0.0
    %3285 = vmatprep.subr.mxu0 0.0
    %3286 = vmatpush1.msra.mxu0 0.0
    %3287 = vmatprep.subr.mxu0 0.0
    %3288 = vmatpush1.msra.mxu0 0.0
    %3289 = vmatprep.subr.mxu0 0.0
    %3290 = vmatpush1.msra.mxu0 0.0
    %3291 = vmatprep.subr.mxu0 0.0
    %3292 = vmatpush1.msra.mxu0 0.0
    %3293 = vmatprep.subr.mxu0 0.0
    %3294 = vmatpush1.msra.mxu0 0.0
    %3295 = vmatprep.subr.mxu0 0.0
    %3296 = vmatpush1.msra.mxu0 0.0
    %3297 = vmatprep.subr.mxu0 0.0
    %3298 = vmatpush1.msra.mxu0 0.0
    %3299 = vmatprep.subr.mxu0 0.0
    %3300 = vmatpush1.msra.mxu0 0.0
    %3301 = vmatprep.subr.mxu0 0.0
    %3302 = vmatpush1.msra.mxu0 0.0
    %3303 = vmatprep.subr.mxu0 0.0
    %3304 = vmatpush1.msra.mxu0 0.0
    %3305 = vmatprep.subr.mxu0 0.0
    %3306 = vmatpush1.msra.mxu0 0.0
    %3307 = vmatprep.subr.mxu0 0.0
    %3308 = vmatpush1.msra.mxu0 0.0
    %3309 = vmatprep.subr.mxu0 0.0
    %3310 = vmatpush1.msra.mxu0 0.0
    %3311 = vmatprep.subr.mxu0 0.0
    %3312 = vmatpush1.msra.mxu0 0.0
    %3313 = vmatprep.subr.mxu0 0.0
    %3314 = vmatpush1.msra.mxu0 0.0
    %3315 = vmatprep.subr.mxu0 0.0
    %3316 = vmatpush1.msra.mxu0 0.0
    %3317 = vmatprep.subr.mxu0 0.0
    %3318 = vmatpush1.msra.mxu0 0.0
    %3319 = vmatprep.subr.mxu0 0.0
    %3320 = vmatpush1.msra.mxu0 0.0
    %3321 = vmatprep.mubr.f32.mxu0 0.0
    %3322 = vmatmul.mubr.f32.gmra.mrb[0].mxu0 %v3255
    %v3323 = vpop.f32.mrb[0].mxu0
    %v3324 = vadd.f32 0.0, %v3323
    %v3325 = vpop.f32.mrb[0].mxu0
    %3326 = vdwg.mxu0
    %3328 = vrot.lane.b32.xlu0 %v2740, 112
    %v3329 = vpop.permute.xlu0 %3328
    %v3332 = vsel %vm653, %v3243, 0
    %3334 = vmatprep.subr.mxu0 0.0
    %3335 = vmatpush1.msra.mxu0 %v3329
    %3336 = vmatprep.subr.mxu0 0.0
    %3337 = vmatpush1.msra.mxu0 0.0
    %3338 = vmatprep.subr.mxu0 0.0
    %3339 = vmatpush1.msra.mxu0 0.0
    %3340 = vmatprep.subr.mxu0 0.0
    %3341 = vmatpush1.msra.mxu0 0.0
    %3342 = vmatprep.subr.mxu0 0.0
    %3343 = vmatpush1.msra.mxu0 0.0
    %3344 = vmatprep.subr.mxu0 0.0
    %3345 = vmatpush1.msra.mxu0 0.0
    %3346 = vmatprep.subr.mxu0 0.0
    %3347 = vmatpush1.msra.mxu0 0.0
    %3348 = vmatprep.subr.mxu0 0.0
    %3349 = vmatpush1.msra.mxu0 0.0
    %3350 = vmatprep.subr.mxu0 0.0
    %3351 = vmatpush1.msra.mxu0 0.0
    %3352 = vmatprep.subr.mxu0 0.0
    %3353 = vmatpush1.msra.mxu0 0.0
    %3354 = vmatprep.subr.mxu0 0.0
    %3355 = vmatpush1.msra.mxu0 0.0
    %3356 = vmatprep.subr.mxu0 0.0
    %3357 = vmatpush1.msra.mxu0 0.0
    %3358 = vmatprep.subr.mxu0 0.0
    %3359 = vmatpush1.msra.mxu0 0.0
    %3360 = vmatprep.subr.mxu0 0.0
    %3361 = vmatpush1.msra.mxu0 0.0
    %3362 = vmatprep.subr.mxu0 0.0
    %3363 = vmatpush1.msra.mxu0 0.0
    %3364 = vmatprep.subr.mxu0 0.0
    %3365 = vmatpush1.msra.mxu0 0.0
    %3366 = vmatprep.subr.mxu0 0.0
    %3367 = vmatpush1.msra.mxu0 0.0
    %3368 = vmatprep.subr.mxu0 0.0
    %3369 = vmatpush1.msra.mxu0 0.0
    %3370 = vmatprep.subr.mxu0 0.0
    %3371 = vmatpush1.msra.mxu0 0.0
    %3372 = vmatprep.subr.mxu0 0.0
    %3373 = vmatpush1.msra.mxu0 0.0
    %3374 = vmatprep.subr.mxu0 0.0
    %3375 = vmatpush1.msra.mxu0 0.0
    %3376 = vmatprep.subr.mxu0 0.0
    %3377 = vmatpush1.msra.mxu0 0.0
    %3378 = vmatprep.subr.mxu0 0.0
    %3379 = vmatpush1.msra.mxu0 0.0
    %3380 = vmatprep.subr.mxu0 0.0
    %3381 = vmatpush1.msra.mxu0 0.0
    %3382 = vmatprep.subr.mxu0 0.0
    %3383 = vmatpush1.msra.mxu0 0.0
    %3384 = vmatprep.subr.mxu0 0.0
    %3385 = vmatpush1.msra.mxu0 0.0
    %3386 = vmatprep.subr.mxu0 0.0
    %3387 = vmatpush1.msra.mxu0 0.0
    %3388 = vmatprep.subr.mxu0 0.0
    %3389 = vmatpush1.msra.mxu0 0.0
    %3390 = vmatprep.subr.mxu0 0.0
    %3391 = vmatpush1.msra.mxu0 0.0
    %3392 = vmatprep.subr.mxu0 0.0
    %3393 = vmatpush1.msra.mxu0 0.0
    %3394 = vmatprep.subr.mxu0 0.0
    %3395 = vmatpush1.msra.mxu0 0.0
    %3396 = vmatprep.subr.mxu0 0.0
    %3397 = vmatpush1.msra.mxu0 0.0
    %3398 = vmatprep.mubr.f32.mxu0 0.0
    %3399 = vmatmul.mubr.f32.gmra.mrb[0].mxu0 %v3332
    %v3400 = vpop.f32.mrb[0].mxu0
    %v3401 = vadd.f32 0.0, %v3400
    %v3402 = vpop.f32.mrb[0].mxu0
    %3403 = vdwg.mxu0
    %v3404 = vrcp.pop %v3246
    %v3405 = vrcp.pop %v3249
    %v3406 = vmul.f32 %v3324, %v3404
    %v3407 = vmul.f32 %v3401, %v3405
    %v3409 = vsel %vm395, %v3406, 0
    %v3412 = vsel %vm395, %v3407, 0
    %3414 = vmatprep.subr.mxu0 0.0
    %3415 = vmatpush1.msra.mxu0 %v2746
    %3416 = vmatprep.subr.mxu0 0.0
    %3417 = vmatpush1.msra.mxu0 %v2747
    %3418 = vmatprep.subr.mxu0 0.0
    %3419 = vmatpush1.msra.mxu0 0.0
    %3420 = vmatprep.subr.mxu0 0.0
    %3421 = vmatpush1.msra.mxu0 0.0
    %3422 = vmatprep.subr.mxu0 0.0
    %3423 = vmatpush1.msra.mxu0 0.0
    %3424 = vmatprep.subr.mxu0 0.0
    %3425 = vmatpush1.msra.mxu0 0.0
    %3426 = vmatprep.subr.mxu0 0.0
    %3427 = vmatpush1.msra.mxu0 0.0
    %3428 = vmatprep.subr.mxu0 0.0
    %3429 = vmatpush1.msra.mxu0 0.0
    %3430 = vmatprep.subr.mxu0 0.0
    %3431 = vmatpush1.msra.mxu0 0.0
    %3432 = vmatprep.subr.mxu0 0.0
    %3433 = vmatpush1.msra.mxu0 0.0
    %3434 = vmatprep.subr.mxu0 0.0
    %3435 = vmatpush1.msra.mxu0 0.0
    %3436 = vmatprep.subr.mxu0 0.0
    %3437 = vmatpush1.msra.mxu0 0.0
    %3438 = vmatprep.subr.mxu0 0.0
    %3439 = vmatpush1.msra.mxu0 0.0
    %3440 = vmatprep.subr.mxu0 0.0
    %3441 = vmatpush1.msra.mxu0 0.0
    %3442 = vmatprep.subr.mxu0 0.0
    %3443 = vmatpush1.msra.mxu0 0.0
    %3444 = vmatprep.subr.mxu0 0.0
    %3445 = vmatpush1.msra.mxu0 0.0
    %3446 = vmatprep.subr.mxu0 0.0
    %3447 = vmatpush1.msra.mxu0 0.0
    %3448 = vmatprep.subr.mxu0 0.0
    %3449 = vmatpush1.msra.mxu0 0.0
    %3450 = vmatprep.subr.mxu0 0.0
    %3451 = vmatpush1.msra.mxu0 0.0
    %3452 = vmatprep.subr.mxu0 0.0
    %3453 = vmatpush1.msra.mxu0 0.0
    %3454 = vmatprep.subr.mxu0 0.0
    %3455 = vmatpush1.msra.mxu0 0.0
    %3456 = vmatprep.subr.mxu0 0.0
    %3457 = vmatpush1.msra.mxu0 0.0
    %3458 = vmatprep.subr.mxu0 0.0
    %3459 = vmatpush1.msra.mxu0 0.0
    %3460 = vmatprep.subr.mxu0 0.0
    %3461 = vmatpush1.msra.mxu0 0.0
    %3462 = vmatprep.subr.mxu0 0.0
    %3463 = vmatpush1.msra.mxu0 0.0
    %3464 = vmatprep.subr.mxu0 0.0
    %3465 = vmatpush1.msra.mxu0 0.0
    %3466 = vmatprep.subr.mxu0 0.0
    %3467 = vmatpush1.msra.mxu0 0.0
    %3468 = vmatprep.subr.mxu0 0.0
    %3469 = vmatpush1.msra.mxu0 0.0
    %3470 = vmatprep.subr.mxu0 0.0
    %3471 = vmatpush1.msra.mxu0 0.0
    %3472 = vmatprep.subr.mxu0 0.0
    %3473 = vmatpush1.msra.mxu0 0.0
    %3474 = vmatprep.subr.mxu0 0.0
    %3475 = vmatpush1.msra.mxu0 0.0
    %3476 = vmatprep.subr.mxu0 0.0
    %3477 = vmatpush1.msra.mxu0 0.0
    %3478 = vmatprep.mubr.f32.mxu0 0.0
    %3479 = vmatmul.mubr.f32.gmra.mrb[0].mxu0 %v3409
    %v3480 = vpop.f32.mrb[0].mxu0
    %v3481 = vadd.f32 0.0, %v3480
    %v3482 = vpop.f32.mrb[0].mxu0
    %3483 = vmatprep.mubr.f32.mxu0 0.0
    %3484 = vmatmul.mubr.f32.gmra.mrb[0].mxu0 %v3412
    %v3485 = vpop.f32.mrb[0].mxu0
    %v3486 = vadd.f32 0.0, %v3485
    %v3487 = vpop.f32.mrb[0].mxu0
    %3488 = vdwg.mxu0
    %v3490 = vsel %vm395, %v3074, 0
    %v3493 = vsel %vm395, %v3075, 0
    %3495 = vmatprep.subr.mxu0 0.0
    %3496 = vmatpush1.msra.mxu0 %v2744
    %3497 = vmatprep.subr.mxu0 0.0
    %3498 = vmatpush1.msra.mxu0 %v2745
    %3499 = vmatprep.subr.mxu0 0.0
    %3500 = vmatpush1.msra.mxu0 0.0
    %3501 = vmatprep.subr.mxu0 0.0
    %3502 = vmatpush1.msra.mxu0 0.0
    %3503 = vmatprep.subr.mxu0 0.0
    %3504 = vmatpush1.msra.mxu0 0.0
    %3505 = vmatprep.subr.mxu0 0.0
    %3506 = vmatpush1.msra.mxu0 0.0
    %3507 = vmatprep.subr.mxu0 0.0
    %3508 = vmatpush1.msra.mxu0 0.0
    %3509 = vmatprep.subr.mxu0 0.0
    %3510 = vmatpush1.msra.mxu0 0.0
    %3511 = vmatprep.subr.mxu0 0.0
    %3512 = vmatpush1.msra.mxu0 0.0
    %3513 = vmatprep.subr.mxu0 0.0
    %3514 = vmatpush1.msra.mxu0 0.0
    %3515 = vmatprep.subr.mxu0 0.0
    %3516 = vmatpush1.msra.mxu0 0.0
    %3517 = vmatprep.subr.mxu0 0.0
    %3518 = vmatpush1.msra.mxu0 0.0
    %3519 = vmatprep.subr.mxu0 0.0
    %3520 = vmatpush1.msra.mxu0 0.0
    %3521 = vmatprep.subr.mxu0 0.0
    %3522 = vmatpush1.msra.mxu0 0.0
    %3523 = vmatprep.subr.mxu0 0.0
    %3524 = vmatpush1.msra.mxu0 0.0
    %3525 = vmatprep.subr.mxu0 0.0
    %3526 = vmatpush1.msra.mxu0 0.0
    %3527 = vmatprep.subr.mxu0 0.0
    %3528 = vmatpush1.msra.mxu0 0.0
    %3529 = vmatprep.subr.mxu0 0.0
    %3530 = vmatpush1.msra.mxu0 0.0
    %3531 = vmatprep.subr.mxu0 0.0
    %3532 = vmatpush1.msra.mxu0 0.0
    %3533 = vmatprep.subr.mxu0 0.0
    %3534 = vmatpush1.msra.mxu0 0.0
    %3535 = vmatprep.subr.mxu0 0.0
    %3536 = vmatpush1.msra.mxu0 0.0
    %3537 = vmatprep.subr.mxu0 0.0
    %3538 = vmatpush1.msra.mxu0 0.0
    %3539 = vmatprep.subr.mxu0 0.0
    %3540 = vmatpush1.msra.mxu0 0.0
    %3541 = vmatprep.subr.mxu0 0.0
    %3542 = vmatpush1.msra.mxu0 0.0
    %3543 = vmatprep.subr.mxu0 0.0
    %3544 = vmatpush1.msra.mxu0 0.0
    %3545 = vmatprep.subr.mxu0 0.0
    %3546 = vmatpush1.msra.mxu0 0.0
    %3547 = vmatprep.subr.mxu0 0.0
    %3548 = vmatpush1.msra.mxu0 0.0
    %3549 = vmatprep.subr.mxu0 0.0
    %3550 = vmatpush1.msra.mxu0 0.0
    %3551 = vmatprep.subr.mxu0 0.0
    %3552 = vmatpush1.msra.mxu0 0.0
    %3553 = vmatprep.subr.mxu0 0.0
    %3554 = vmatpush1.msra.mxu0 0.0
    %3555 = vmatprep.subr.mxu0 0.0
    %3556 = vmatpush1.msra.mxu0 0.0
    %3557 = vmatprep.subr.mxu0 0.0
    %3558 = vmatpush1.msra.mxu0 0.0
    %3559 = vmatprep.mubr.f32.mxu0 0.0
    %3560 = vmatmul.mubr.f32.gmra.mrb[0].mxu0 %v3490
    %v3561 = vpop.f32.mrb[0].mxu0
    %v3562 = vadd.f32 %v3481, %v3561
    %v3563 = vpop.f32.mrb[0].mxu0
    %3564 = vmatprep.mubr.f32.mxu0 0.0
    %3565 = vmatmul.mubr.f32.gmra.mrb[0].mxu0 %v3493
    %v3566 = vpop.f32.mrb[0].mxu0
    %v3567 = vadd.f32 %v3486, %v3566
    %v3568 = vpop.f32.mrb[0].mxu0
    %3569 = vdwg.mxu0
    %3570 = vrot.lane.b32.xlu0 %v2741, 96
    %v3571 = vpop.permute.xlu0 %3570
    %3572 = vrot.lane.b32.xlu0 %v2737, 32
    %v3573 = vpop.permute.xlu0 %3572
    %v3574 = vsel %vm395, %v3571, 0
    %v3576 = vsel %vm395, %v3573, 0
    %3578 = vmatprep.subr.mxu0 0.0
    %3579 = vmatpush1.xpose.msra.mxu0 %v3576
    %3580 = vmatprep.subr.mxu0 0.0
    %3581 = vmatpush1.xpose.msra.mxu0 0.0
    %3582 = vmatprep.subr.mxu0 0.0
    %3583 = vmatpush1.xpose.msra.mxu0 0.0
    %3584 = vmatprep.subr.mxu0 0.0
    %3585 = vmatpush1.xpose.msra.mxu0 0.0
    %3586 = vmatprep.subr.mxu0 0.0
    %3587 = vmatpush1.xpose.msra.mxu0 0.0
    %3588 = vmatprep.subr.mxu0 0.0
    %3589 = vmatpush1.xpose.msra.mxu0 0.0
    %3590 = vmatprep.subr.mxu0 0.0
    %3591 = vmatpush1.xpose.msra.mxu0 0.0
    %3592 = vmatprep.subr.mxu0 0.0
    %3593 = vmatpush1.xpose.msra.mxu0 0.0
    %3594 = vmatprep.subr.mxu0 0.0
    %3595 = vmatpush1.xpose.msra.mxu0 0.0
    %3596 = vmatprep.subr.mxu0 0.0
    %3597 = vmatpush1.xpose.msra.mxu0 0.0
    %3598 = vmatprep.subr.mxu0 0.0
    %3599 = vmatpush1.xpose.msra.mxu0 0.0
    %3600 = vmatprep.subr.mxu0 0.0
    %3601 = vmatpush1.xpose.msra.mxu0 0.0
    %3602 = vmatprep.subr.mxu0 0.0
    %3603 = vmatpush1.xpose.msra.mxu0 0.0
    %3604 = vmatprep.subr.mxu0 0.0
    %3605 = vmatpush1.xpose.msra.mxu0 0.0
    %3606 = vmatprep.subr.mxu0 0.0
    %3607 = vmatpush1.xpose.msra.mxu0 0.0
    %3608 = vmatprep.subr.mxu0 0.0
    %3609 = vmatpush1.xpose.msra.mxu0 0.0
    %3610 = vmatprep.subr.mxu0 0.0
    %3611 = vmatpush1.xpose.msra.mxu0 0.0
    %3612 = vmatprep.subr.mxu0 0.0
    %3613 = vmatpush1.xpose.msra.mxu0 0.0
    %3614 = vmatprep.subr.mxu0 0.0
    %3615 = vmatpush1.xpose.msra.mxu0 0.0
    %3616 = vmatprep.subr.mxu0 0.0
    %3617 = vmatpush1.xpose.msra.mxu0 0.0
    %3618 = vmatprep.subr.mxu0 0.0
    %3619 = vmatpush1.xpose.msra.mxu0 0.0
    %3620 = vmatprep.subr.mxu0 0.0
    %3621 = vmatpush1.xpose.msra.mxu0 0.0
    %3622 = vmatprep.subr.mxu0 0.0
    %3623 = vmatpush1.xpose.msra.mxu0 0.0
    %3624 = vmatprep.subr.mxu0 0.0
    %3625 = vmatpush1.xpose.msra.mxu0 0.0
    %3626 = vmatprep.subr.mxu0 0.0
    %3627 = vmatpush1.xpose.msra.mxu0 0.0
    %3628 = vmatprep.subr.mxu0 0.0
    %3629 = vmatpush1.xpose.msra.mxu0 0.0
    %3630 = vmatprep.subr.mxu0 0.0
    %3631 = vmatpush1.xpose.msra.mxu0 0.0
    %3632 = vmatprep.subr.mxu0 0.0
    %3633 = vmatpush1.xpose.msra.mxu0 0.0
    %3634 = vmatprep.subr.mxu0 0.0
    %3635 = vmatpush1.xpose.msra.mxu0 0.0
    %3636 = vmatprep.subr.mxu0 0.0
    %3637 = vmatpush1.xpose.msra.mxu0 0.0
    %3638 = vmatprep.subr.mxu0 0.0
    %3639 = vmatpush1.xpose.msra.mxu0 0.0
    %3640 = vmatprep.subr.mxu0 0.0
    %3641 = vmatpush1.xpose.msra.mxu0 0.0
    %3642 = vmatprep.mubr.f32.mxu0 0.0
    %3643 = vmatmul.mubr.f32.gmra.mrb[0].mxu0 %v3574
    %v3644 = vpop.f32.mrb[0].mxu0
    %v3645 = vadd.f32 %v154, %v3644
    %v3646 = vpop.f32.mrb[0].mxu0
    %3647 = vdwg.mxu0
    %3648 = vrot.lane.b32.xlu0 %v2742, 96
    %v3649 = vpop.permute.xlu0 %3648
    %3650 = vrot.lane.b32.xlu0 %v2739, 32
    %v3651 = vpop.permute.xlu0 %3650
    %v3652 = vsel %vm395, %v3649, 0
    %v3654 = vsel %vm395, %v3651, 0
    %3656 = vmatprep.subr.mxu0 0.0
    %3657 = vmatpush1.xpose.msra.mxu0 %v3654
    %3658 = vmatprep.subr.mxu0 0.0
    %3659 = vmatpush1.xpose.msra.mxu0 0.0
    %3660 = vmatprep.subr.mxu0 0.0
    %3661 = vmatpush1.xpose.msra.mxu0 0.0
    %3662 = vmatprep.subr.mxu0 0.0
    %3663 = vmatpush1.xpose.msra.mxu0 0.0
    %3664 = vmatprep.subr.mxu0 0.0
    %3665 = vmatpush1.xpose.msra.mxu0 0.0
    %3666 = vmatprep.subr.mxu0 0.0
    %3667 = vmatpush1.xpose.msra.mxu0 0.0
    %3668 = vmatprep.subr.mxu0 0.0
    %3669 = vmatpush1.xpose.msra.mxu0 0.0
    %3670 = vmatprep.subr.mxu0 0.0
    %3671 = vmatpush1.xpose.msra.mxu0 0.0
    %3672 = vmatprep.subr.mxu0 0.0
    %3673 = vmatpush1.xpose.msra.mxu0 0.0
    %3674 = vmatprep.subr.mxu0 0.0
    %3675 = vmatpush1.xpose.msra.mxu0 0.0
    %3676 = vmatprep.subr.mxu0 0.0
    %3677 = vmatpush1.xpose.msra.mxu0 0.0
    %3678 = vmatprep.subr.mxu0 0.0
    %3679 = vmatpush1.xpose.msra.mxu0 0.0
    %3680 = vmatprep.subr.mxu0 0.0
    %3681 = vmatpush1.xpose.msra.mxu0 0.0
    %3682 = vmatprep.subr.mxu0 0.0
    %3683 = vmatpush1.xpose.msra.mxu0 0.0
    %3684 = vmatprep.subr.mxu0 0.0
    %3685 = vmatpush1.xpose.msra.mxu0 0.0
    %3686 = vmatprep.subr.mxu0 0.0
    %3687 = vmatpush1.xpose.msra.mxu0 0.0
    %3688 = vmatprep.subr.mxu0 0.0
    %3689 = vmatpush1.xpose.msra.mxu0 0.0
    %3690 = vmatprep.subr.mxu0 0.0
    %3691 = vmatpush1.xpose.msra.mxu0 0.0
    %3692 = vmatprep.subr.mxu0 0.0
    %3693 = vmatpush1.xpose.msra.mxu0 0.0
    %3694 = vmatprep.subr.mxu0 0.0
    %3695 = vmatpush1.xpose.msra.mxu0 0.0
    %3696 = vmatprep.subr.mxu0 0.0
    %3697 = vmatpush1.xpose.msra.mxu0 0.0
    %3698 = vmatprep.subr.mxu0 0.0
    %3699 = vmatpush1.xpose.msra.mxu0 0.0
    %3700 = vmatprep.subr.mxu0 0.0
    %3701 = vmatpush1.xpose.msra.mxu0 0.0
    %3702 = vmatprep.subr.mxu0 0.0
    %3703 = vmatpush1.xpose.msra.mxu0 0.0
    %3704 = vmatprep.subr.mxu0 0.0
    %3705 = vmatpush1.xpose.msra.mxu0 0.0
    %3706 = vmatprep.subr.mxu0 0.0
    %3707 = vmatpush1.xpose.msra.mxu0 0.0
    %3708 = vmatprep.subr.mxu0 0.0
    %3709 = vmatpush1.xpose.msra.mxu0 0.0
    %3710 = vmatprep.subr.mxu0 0.0
    %3711 = vmatpush1.xpose.msra.mxu0 0.0
    %3712 = vmatprep.subr.mxu0 0.0
    %3713 = vmatpush1.xpose.msra.mxu0 0.0
    %3714 = vmatprep.subr.mxu0 0.0
    %3715 = vmatpush1.xpose.msra.mxu0 0.0
    %3716 = vmatprep.subr.mxu0 0.0
    %3717 = vmatpush1.xpose.msra.mxu0 0.0
    %3718 = vmatprep.subr.mxu0 0.0
    %3719 = vmatpush1.xpose.msra.mxu0 0.0
    %3720 = vmatprep.mubr.f32.mxu0 0.0
    %3721 = vmatmul.mubr.f32.gmra.mrb[0].mxu0 %v3652
    %v3722 = vpop.f32.mrb[0].mxu0
    %v3723 = vadd.f32 %v155, %v3722
    %v3724 = vpop.f32.mrb[0].mxu0
    %3725 = vdwg.mxu0
    %v3726 = vsel %vm653, %v3645, -inf
    %3727 = vmax.xlane.f32.xlu0 %v3726
    %v3728 = vpop.xlane.xlu0 %3727
    %v3729 = vsel %vm653, %v3723, -inf
    %3730 = vmax.xlane.f32.xlu0 %v3729
    %v3731 = vpop.xlane.xlu0 %3730
    %v3732 = vsub.f32 %v3645, %v3728
    %v3733 = vsub.f32 %v3723, %v3731
    %v3734 = vmul.f32 %v3732, 1.442695
    %v3735 = vpow.pop %v3734
    %v3736 = vmul.f32 %v3733, 1.442695
    %v3737 = vpow.pop %v3736
    %v3738 = vsel %vm653, %v3735, 0.0
    %3739 = vadd.xlane.f32.xlu0 %v3738
    %v3740 = vpop.xlane.xlu0 %3739
    %v3741 = vsel %vm653, %v3737, 0.0
    %3742 = vadd.xlane.f32.xlu0 %v3741
    %v3743 = vpop.xlane.xlu0 %3742
    %3744 = vrot.lane.b32.xlu0 %v2738, 96
    %v3745 = vpop.permute.xlu0 %3744
    %v3748 = vsel %vm653, %v3735, 0
    %3750 = vmatprep.subr.mxu0 0.0
    %3751 = vmatpush1.msra.mxu0 %v3745
    %3752 = vmatprep.subr.mxu0 0.0
    %3753 = vmatpush1.msra.mxu0 0.0
    %3754 = vmatprep.subr.mxu0 0.0
    %3755 = vmatpush1.msra.mxu0 0.0
    %3756 = vmatprep.subr.mxu0 0.0
    %3757 = vmatpush1.msra.mxu0 0.0
    %3758 = vmatprep.subr.mxu0 0.0
    %3759 = vmatpush1.msra.mxu0 0.0
    %3760 = vmatprep.subr.mxu0 0.0
    %3761 = vmatpush1.msra.mxu0 0.0
    %3762 = vmatprep.subr.mxu0 0.0
    %3763 = vmatpush1.msra.mxu0 0.0
    %3764 = vmatprep.subr.mxu0 0.0
    %3765 = vmatpush1.msra.mxu0 0.0
    %3766 = vmatprep.subr.mxu0 0.0
    %3767 = vmatpush1.msra.mxu0 0.0
    %3768 = vmatprep.subr.mxu0 0.0
    %3769 = vmatpush1.msra.mxu0 0.0
    %3770 = vmatprep.subr.mxu0 0.0
    %3771 = vmatpush1.msra.mxu0 0.0
    %3772 = vmatprep.subr.mxu0 0.0
    %3773 = vmatpush1.msra.mxu0 0.0
    %3774 = vmatprep.subr.mxu0 0.0
    %3775 = vmatpush1.msra.mxu0 0.0
    %3776 = vmatprep.subr.mxu0 0.0
    %3777 = vmatpush1.msra.mxu0 0.0
    %3778 = vmatprep.subr.mxu0 0.0
    %3779 = vmatpush1.msra.mxu0 0.0
    %3780 = vmatprep.subr.mxu0 0.0
    %3781 = vmatpush1.msra.mxu0 0.0
    %3782 = vmatprep.subr.mxu0 0.0
    %3783 = vmatpush1.msra.mxu0 0.0
    %3784 = vmatprep.subr.mxu0 0.0
    %3785 = vmatpush1.msra.mxu0 0.0
    %3786 = vmatprep.subr.mxu0 0.0
    %3787 = vmatpush1.msra.mxu0 0.0
    %3788 = vmatprep.subr.mxu0 0.0
    %3789 = vmatpush1.msra.mxu0 0.0
    %3790 = vmatprep.subr.mxu0 0.0
    %3791 = vmatpush1.msra.mxu0 0.0
    %3792 = vmatprep.subr.mxu0 0.0
    %3793 = vmatpush1.msra.mxu0 0.0
    %3794 = vmatprep.subr.mxu0 0.0
    %3795 = vmatpush1.msra.mxu0 0.0
    %3796 = vmatprep.subr.mxu0 0.0
    %3797 = vmatpush1.msra.mxu0 0.0
    %3798 = vmatprep.subr.mxu0 0.0
    %3799 = vmatpush1.msra.mxu0 0.0
    %3800 = vmatprep.subr.mxu0 0.0
    %3801 = vmatpush1.msra.mxu0 0.0
    %3802 = vmatprep.subr.mxu0 0.0
    %3803 = vmatpush1.msra.mxu0 0.0
    %3804 = vmatprep.subr.mxu0 0.0
    %3805 = vmatpush1.msra.mxu0 0.0
    %3806 = vmatprep.subr.mxu0 0.0
    %3807 = vmatpush1.msra.mxu0 0.0
    %3808 = vmatprep.subr.mxu0 0.0
    %3809 = vmatpush1.msra.mxu0 0.0
    %3810 = vmatprep.subr.mxu0 0.0
    %3811 = vmatpush1.msra.mxu0 0.0
    %3812 = vmatprep.subr.mxu0 0.0
    %3813 = vmatpush1.msra.mxu0 0.0
    %3814 = vmatprep.mubr.f32.mxu0 0.0
    %3815 = vmatmul.mubr.f32.gmra.mrb[0].mxu0 %v3748
    %v3816 = vpop.f32.mrb[0].mxu0
    %v3817 = vadd.f32 0.0, %v3816
    %v3818 = vpop.f32.mrb[0].mxu0
    %3819 = vdwg.mxu0
    %3820 = vrot.lane.b32.xlu0 %v2740, 96
    %v3821 = vpop.permute.xlu0 %3820
    %v3824 = vsel %vm653, %v3737, 0
    %3826 = vmatprep.subr.mxu0 0.0
    %3827 = vmatpush1.msra.mxu0 %v3821
    %3828 = vmatprep.subr.mxu0 0.0
    %3829 = vmatpush1.msra.mxu0 0.0
    %3830 = vmatprep.subr.mxu0 0.0
    %3831 = vmatpush1.msra.mxu0 0.0
    %3832 = vmatprep.subr.mxu0 0.0
    %3833 = vmatpush1.msra.mxu0 0.0
    %3834 = vmatprep.subr.mxu0 0.0
    %3835 = vmatpush1.msra.mxu0 0.0
    %3836 = vmatprep.subr.mxu0 0.0
    %3837 = vmatpush1.msra.mxu0 0.0
    %3838 = vmatprep.subr.mxu0 0.0
    %3839 = vmatpush1.msra.mxu0 0.0
    %3840 = vmatprep.subr.mxu0 0.0
    %3841 = vmatpush1.msra.mxu0 0.0
    %3842 = vmatprep.subr.mxu0 0.0
    %3843 = vmatpush1.msra.mxu0 0.0
    %3844 = vmatprep.subr.mxu0 0.0
    %3845 = vmatpush1.msra.mxu0 0.0
    %3846 = vmatprep.subr.mxu0 0.0
    %3847 = vmatpush1.msra.mxu0 0.0
    %3848 = vmatprep.subr.mxu0 0.0
    %3849 = vmatpush1.msra.mxu0 0.0
    %3850 = vmatprep.subr.mxu0 0.0
    %3851 = vmatpush1.msra.mxu0 0.0
    %3852 = vmatprep.subr.mxu0 0.0
    %3853 = vmatpush1.msra.mxu0 0.0
    %3854 = vmatprep.subr.mxu0 0.0
    %3855 = vmatpush1.msra.mxu0 0.0
    %3856 = vmatprep.subr.mxu0 0.0
    %3857 = vmatpush1.msra.mxu0 0.0
    %3858 = vmatprep.subr.mxu0 0.0
    %3859 = vmatpush1.msra.mxu0 0.0
    %3860 = vmatprep.subr.mxu0 0.0
    %3861 = vmatpush1.msra.mxu0 0.0
    %3862 = vmatprep.subr.mxu0 0.0
    %3863 = vmatpush1.msra.mxu0 0.0
    %3864 = vmatprep.subr.mxu0 0.0
    %3865 = vmatpush1.msra.mxu0 0.0
    %3866 = vmatprep.subr.mxu0 0.0
    %3867 = vmatpush1.msra.mxu0 0.0
    %3868 = vmatprep.subr.mxu0 0.0
    %3869 = vmatpush1.msra.mxu0 0.0
    %3870 = vmatprep.subr.mxu0 0.0
    %3871 = vmatpush1.msra.mxu0 0.0
    %3872 = vmatprep.subr.mxu0 0.0
    %3873 = vmatpush1.msra.mxu0 0.0
    %3874 = vmatprep.subr.mxu0 0.0
    %3875 = vmatpush1.msra.mxu0 0.0
    %3876 = vmatprep.subr.mxu0 0.0
    %3877 = vmatpush1.msra.mxu0 0.0
    %3878 = vmatprep.subr.mxu0 0.0
    %3879 = vmatpush1.msra.mxu0 0.0
    %3880 = vmatprep.subr.mxu0 0.0
    %3881 = vmatpush1.msra.mxu0 0.0
    %3882 = vmatprep.subr.mxu0 0.0
    %3883 = vmatpush1.msra.mxu0 0.0
    %3884 = vmatprep.subr.mxu0 0.0
    %3885 = vmatpush1.msra.mxu0 0.0
    %3886 = vmatprep.subr.mxu0 0.0
    %3887 = vmatpush1.msra.mxu0 0.0
    %3888 = vmatprep.subr.mxu0 0.0
    %3889 = vmatpush1.msra.mxu0 0.0
    %3890 = vmatprep.mubr.f32.mxu0 0.0
    %3891 = vmatmul.mubr.f32.gmra.mrb[0].mxu0 %v3824
    %v3892 = vpop.f32.mrb[0].mxu0
    %v3893 = vadd.f32 0.0, %v3892
    %v3894 = vpop.f32.mrb[0].mxu0
    %3895 = vdwg.mxu0
    %v3896 = vrcp.pop %v3740
    %v3897 = vrcp.pop %v3743
    %v3898 = vmul.f32 %v3817, %v3896
    %v3899 = vmul.f32 %v3893, %v3897
    %v3901 = vsel %vm395, %v3898, 0
    %v3904 = vsel %vm395, %v3899, 0
    %3906 = vmatprep.subr.mxu0 0.0
    %3907 = vmatpush1.msra.mxu0 %v2748
    %3908 = vmatprep.subr.mxu0 0.0
    %3909 = vmatpush1.msra.mxu0 %v2749
    %3910 = vmatprep.subr.mxu0 0.0
    %3911 = vmatpush1.msra.mxu0 0.0
    %3912 = vmatprep.subr.mxu0 0.0
    %3913 = vmatpush1.msra.mxu0 0.0
    %3914 = vmatprep.subr.mxu0 0.0
    %3915 = vmatpush1.msra.mxu0 0.0
    %3916 = vmatprep.subr.mxu0 0.0
    %3917 = vmatpush1.msra.mxu0 0.0
    %3918 = vmatprep.subr.mxu0 0.0
    %3919 = vmatpush1.msra.mxu0 0.0
    %3920 = vmatprep.subr.mxu0 0.0
    %3921 = vmatpush1.msra.mxu0 0.0
    %3922 = vmatprep.subr.mxu0 0.0
    %3923 = vmatpush1.msra.mxu0 0.0
    %3924 = vmatprep.subr.mxu0 0.0
    %3925 = vmatpush1.msra.mxu0 0.0
    %3926 = vmatprep.subr.mxu0 0.0
    %3927 = vmatpush1.msra.mxu0 0.0
    %3928 = vmatprep.subr.mxu0 0.0
    %3929 = vmatpush1.msra.mxu0 0.0
    %3930 = vmatprep.subr.mxu0 0.0
    %3931 = vmatpush1.msra.mxu0 0.0
    %3932 = vmatprep.subr.mxu0 0.0
    %3933 = vmatpush1.msra.mxu0 0.0
    %3934 = vmatprep.subr.mxu0 0.0
    %3935 = vmatpush1.msra.mxu0 0.0
    %3936 = vmatprep.subr.mxu0 0.0
    %3937 = vmatpush1.msra.mxu0 0.0
    %3938 = vmatprep.subr.mxu0 0.0
    %3939 = vmatpush1.msra.mxu0 0.0
    %3940 = vmatprep.subr.mxu0 0.0
    %3941 = vmatpush1.msra.mxu0 0.0
    %3942 = vmatprep.subr.mxu0 0.0
    %3943 = vmatpush1.msra.mxu0 0.0
    %3944 = vmatprep.subr.mxu0 0.0
    %3945 = vmatpush1.msra.mxu0 0.0
    %3946 = vmatprep.subr.mxu0 0.0
    %3947 = vmatpush1.msra.mxu0 0.0
    %3948 = vmatprep.subr.mxu0 0.0
    %3949 = vmatpush1.msra.mxu0 0.0
    %3950 = vmatprep.subr.mxu0 0.0
    %3951 = vmatpush1.msra.mxu0 0.0
    %3952 = vmatprep.subr.mxu0 0.0
    %3953 = vmatpush1.msra.mxu0 0.0
    %3954 = vmatprep.subr.mxu0 0.0
    %3955 = vmatpush1.msra.mxu0 0.0
    %3956 = vmatprep.subr.mxu0 0.0
    %3957 = vmatpush1.msra.mxu0 0.0
    %3958 = vmatprep.subr.mxu0 0.0
    %3959 = vmatpush1.msra.mxu0 0.0
    %3960 = vmatprep.subr.mxu0 0.0
    %3961 = vmatpush1.msra.mxu0 0.0
    %3962 = vmatprep.subr.mxu0 0.0
    %3963 = vmatpush1.msra.mxu0 0.0
    %3964 = vmatprep.subr.mxu0 0.0
    %3965 = vmatpush1.msra.mxu0 0.0
    %3966 = vmatprep.subr.mxu0 0.0
    %3967 = vmatpush1.msra.mxu0 0.0
    %3968 = vmatprep.subr.mxu0 0.0
    %3969 = vmatpush1.msra.mxu0 0.0
    %3970 = vmatprep.mubr.f32.mxu0 0.0
    %3971 = vmatmul.mubr.f32.gmra.mrb[0].mxu0 %v3901
    %v3972 = vpop.f32.mrb[0].mxu0
    %v3973 = vadd.f32 0.0, %v3972
    %v3974 = vpop.f32.mrb[0].mxu0
    %3975 = vmatprep.mubr.f32.mxu0 0.0
    %3976 = vmatmul.mubr.f32.gmra.mrb[0].mxu0 %v3904
    %v3977 = vpop.f32.mrb[0].mxu0
    %v3978 = vadd.f32 0.0, %v3977
    %v3979 = vpop.f32.mrb[0].mxu0
    %3980 = vdwg.mxu0
    %v3981 = vadd.f32 %v3562, %v3973
    %v3982 = vadd.f32 %v3567, %v3978
    %3983 = vrot.lane.b32.xlu0 %v2741, 80
    %v3984 = vpop.permute.xlu0 %3983
    %3985 = vrot.lane.b32.xlu0 %v2737, 16
    %v3986 = vpop.permute.xlu0 %3985
    %v3987 = vsel %vm395, %v3984, 0
    %v3989 = vsel %vm395, %v3986, 0
    %3991 = vmatprep.subr.mxu0 0.0
    %3992 = vmatpush1.xpose.msra.mxu0 %v3989
    %3993 = vmatprep.subr.mxu0 0.0
    %3994 = vmatpush1.xpose.msra.mxu0 0.0
    %3995 = vmatprep.subr.mxu0 0.0
    %3996 = vmatpush1.xpose.msra.mxu0 0.0
    %3997 = vmatprep.subr.mxu0 0.0
    %3998 = vmatpush1.xpose.msra.mxu0 0.0
    %3999 = vmatprep.subr.mxu0 0.0
    %4000 = vmatpush1.xpose.msra.mxu0 0.0
    %4001 = vmatprep.subr.mxu0 0.0
    %4002 = vmatpush1.xpose.msra.mxu0 0.0
    %4003 = vmatprep.subr.mxu0 0.0
    %4004 = vmatpush1.xpose.msra.mxu0 0.0
    %4005 = vmatprep.subr.mxu0 0.0
    %4006 = vmatpush1.xpose.msra.mxu0 0.0
    %4007 = vmatprep.subr.mxu0 0.0
    %4008 = vmatpush1.xpose.msra.mxu0 0.0
    %4009 = vmatprep.subr.mxu0 0.0
    %4010 = vmatpush1.xpose.msra.mxu0 0.0
    %4011 = vmatprep.subr.mxu0 0.0
    %4012 = vmatpush1.xpose.msra.mxu0 0.0
    %4013 = vmatprep.subr.mxu0 0.0
    %4014 = vmatpush1.xpose.msra.mxu0 0.0
    %4015 = vmatprep.subr.mxu0 0.0
    %4016 = vmatpush1.xpose.msra.mxu0 0.0
    %4017 = vmatprep.subr.mxu0 0.0
    %4018 = vmatpush1.xpose.msra.mxu0 0.0
    %4019 = vmatprep.subr.mxu0 0.0
    %4020 = vmatpush1.xpose.msra.mxu0 0.0
    %4021 = vmatprep.subr.mxu0 0.0
    %4022 = vmatpush1.xpose.msra.mxu0 0.0
    %4023 = vmatprep.subr.mxu0 0.0
    %4024 = vmatpush1.xpose.msra.mxu0 0.0
    %4025 = vmatprep.subr.mxu0 0.0
    %4026 = vmatpush1.xpose.msra.mxu0 0.0
    %4027 = vmatprep.subr.mxu0 0.0
    %4028 = vmatpush1.xpose.msra.mxu0 0.0
    %4029 = vmatprep.subr.mxu0 0.0
    %4030 = vmatpush1.xpose.msra.mxu0 0.0
    %4031 = vmatprep.subr.mxu0 0.0
    %4032 = vmatpush1.xpose.msra.mxu0 0.0
    %4033 = vmatprep.subr.mxu0 0.0
    %4034 = vmatpush1.xpose.msra.mxu0 0.0
    %4035 = vmatprep.subr.mxu0 0.0
    %4036 = vmatpush1.xpose.msra.mxu0 0.0
    %4037 = vmatprep.subr.mxu0 0.0
    %4038 = vmatpush1.xpose.msra.mxu0 0.0
    %4039 = vmatprep.subr.mxu0 0.0
    %4040 = vmatpush1.xpose.msra.mxu0 0.0
    %4041 = vmatprep.subr.mxu0 0.0
    %4042 = vmatpush1.xpose.msra.mxu0 0.0
    %4043 = vmatprep.subr.mxu0 0.0
    %4044 = vmatpush1.xpose.msra.mxu0 0.0
    %4045 = vmatprep.subr.mxu0 0.0
    %4046 = vmatpush1.xpose.msra.mxu0 0.0
    %4047 = vmatprep.subr.mxu0 0.0
    %4048 = vmatpush1.xpose.msra.mxu0 0.0
    %4049 = vmatprep.subr.mxu0 0.0
    %4050 = vmatpush1.xpose.msra.mxu0 0.0
    %4051 = vmatprep.subr.mxu0 0.0
    %4052 = vmatpush1.xpose.msra.mxu0 0.0
    %4053 = vmatprep.subr.mxu0 0.0
    %4054 = vmatpush1.xpose.msra.mxu0 0.0
    %4055 = vmatprep.mubr.f32.mxu0 0.0
    %4056 = vmatmul.mubr.f32.gmra.mrb[0].mxu0 %v3987
    %v4057 = vpop.f32.mrb[0].mxu0
    %v4058 = vadd.f32 %v154, %v4057
    %v4059 = vpop.f32.mrb[0].mxu0
    %4060 = vdwg.mxu0
    %4061 = vrot.lane.b32.xlu0 %v2742, 80
    %v4062 = vpop.permute.xlu0 %4061
    %4063 = vrot.lane.b32.xlu0 %v2739, 16
    %v4064 = vpop.permute.xlu0 %4063
    %v4065 = vsel %vm395, %v4062, 0
    %v4067 = vsel %vm395, %v4064, 0
    %4069 = vmatprep.subr.mxu0 0.0
    %4070 = vmatpush1.xpose.msra.mxu0 %v4067
    %4071 = vmatprep.subr.mxu0 0.0
    %4072 = vmatpush1.xpose.msra.mxu0 0.0
    %4073 = vmatprep.subr.mxu0 0.0
    %4074 = vmatpush1.xpose.msra.mxu0 0.0
    %4075 = vmatprep.subr.mxu0 0.0
    %4076 = vmatpush1.xpose.msra.mxu0 0.0
    %4077 = vmatprep.subr.mxu0 0.0
    %4078 = vmatpush1.xpose.msra.mxu0 0.0
    %4079 = vmatprep.subr.mxu0 0.0
    %4080 = vmatpush1.xpose.msra.mxu0 0.0
    %4081 = vmatprep.subr.mxu0 0.0
    %4082 = vmatpush1.xpose.msra.mxu0 0.0
    %4083 = vmatprep.subr.mxu0 0.0
    %4084 = vmatpush1.xpose.msra.mxu0 0.0
    %4085 = vmatprep.subr.mxu0 0.0
    %4086 = vmatpush1.xpose.msra.mxu0 0.0
    %4087 = vmatprep.subr.mxu0 0.0
    %4088 = vmatpush1.xpose.msra.mxu0 0.0
    %4089 = vmatprep.subr.mxu0 0.0
    %4090 = vmatpush1.xpose.msra.mxu0 0.0
    %4091 = vmatprep.subr.mxu0 0.0
    %4092 = vmatpush1.xpose.msra.mxu0 0.0
    %4093 = vmatprep.subr.mxu0 0.0
    %4094 = vmatpush1.xpose.msra.mxu0 0.0
    %4095 = vmatprep.subr.mxu0 0.0
    %4096 = vmatpush1.xpose.msra.mxu0 0.0
    %4097 = vmatprep.subr.mxu0 0.0
    %4098 = vmatpush1.xpose.msra.mxu0 0.0
    %4099 = vmatprep.subr.mxu0 0.0
    %4100 = vmatpush1.xpose.msra.mxu0 0.0
    %4101 = vmatprep.subr.mxu0 0.0
    %4102 = vmatpush1.xpose.msra.mxu0 0.0
    %4103 = vmatprep.subr.mxu0 0.0
    %4104 = vmatpush1.xpose.msra.mxu0 0.0
    %4105 = vmatprep.subr.mxu0 0.0
    %4106 = vmatpush1.xpose.msra.mxu0 0.0
    %4107 = vmatprep.subr.mxu0 0.0
    %4108 = vmatpush1.xpose.msra.mxu0 0.0
    %4109 = vmatprep.subr.mxu0 0.0
    %4110 = vmatpush1.xpose.msra.mxu0 0.0
    %4111 = vmatprep.subr.mxu0 0.0
    %4112 = vmatpush1.xpose.msra.mxu0 0.0
    %4113 = vmatprep.subr.mxu0 0.0
    %4114 = vmatpush1.xpose.msra.mxu0 0.0
    %4115 = vmatprep.subr.mxu0 0.0
    %4116 = vmatpush1.xpose.msra.mxu0 0.0
    %4117 = vmatprep.subr.mxu0 0.0
    %4118 = vmatpush1.xpose.msra.mxu0 0.0
    %4119 = vmatprep.subr.mxu0 0.0
    %4120 = vmatpush1.xpose.msra.mxu0 0.0
    %4121 = vmatprep.subr.mxu0 0.0
    %4122 = vmatpush1.xpose.msra.mxu0 0.0
    %4123 = vmatprep.subr.mxu0 0.0
    %4124 = vmatpush1.xpose.msra.mxu0 0.0
    %4125 = vmatprep.subr.mxu0 0.0
    %4126 = vmatpush1.xpose.msra.mxu0 0.0
    %4127 = vmatprep.subr.mxu0 0.0
    %4128 = vmatpush1.xpose.msra.mxu0 0.0
    %4129 = vmatprep.subr.mxu0 0.0
    %4130 = vmatpush1.xpose.msra.mxu0 0.0
    %4131 = vmatprep.subr.mxu0 0.0
    %4132 = vmatpush1.xpose.msra.mxu0 0.0
    %4133 = vmatprep.mubr.f32.mxu0 0.0
    %4134 = vmatmul.mubr.f32.gmra.mrb[0].mxu0 %v4065
    %v4135 = vpop.f32.mrb[0].mxu0
    %v4136 = vadd.f32 %v155, %v4135
    %v4137 = vpop.f32.mrb[0].mxu0
    %4138 = vdwg.mxu0
    %v4139 = vsel %vm653, %v4058, -inf
    %4140 = vmax.xlane.f32.xlu0 %v4139
    %v4141 = vpop.xlane.xlu0 %4140
    %v4142 = vsel %vm653, %v4136, -inf
    %4143 = vmax.xlane.f32.xlu0 %v4142
    %v4144 = vpop.xlane.xlu0 %4143
    %v4145 = vsub.f32 %v4058, %v4141
    %v4146 = vsub.f32 %v4136, %v4144
    %v4147 = vmul.f32 %v4145, 1.442695
    %v4148 = vpow.pop %v4147
    %v4149 = vmul.f32 %v4146, 1.442695
    %v4150 = vpow.pop %v4149
    %v4151 = vsel %vm653, %v4148, 0.0
    %4152 = vadd.xlane.f32.xlu0 %v4151
    %v4153 = vpop.xlane.xlu0 %4152
    %v4154 = vsel %vm653, %v4150, 0.0
    %4155 = vadd.xlane.f32.xlu0 %v4154
    %v4156 = vpop.xlane.xlu0 %4155
    %4157 = vrot.lane.b32.xlu0 %v2738, 80
    %v4158 = vpop.permute.xlu0 %4157
    %v4161 = vsel %vm653, %v4148, 0
    %4163 = vmatprep.subr.mxu0 0.0
    %4164 = vmatpush1.msra.mxu0 %v4158
    %4165 = vmatprep.subr.mxu0 0.0
    %4166 = vmatpush1.msra.mxu0 0.0
    %4167 = vmatprep.subr.mxu0 0.0
    %4168 = vmatpush1.msra.mxu0 0.0
    %4169 = vmatprep.subr.mxu0 0.0
    %4170 = vmatpush1.msra.mxu0 0.0
    %4171 = vmatprep.subr.mxu0 0.0
    %4172 = vmatpush1.msra.mxu0 0.0
    %4173 = vmatprep.subr.mxu0 0.0
    %4174 = vmatpush1.msra.mxu0 0.0
    %4175 = vmatprep.subr.mxu0 0.0
    %4176 = vmatpush1.msra.mxu0 0.0
    %4177 = vmatprep.subr.mxu0 0.0
    %4178 = vmatpush1.msra.mxu0 0.0
    %4179 = vmatprep.subr.mxu0 0.0
    %4180 = vmatpush1.msra.mxu0 0.0
    %4181 = vmatprep.subr.mxu0 0.0
    %4182 = vmatpush1.msra.mxu0 0.0
    %4183 = vmatprep.subr.mxu0 0.0
    %4184 = vmatpush1.msra.mxu0 0.0
    %4185 = vmatprep.subr.mxu0 0.0
    %4186 = vmatpush1.msra.mxu0 0.0
    %4187 = vmatprep.subr.mxu0 0.0
    %4188 = vmatpush1.msra.mxu0 0.0
    %4189 = vmatprep.subr.mxu0 0.0
    %4190 = vmatpush1.msra.mxu0 0.0
    %4191 = vmatprep.subr.mxu0 0.0
    %4192 = vmatpush1.msra.mxu0 0.0
    %4193 = vmatprep.subr.mxu0 0.0
    %4194 = vmatpush1.msra.mxu0 0.0
    %4195 = vmatprep.subr.mxu0 0.0
    %4196 = vmatpush1.msra.mxu0 0.0
    %4197 = vmatprep.subr.mxu0 0.0
    %4198 = vmatpush1.msra.mxu0 0.0
    %4199 = vmatprep.subr.mxu0 0.0
    %4200 = vmatpush1.msra.mxu0 0.0
    %4201 = vmatprep.subr.mxu0 0.0
    %4202 = vmatpush1.msra.mxu0 0.0
    %4203 = vmatprep.subr.mxu0 0.0
    %4204 = vmatpush1.msra.mxu0 0.0
    %4205 = vmatprep.subr.mxu0 0.0
    %4206 = vmatpush1.msra.mxu0 0.0
    %4207 = vmatprep.subr.mxu0 0.0
    %4208 = vmatpush1.msra.mxu0 0.0
    %4209 = vmatprep.subr.mxu0 0.0
    %4210 = vmatpush1.msra.mxu0 0.0
    %4211 = vmatprep.subr.mxu0 0.0
    %4212 = vmatpush1.msra.mxu0 0.0
    %4213 = vmatprep.subr.mxu0 0.0
    %4214 = vmatpush1.msra.mxu0 0.0
    %4215 = vmatprep.subr.mxu0 0.0
    %4216 = vmatpush1.msra.mxu0 0.0
    %4217 = vmatprep.subr.mxu0 0.0
    %4218 = vmatpush1.msra.mxu0 0.0
    %4219 = vmatprep.subr.mxu0 0.0
    %4220 = vmatpush1.msra.mxu0 0.0
    %4221 = vmatprep.subr.mxu0 0.0
    %4222 = vmatpush1.msra.mxu0 0.0
    %4223 = vmatprep.subr.mxu0 0.0
    %4224 = vmatpush1.msra.mxu0 0.0
    %4225 = vmatprep.subr.mxu0 0.0
    %4226 = vmatpush1.msra.mxu0 0.0
    %4227 = vmatprep.mubr.f32.mxu0 0.0
    %4228 = vmatmul.mubr.f32.gmra.mrb[0].mxu0 %v4161
    %v4229 = vpop.f32.mrb[0].mxu0
    %v4230 = vadd.f32 0.0, %v4229
    %v4231 = vpop.f32.mrb[0].mxu0
    %4232 = vdwg.mxu0
    %4233 = vrot.lane.b32.xlu0 %v2740, 80
    %v4234 = vpop.permute.xlu0 %4233
    %v4237 = vsel %vm653, %v4150, 0
    %4239 = vmatprep.subr.mxu0 0.0
    %4240 = vmatpush1.msra.mxu0 %v4234
    %4241 = vmatprep.subr.mxu0 0.0
    %4242 = vmatpush1.msra.mxu0 0.0
    %4243 = vmatprep.subr.mxu0 0.0
    %4244 = vmatpush1.msra.mxu0 0.0
    %4245 = vmatprep.subr.mxu0 0.0
    %4246 = vmatpush1.msra.mxu0 0.0
    %4247 = vmatprep.subr.mxu0 0.0
    %4248 = vmatpush1.msra.mxu0 0.0
    %4249 = vmatprep.subr.mxu0 0.0
    %4250 = vmatpush1.msra.mxu0 0.0
    %4251 = vmatprep.subr.mxu0 0.0
    %4252 = vmatpush1.msra.mxu0 0.0
    %4253 = vmatprep.subr.mxu0 0.0
    %4254 = vmatpush1.msra.mxu0 0.0
    %4255 = vmatprep.subr.mxu0 0.0
    %4256 = vmatpush1.msra.mxu0 0.0
    %4257 = vmatprep.subr.mxu0 0.0
    %4258 = vmatpush1.msra.mxu0 0.0
    %4259 = vmatprep.subr.mxu0 0.0
    %4260 = vmatpush1.msra.mxu0 0.0
    %4261 = vmatprep.subr.mxu0 0.0
    %4262 = vmatpush1.msra.mxu0 0.0
    %4263 = vmatprep.subr.mxu0 0.0
    %4264 = vmatpush1.msra.mxu0 0.0
    %4265 = vmatprep.subr.mxu0 0.0
    %4266 = vmatpush1.msra.mxu0 0.0
    %4267 = vmatprep.subr.mxu0 0.0
    %4268 = vmatpush1.msra.mxu0 0.0
    %4269 = vmatprep.subr.mxu0 0.0
    %4270 = vmatpush1.msra.mxu0 0.0
    %4271 = vmatprep.subr.mxu0 0.0
    %4272 = vmatpush1.msra.mxu0 0.0
    %4273 = vmatprep.subr.mxu0 0.0
    %4274 = vmatpush1.msra.mxu0 0.0
    %4275 = vmatprep.subr.mxu0 0.0
    %4276 = vmatpush1.msra.mxu0 0.0
    %4277 = vmatprep.subr.mxu0 0.0
    %4278 = vmatpush1.msra.mxu0 0.0
    %4279 = vmatprep.subr.mxu0 0.0
    %4280 = vmatpush1.msra.mxu0 0.0
    %4281 = vmatprep.subr.mxu0 0.0
    %4282 = vmatpush1.msra.mxu0 0.0
    %4283 = vmatprep.subr.mxu0 0.0
    %4284 = vmatpush1.msra.mxu0 0.0
    %4285 = vmatprep.subr.mxu0 0.0
    %4286 = vmatpush1.msra.mxu0 0.0
    %4287 = vmatprep.subr.mxu0 0.0
    %4288 = vmatpush1.msra.mxu0 0.0
    %4289 = vmatprep.subr.mxu0 0.0
    %4290 = vmatpush1.msra.mxu0 0.0
    %4291 = vmatprep.subr.mxu0 0.0
    %4292 = vmatpush1.msra.mxu0 0.0
    %4293 = vmatprep.subr.mxu0 0.0
    %4294 = vmatpush1.msra.mxu0 0.0
    %4295 = vmatprep.subr.mxu0 0.0
    %4296 = vmatpush1.msra.mxu0 0.0
    %4297 = vmatprep.subr.mxu0 0.0
    %4298 = vmatpush1.msra.mxu0 0.0
    %4299 = vmatprep.subr.mxu0 0.0
    %4300 = vmatpush1.msra.mxu0 0.0
    %4301 = vmatprep.subr.mxu0 0.0
    %4302 = vmatpush1.msra.mxu0 0.0
    %4303 = vmatprep.mubr.f32.mxu0 0.0
    %4304 = vmatmul.mubr.f32.gmra.mrb[0].mxu0 %v4237
    %v4305 = vpop.f32.mrb[0].mxu0
    %v4306 = vadd.f32 0.0, %v4305
    %v4307 = vpop.f32.mrb[0].mxu0
    %4308 = vdwg.mxu0
    %v4309 = vrcp.pop %v4153
    %v4310 = vrcp.pop %v4156
    %v4311 = vmul.f32 %v4230, %v4309
    %v4312 = vmul.f32 %v4306, %v4310
    %v4314 = vsel %vm395, %v4311, 0
    %v4317 = vsel %vm395, %v4312, 0
    %4319 = vmatprep.subr.mxu0 0.0
    %4320 = vmatpush1.msra.mxu0 %v2750
    %4321 = vmatprep.subr.mxu0 0.0
    %4322 = vmatpush1.msra.mxu0 %v2751
    %4323 = vmatprep.subr.mxu0 0.0
    %4324 = vmatpush1.msra.mxu0 0.0
    %4325 = vmatprep.subr.mxu0 0.0
    %4326 = vmatpush1.msra.mxu0 0.0
    %4327 = vmatprep.subr.mxu0 0.0
    %4328 = vmatpush1.msra.mxu0 0.0
    %4329 = vmatprep.subr.mxu0 0.0
    %4330 = vmatpush1.msra.mxu0 0.0
    %4331 = vmatprep.subr.mxu0 0.0
    %4332 = vmatpush1.msra.mxu0 0.0
    %4333 = vmatprep.subr.mxu0 0.0
    %4334 = vmatpush1.msra.mxu0 0.0
    %4335 = vmatprep.subr.mxu0 0.0
    %4336 = vmatpush1.msra.mxu0 0.0
    %4337 = vmatprep.subr.mxu0 0.0
    %4338 = vmatpush1.msra.mxu0 0.0
    %4339 = vmatprep.subr.mxu0 0.0
    %4340 = vmatpush1.msra.mxu0 0.0
    %4341 = vmatprep.subr.mxu0 0.0
    %4342 = vmatpush1.msra.mxu0 0.0
    %4343 = vmatprep.subr.mxu0 0.0
    %4344 = vmatpush1.msra.mxu0 0.0
    %4345 = vmatprep.subr.mxu0 0.0
    %4346 = vmatpush1.msra.mxu0 0.0
    %4347 = vmatprep.subr.mxu0 0.0
    %4348 = vmatpush1.msra.mxu0 0.0
    %4349 = vmatprep.subr.mxu0 0.0
    %4350 = vmatpush1.msra.mxu0 0.0
    %4351 = vmatprep.subr.mxu0 0.0
    %4352 = vmatpush1.msra.mxu0 0.0
    %4353 = vmatprep.subr.mxu0 0.0
    %4354 = vmatpush1.msra.mxu0 0.0
    %4355 = vmatprep.subr.mxu0 0.0
    %4356 = vmatpush1.msra.mxu0 0.0
    %4357 = vmatprep.subr.mxu0 0.0
    %4358 = vmatpush1.msra.mxu0 0.0
    %4359 = vmatprep.subr.mxu0 0.0
    %4360 = vmatpush1.msra.mxu0 0.0
    %4361 = vmatprep.subr.mxu0 0.0
    %4362 = vmatpush1.msra.mxu0 0.0
    %4363 = vmatprep.subr.mxu0 0.0
    %4364 = vmatpush1.msra.mxu0 0.0
    %4365 = vmatprep.subr.mxu0 0.0
    %4366 = vmatpush1.msra.mxu0 0.0
    %4367 = vmatprep.subr.mxu0 0.0
    %4368 = vmatpush1.msra.mxu0 0.0
    %4369 = vmatprep.subr.mxu0 0.0
    %4370 = vmatpush1.msra.mxu0 0.0
    %4371 = vmatprep.subr.mxu0 0.0
    %4372 = vmatpush1.msra.mxu0 0.0
    %4373 = vmatprep.subr.mxu0 0.0
    %4374 = vmatpush1.msra.mxu0 0.0
    %4375 = vmatprep.subr.mxu0 0.0
    %4376 = vmatpush1.msra.mxu0 0.0
    %4377 = vmatprep.subr.mxu0 0.0
    %4378 = vmatpush1.msra.mxu0 0.0
    %4379 = vmatprep.subr.mxu0 0.0
    %4380 = vmatpush1.msra.mxu0 0.0
    %4381 = vmatprep.subr.mxu0 0.0
    %4382 = vmatpush1.msra.mxu0 0.0
    %4383 = vmatprep.mubr.f32.mxu0 0.0
    %4384 = vmatmul.mubr.f32.gmra.mrb[0].mxu0 %v4314
    %v4385 = vpop.f32.mrb[0].mxu0
    %v4386 = vadd.f32 0.0, %v4385
    %v4387 = vpop.f32.mrb[0].mxu0
    %4388 = vmatprep.mubr.f32.mxu0 0.0
    %4389 = vmatmul.mubr.f32.gmra.mrb[0].mxu0 %v4317
    %v4390 = vpop.f32.mrb[0].mxu0
    %v4391 = vadd.f32 0.0, %v4390
    %v4392 = vpop.f32.mrb[0].mxu0
    %4393 = vdwg.mxu0
    %v4394 = vadd.f32 %v3981, %v4386
    %v4395 = vadd.f32 %v3982, %v4391
    %v4396 = vadd.f32 %v2406, %v4394
    %v4397 = vadd.f32 %v2407, %v4395
    %s4398 = scalar_lea.vmem [#allocation7], 1
    %v4399 = vld [vmem:[%s4398] sm:$0x1]
    %v4401 = vlaneseq
    %v4402 = vshrl.u32 %v4401, 7
    %v4403 = vsub.s32 0, %v4402
    %v4404 = vrot.slane %v4399, %v4403
    %v4406 = vadd.f32 %v4396, %v4404
    %v4407 = vadd.f32 %v4397, %v4404
    %s4408 = scalar_lea.vmem %s9, 2
    %v4409 = vld [vmem:[%s4408] sm:$0x3]
    %v4410 = vsel %vm157, %v4406, 0.0
    %4411 = vadd.xlane.f32.xlu0 %v4410
    %v4412 = vpop.xlane.xlu0 %4411
    %v4413 = vsel %vm157, %v4407, 0.0
    %4414 = vadd.xlane.f32.xlu0 %v4413
    %v4415 = vpop.xlane.xlu0 %4414
    %v4416 = vmul.f32 %v4412, %v164
    %v4417 = vmul.f32 %v4415, %v164
    %v4418 = vsub.f32 %v4406, %v4416
    %v4419 = vsub.f32 %v4407, %v4417
    %v4420 = vmul.f32 %v4418, %v4418
    %v4421 = vmul.f32 %v4419, %v4419
    %v4422 = vsel %vm157, %v4420, 0.0
    %4423 = vadd.xlane.f32.xlu0 %v4422
    %v4424 = vpop.xlane.xlu0 %4423
    %v4425 = vsel %vm157, %v4421, 0.0
    %4426 = vadd.xlane.f32.xlu0 %v4425
    %v4427 = vpop.xlane.xlu0 %4426
    %v4428 = vmul.f32 %v4424, %v164
    %v4429 = vmul.f32 %v4427, %v164
    %v4430 = vadd.f32 %v4428, 1e-05
    %v4431 = vadd.f32 %v4429, 1e-05
    %v4432 = vrsqrt.pop %v4430
    %v4433 = vrsqrt.pop %v4431
    %v4434 = vmul.f32 %v4418, %v4432
    %v4435 = vmul.f32 %v4419, %v4433
    %v4436 = vlaneseq
    %v4437 = vshrl.u32 %v4436, 7
    %v4438 = vsub.s32 0, %v4437
    %v4439 = vrot.slane %v4409, %v4438
    %v4440 = vmul.f32 %v4434, %v4439
    %v4441 = vmul.f32 %v4435, %v4439
    %v4442 = vlaneseq
    %v4443 = vshrl.u32 %v4442, 7
    %v4444 = vsub.s32 1, %v4443
    %v4445 = vrot.slane %v4409, %v4444
    %v4446 = vadd.f32 %v4440, %v4445
    %v4447 = vadd.f32 %v4441, %v4445
    %s4448 = scalar_lea.vmem [#allocation8], 64
    %v4449 = vld [vmem:[%s4448] sm:$0xff]
    %v4450 = vld [vmem:[%s4448 + $0x8] sm:$0xff]
    %v4451 = vld [vmem:[%s4448 + $0x10] sm:$0xff]
    %v4452 = vld [vmem:[%s4448 + $0x18] sm:$0xff]
    %v4453 = vld [vmem:[%s4448 + $0x20] sm:$0xff]
    %v4454 = vld [vmem:[%s4448 + $0x28] sm:$0xff]
    %v4455 = vld [vmem:[%s4448 + $0x30] sm:$0xff]
    %v4456 = vld [vmem:[%s4448 + $0x38] sm:$0xff]
    %s4457 = scalar_lea.vmem [#allocation10], 1
    %v4458 = vld [vmem:[%s4457] sm:$0x1]
    %v4460 = vlaneseq
    %v4461 = vshrl.u32 %v4460, 7
    %v4462 = vsub.s32 0, %v4461
    %v4463 = vrot.slane %v4458, %v4462
    %v4466 = vsel %vm157, %v4446, 0
    %v4469 = vsel %vm157, %v4447, 0
    %4471 = vmatprep.subr.mxu0 0.0
    %4472 = vmatpush1.msra.mxu0 %v4449
    %4473 = vmatprep.subr.mxu0 0.0
    %4474 = vmatpush1.msra.mxu0 %v4450
    %4475 = vmatprep.subr.mxu0 0.0
    %4476 = vmatpush1.msra.mxu0 %v4451
    %4477 = vmatprep.subr.mxu0 0.0
    %4478 = vmatpush1.msra.mxu0 %v4452
    %4479 = vmatprep.subr.mxu0 0.0
    %4480 = vmatpush1.msra.mxu0 %v4453
    %4481 = vmatprep.subr.mxu0 0.0
    %4482 = vmatpush1.msra.mxu0 %v4454
    %4483 = vmatprep.subr.mxu0 0.0
    %4484 = vmatpush1.msra.mxu0 %v4455
    %4485 = vmatprep.subr.mxu0 0.0
    %4486 = vmatpush1.msra.mxu0 %v4456
    %4487 = vmatprep.subr.mxu0 0.0
    %4488 = vmatpush1.msra.mxu0 0.0
    %4489 = vmatprep.subr.mxu0 0.0
    %4490 = vmatpush1.msra.mxu0 0.0
    %4491 = vmatprep.subr.mxu0 0.0
    %4492 = vmatpush1.msra.mxu0 0.0
    %4493 = vmatprep.subr.mxu0 0.0
    %4494 = vmatpush1.msra.mxu0 0.0
    %4495 = vmatprep.subr.mxu0 0.0
    %4496 = vmatpush1.msra.mxu0 0.0
    %4497 = vmatprep.subr.mxu0 0.0
    %4498 = vmatpush1.msra.mxu0 0.0
    %4499 = vmatprep.subr.mxu0 0.0
    %4500 = vmatpush1.msra.mxu0 0.0
    %4501 = vmatprep.subr.mxu0 0.0
    %4502 = vmatpush1.msra.mxu0 0.0
    %4503 = vmatprep.subr.mxu0 0.0
    %4504 = vmatpush1.msra.mxu0 0.0
    %4505 = vmatprep.subr.mxu0 0.0
    %4506 = vmatpush1.msra.mxu0 0.0
    %4507 = vmatprep.subr.mxu0 0.0
    %4508 = vmatpush1.msra.mxu0 0.0
    %4509 = vmatprep.subr.mxu0 0.0
    %4510 = vmatpush1.msra.mxu0 0.0
    %4511 = vmatprep.subr.mxu0 0.0
    %4512 = vmatpush1.msra.mxu0 0.0
    %4513 = vmatprep.subr.mxu0 0.0
    %4514 = vmatpush1.msra.mxu0 0.0
    %4515 = vmatprep.subr.mxu0 0.0
    %4516 = vmatpush1.msra.mxu0 0.0
    %4517 = vmatprep.subr.mxu0 0.0
    %4518 = vmatpush1.msra.mxu0 0.0
    %4519 = vmatprep.subr.mxu0 0.0
    %4520 = vmatpush1.msra.mxu0 0.0
    %4521 = vmatprep.subr.mxu0 0.0
    %4522 = vmatpush1.msra.mxu0 0.0
    %4523 = vmatprep.subr.mxu0 0.0
    %4524 = vmatpush1.msra.mxu0 0.0
    %4525 = vmatprep.subr.mxu0 0.0
    %4526 = vmatpush1.msra.mxu0 0.0
    %4527 = vmatprep.subr.mxu0 0.0
    %4528 = vmatpush1.msra.mxu0 0.0
    %4529 = vmatprep.subr.mxu0 0.0
    %4530 = vmatpush1.msra.mxu0 0.0
    %4531 = vmatprep.subr.mxu0 0.0
    %4532 = vmatpush1.msra.mxu0 0.0
    %4533 = vmatprep.subr.mxu0 0.0
    %4534 = vmatpush1.msra.mxu0 0.0
    %4535 = vmatprep.mubr.f32.mxu0 0.0
    %4536 = vmatmul.mubr.f32.gmra.mrb[0].mxu0 %v4466
    %v4537 = vpop.f32.mrb[0].mxu0
    %v4538 = vadd.f32 %v4463, %v4537
    %v4539 = vpop.f32.mrb[0].mxu0
    %4540 = vmatprep.mubr.f32.mxu0 0.0
    %4541 = vmatmul.mubr.f32.gmra.mrb[0].mxu0 %v4469
    %v4542 = vpop.f32.mrb[0].mxu0
    %v4543 = vadd.f32 %v4463, %v4542
    %v4544 = vpop.f32.mrb[0].mxu0
    %4545 = vdwg.mxu0
    %v4546 = vmul.f32 %v4538, %v4538
    %v4547 = vmul.f32 %v4543, %v4543
    %v4548 = vmul.f32 %v4538, %v4546
    %v4549 = vmul.f32 %v4543, %v4547
    %v4550 = vmul.f32 %v4548, 0.044715
    %v4551 = vmul.f32 %v4549, 0.044715
    %v4552 = vadd.f32 %v4538, %v4550
    %v4553 = vadd.f32 %v4543, %v4551
    %v4554 = vmul.f32 %v4552, 0.7978846
    %v4555 = vmul.f32 %v4553, 0.7978846
    %v4556 = vtanh.pop %v4554
    %v4557 = vtanh.pop %v4555
    %v4558 = vadd.f32 %v4556, 1.0
    %v4559 = vadd.f32 %v4557, 1.0
    %v4560 = vmul.f32 %v4558, 0.5
    %v4561 = vmul.f32 %v4559, 0.5
    %v4562 = vmul.f32 %v4538, %v4560
    %v4563 = vmul.f32 %v4543, %v4561
    %s4564 = scalar_lea.vmem %s12, 128
    %v4565 = vld [vmem:[%s4564] sm:$0xff]
    %v4566 = vld [vmem:[%s4564 + $0x8] sm:$0xff]
    %v4567 = vld [vmem:[%s4564 + $0x10] sm:$0xff]
    %v4568 = vld [vmem:[%s4564 + $0x18] sm:$0xff]
    %v4569 = vld [vmem:[%s4564 + $0x20] sm:$0xff]
    %v4570 = vld [vmem:[%s4564 + $0x28] sm:$0xff]
    %v4571 = vld [vmem:[%s4564 + $0x30] sm:$0xff]
    %v4572 = vld [vmem:[%s4564 + $0x38] sm:$0xff]
    %v4573 = vld [vmem:[%s4564 + $0x40] sm:$0xff]
    %v4574 = vld [vmem:[%s4564 + $0x48] sm:$0xff]
    %v4575 = vld [vmem:[%s4564 + $0x50] sm:$0xff]
    %v4576 = vld [vmem:[%s4564 + $0x58] sm:$0xff]
    %v4577 = vld [vmem:[%s4564 + $0x60] sm:$0xff]
    %v4578 = vld [vmem:[%s4564 + $0x68] sm:$0xff]
    %v4579 = vld [vmem:[%s4564 + $0x70] sm:$0xff]
    %v4580 = vld [vmem:[%s4564 + $0x78] sm:$0xff]
    %4581 = vmatprep.subr.mxu0 0.0
    %4582 = vmatpush1.msra.mxu0 %v4565
    %4583 = vmatprep.subr.mxu0 0.0
    %4584 = vmatpush1.msra.mxu0 %v4566
    %4585 = vmatprep.subr.mxu0 0.0
    %4586 = vmatpush1.msra.mxu0 %v4567
    %4587 = vmatprep.subr.mxu0 0.0
    %4588 = vmatpush1.msra.mxu0 %v4568
    %4589 = vmatprep.subr.mxu0 0.0
    %4590 = vmatpush1.msra.mxu0 %v4569
    %4591 = vmatprep.subr.mxu0 0.0
    %4592 = vmatpush1.msra.mxu0 %v4570
    %4593 = vmatprep.subr.mxu0 0.0
    %4594 = vmatpush1.msra.mxu0 %v4571
    %4595 = vmatprep.subr.mxu0 0.0
    %4596 = vmatpush1.msra.mxu0 %v4572
    %4597 = vmatprep.subr.mxu0 0.0
    %4598 = vmatpush1.msra.mxu0 %v4573
    %4599 = vmatprep.subr.mxu0 0.0
    %4600 = vmatpush1.msra.mxu0 %v4574
    %4601 = vmatprep.subr.mxu0 0.0
    %4602 = vmatpush1.msra.mxu0 %v4575
    %4603 = vmatprep.subr.mxu0 0.0
    %4604 = vmatpush1.msra.mxu0 %v4576
    %4605 = vmatprep.subr.mxu0 0.0
    %4606 = vmatpush1.msra.mxu0 %v4577
    %4607 = vmatprep.subr.mxu0 0.0
    %4608 = vmatpush1.msra.mxu0 %v4578
    %4609 = vmatprep.subr.mxu0 0.0
    %4610 = vmatpush1.msra.mxu0 %v4579
    %4611 = vmatprep.subr.mxu0 0.0
    %4612 = vmatpush1.msra.mxu0 %v4580
    %4613 = vmatprep.subr.mxu0 0.0
    %4614 = vmatpush1.msra.mxu0 0.0
    %4615 = vmatprep.subr.mxu0 0.0
    %4616 = vmatpush1.msra.mxu0 0.0
    %4617 = vmatprep.subr.mxu0 0.0
    %4618 = vmatpush1.msra.mxu0 0.0
    %4619 = vmatprep.subr.mxu0 0.0
    %4620 = vmatpush1.msra.mxu0 0.0
    %4621 = vmatprep.subr.mxu0 0.0
    %4622 = vmatpush1.msra.mxu0 0.0
    %4623 = vmatprep.subr.mxu0 0.0
    %4624 = vmatpush1.msra.mxu0 0.0
    %4625 = vmatprep.subr.mxu0 0.0
    %4626 = vmatpush1.msra.mxu0 0.0
    %4627 = vmatprep.subr.mxu0 0.0
    %4628 = vmatpush1.msra.mxu0 0.0
    %4629 = vmatprep.subr.mxu0 0.0
    %4630 = vmatpush1.msra.mxu0 0.0
    %4631 = vmatprep.subr.mxu0 0.0
    %4632 = vmatpush1.msra.mxu0 0.0
    %4633 = vmatprep.subr.mxu0 0.0
    %4634 = vmatpush1.msra.mxu0 0.0
    %4635 = vmatprep.subr.mxu0 0.0
    %4636 = vmatpush1.msra.mxu0 0.0
    %4637 = vmatprep.subr.mxu0 0.0
    %4638 = vmatpush1.msra.mxu0 0.0
    %4639 = vmatprep.subr.mxu0 0.0
    %4640 = vmatpush1.msra.mxu0 0.0
    %4641 = vmatprep.subr.mxu0 0.0
    %4642 = vmatpush1.msra.mxu0 0.0
    %4643 = vmatprep.subr.mxu0 0.0
    %4644 = vmatpush1.msra.mxu0 0.0
    %4645 = vmatprep.mubr.f32.mxu0 0.0
    %4646 = vmatmul.mubr.f32.gmra.mrb[0].mxu0 %v4562
    %v4647 = vpop.f32.mrb[0].mxu0
    %v4648 = vadd.f32 0.0, %v4647
    %v4649 = vpop.f32.mrb[0].mxu0
    %4650 = vmatprep.mubr.f32.mxu0 0.0
    %4651 = vmatmul.mubr.f32.gmra.mrb[0].mxu0 %v4563
    %v4652 = vpop.f32.mrb[0].mxu0
    %v4653 = vadd.f32 0.0, %v4652
    %v4654 = vpop.f32.mrb[0].mxu0
    %4655 = vdwg.mxu0
    %v4656 = vadd.f32 %v4406, %v4648
    %v4657 = vadd.f32 %v4407, %v4653
    %s4658 = scalar_lea.vmem [#allocation11], 1
    %v4659 = vld [vmem:[%s4658] sm:$0x1]
    %v4661 = vlaneseq
    %v4662 = vshrl.u32 %v4661, 7
    %v4663 = vsub.s32 0, %v4662
    %v4664 = vrot.slane %v4659, %v4663
    %v4666 = vadd.f32 %v4656, %v4664
    %v4667 = vadd.f32 %v4657, %v4664
    %v4668 = vld [vmem:[%s14] sm:$0x3]
    %v4669 = vsel %vm157, %v4666, 0.0
    %4670 = vadd.xlane.f32.xlu0 %v4669
    %v4671 = vpop.xlane.xlu0 %4670
    %v4672 = vsel %vm157, %v4667, 0.0
    %4673 = vadd.xlane.f32.xlu0 %v4672
    %v4674 = vpop.xlane.xlu0 %4673
    %v4675 = vmul.f32 %v4671, %v164
    %v4676 = vmul.f32 %v4674, %v164
    %v4677 = vsub.f32 %v4666, %v4675
    %v4678 = vsub.f32 %v4667, %v4676
    %v4679 = vmul.f32 %v4677, %v4677
    %v4680 = vmul.f32 %v4678, %v4678
    %v4681 = vsel %vm157, %v4679, 0.0
    %4682 = vadd.xlane.f32.xlu0 %v4681
    %v4683 = vpop.xlane.xlu0 %4682
    %v4684 = vsel %vm157, %v4680, 0.0
    %4685 = vadd.xlane.f32.xlu0 %v4684
    %v4686 = vpop.xlane.xlu0 %4685
    %v4687 = vmul.f32 %v4683, %v164
    %v4688 = vmul.f32 %v4686, %v164
    %v4689 = vadd.f32 %v4687, 1e-05
    %v4690 = vadd.f32 %v4688, 1e-05
    %v4691 = vrsqrt.pop %v4689
    %v4692 = vrsqrt.pop %v4690
    %v4693 = vmul.f32 %v4677, %v4691
    %v4694 = vmul.f32 %v4678, %v4692
    %v4695 = vlaneseq
    %v4696 = vshrl.u32 %v4695, 7
    %v4697 = vsub.s32 0, %v4696
    %v4698 = vrot.slane %v4668, %v4697
    %v4699 = vmul.f32 %v4693, %v4698
    %v4700 = vmul.f32 %v4694, %v4698
    %v4701 = vlaneseq
    %v4702 = vshrl.u32 %v4701, 7
    %v4703 = vsub.s32 1, %v4702
    %v4704 = vrot.slane %v4668, %v4703
    %v4705 = vadd.f32 %v4699, %v4704
    %v4706 = vadd.f32 %v4700, %v4704
    %v4707 = vld [vmem:[#allocation13] sm:$0xff]
    %v4708 = vld [vmem:[#allocation13 + $0x8] sm:$0xff]
    %v4709 = vld [vmem:[#allocation13 + $0x10] sm:$0xff]
    %v4710 = vld [vmem:[#allocation13 + $0x18] sm:$0xff]
    %v4711 = vld [vmem:[#allocation13 + $0x20] sm:$0xff]
    %v4712 = vld [vmem:[#allocation13 + $0x28] sm:$0xff]
    %v4713 = vld [vmem:[#allocation13 + $0x30] sm:$0xff]
    %v4714 = vld [vmem:[#allocation13 + $0x38] sm:$0xff]
    %v4715 = vld [vmem:[%s16] sm:$0x1]
    %v4717 = vlaneseq
    %v4718 = vshrl.u32 %v4717, 7
    %v4719 = vsub.s32 0, %v4718
    %v4720 = vrot.slane %v4715, %v4719
    %v4723 = vsel %vm157, %v4705, 0
    %v4726 = vsel %vm157, %v4706, 0
    %4728 = vmatprep.subr.mxu0 0.0
    %4729 = vmatpush1.msra.mxu0 %v4707
    %4730 = vmatprep.subr.mxu0 0.0
    %4731 = vmatpush1.msra.mxu0 %v4708
    %4732 = vmatprep.subr.mxu0 0.0
    %4733 = vmatpush1.msra.mxu0 %v4709
    %4734 = vmatprep.subr.mxu0 0.0
    %4735 = vmatpush1.msra.mxu0 %v4710
    %4736 = vmatprep.subr.mxu0 0.0
    %4737 = vmatpush1.msra.mxu0 %v4711
    %4738 = vmatprep.subr.mxu0 0.0
    %4739 = vmatpush1.msra.mxu0 %v4712
    %4740 = vmatprep.subr.mxu0 0.0
    %4741 = vmatpush1.msra.mxu0 %v4713
    %4742 = vmatprep.subr.mxu0 0.0
    %4743 = vmatpush1.msra.mxu0 %v4714
    %4744 = vmatprep.subr.mxu0 0.0
    %4745 = vmatpush1.msra.mxu0 0.0
    %4746 = vmatprep.subr.mxu0 0.0
    %4747 = vmatpush1.msra.mxu0 0.0
    %4748 = vmatprep.subr.mxu0 0.0
    %4749 = vmatpush1.msra.mxu0 0.0
    %4750 = vmatprep.subr.mxu0 0.0
    %4751 = vmatpush1.msra.mxu0 0.0
    %4752 = vmatprep.subr.mxu0 0.0
    %4753 = vmatpush1.msra.mxu0 0.0
    %4754 = vmatprep.subr.mxu0 0.0
    %4755 = vmatpush1.msra.mxu0 0.0
    %4756 = vmatprep.subr.mxu0 0.0
    %4757 = vmatpush1.msra.mxu0 0.0
    %4758 = vmatprep.subr.mxu0 0.0
    %4759 = vmatpush1.msra.mxu0 0.0
    %4760 = vmatprep.subr.mxu0 0.0
    %4761 = vmatpush1.msra.mxu0 0.0
    %4762 = vmatprep.subr.mxu0 0.0
    %4763 = vmatpush1.msra.mxu0 0.0
    %4764 = vmatprep.subr.mxu0 0.0
    %4765 = vmatpush1.msra.mxu0 0.0
    %4766 = vmatprep.subr.mxu0 0.0
    %4767 = vmatpush1.msra.mxu0 0.0
    %4768 = vmatprep.subr.mxu0 0.0
    %4769 = vmatpush1.msra.mxu0 0.0
    %4770 = vmatprep.subr.mxu0 0.0
    %4771 = vmatpush1.msra.mxu0 0.0
    %4772 = vmatprep.subr.mxu0 0.0
    %4773 = vmatpush1.msra.mxu0 0.0
    %4774 = vmatprep.subr.mxu0 0.0
    %4775 = vmatpush1.msra.mxu0 0.0
    %4776 = vmatprep.subr.mxu0 0.0
    %4777 = vmatpush1.msra.mxu0 0.0
    %4778 = vmatprep.subr.mxu0 0.0
    %4779 = vmatpush1.msra.mxu0 0.0
    %4780 = vmatprep.subr.mxu0 0.0
    %4781 = vmatpush1.msra.mxu0 0.0
    %4782 = vmatprep.subr.mxu0 0.0
    %4783 = vmatpush1.msra.mxu0 0.0
    %4784 = vmatprep.subr.mxu0 0.0
    %4785 = vmatpush1.msra.mxu0 0.0
    %4786 = vmatprep.subr.mxu0 0.0
    %4787 = vmatpush1.msra.mxu0 0.0
    %4788 = vmatprep.subr.mxu0 0.0
    %4789 = vmatpush1.msra.mxu0 0.0
    %4790 = vmatprep.subr.mxu0 0.0
    %4791 = vmatpush1.msra.mxu0 0.0
    %4792 = vmatprep.mubr.f32.mxu0 0.0
    %4793 = vmatmul.mubr.f32.gmra.mrb[0].mxu0 %v4723
    %v4794 = vpop.f32.mrb[0].mxu0
    %v4795 = vadd.f32 %v4720, %v4794
    %v4796 = vpop.f32.mrb[0].mxu0
    %4797 = vmatprep.mubr.f32.mxu0 0.0
    %4798 = vmatmul.mubr.f32.gmra.mrb[0].mxu0 %v4726
    %v4799 = vpop.f32.mrb[0].mxu0
    %v4800 = vadd.f32 %v4720, %v4799
    %v4801 = vpop.f32.mrb[0].mxu0
    %4802 = vdwg.mxu0
    %4803 = vst [vmem:[#allocation14] sm:$0xff] %v4795
    %4804 = vst [vmem:[#allocation14 + $0x8] sm:$0xff] %v4800
    // Predicated region
    $region98: #{tpu_custom_call.1} parent=1 // pred_check
      _
    $region99: #{tpu_custom_call.1} parent=1 // pred_check_branch
      %4806 = sbr.rel (0) target = $region101
    $region100: #{tpu_custom_call.1} parent=1 // pred_region
      %s4808 = ssub.s32 256, 256
      %4809 = vsyncadd [#allocation4], %s4808
      %s4810 = sshll.u32 [#allocation14], 4
      %s4811 = int_to_ptr.vmem [resolvable:$true] %s4810
      %4816 = dma.vmem_to_hbm [thread:$0]  %s4811, 256, %s17, [#allocation4], 128, 128, 8
    $region101: #{tpu_custom_call.1} parent=1 // pred_fallthru
      _
    // Predicated region
    $region102: #{tpu_custom_call.1} parent=1 // pred_check
      _
    $region103: #{tpu_custom_call.1} parent=1 // pred_check_branch
      %4818 = sbr.rel (0) target = $region105
    $region104: #{tpu_custom_call.1} parent=1 // pred_region
      %4819 = dma.done [#allocation4], 256
    $region105: #{tpu_custom_call.1} parent=1 // pred_fallthru
      _
    %4820 = vsyncpa [#allocation3], 1
    %4821 = vsyncpa [#allocation6], 1
    %4822 = vsyncpa [#allocation9], 1
    %4823 = vsyncpa [#allocation12], 1
    %4824 = vsyncpa [#allocation4], 1

</llo_original>
